<compile_context>
chip_gen: v7x
topology: tpu7x:2x2x1
jax: 0.10.0
libtpu: 0.0.40
codegen_flags: <defaults>
</compile_context>

<pallas_src>
import jax
import jax.numpy as jnp
from jax.experimental import pallas as pl
from jax.experimental.pallas import tpu as pltpu


def _round_up(x, m):
    return ((x + m - 1) // m) * m


# ----------------------------------------------------------------------------
# Kernel 1: attention + context + fused single-step GRU
# ----------------------------------------------------------------------------
def attn_gru_kernel(emb_ref, hid_ref, enc_ref, eproj_ref, mask_ref,
                    awh_ref, ab_ref, av_ref,
                    wie_ref, wic_ref, whh_ref,
                    br_ref, bz_ref, bin_ref, bhn_ref,
                    hnew_ref, ctx_ref, attn_ref):
    f32 = jnp.float32
    bf16 = jnp.bfloat16

    emb = emb_ref[...]                        # (Bp, E)  f32
    hid = hid_ref[...]                        # (Bp, D)  f32
    mask = mask_ref[...]                      # (Bp, Sp) f32
    emb_b = emb.astype(bf16)
    hid_b = hid.astype(bf16)

    # ---------- Bahdanau attention (e_proj precomputed outside) ----------
    h_proj = jnp.dot(hid_b, awh_ref[...], preferred_element_type=f32)       # (Bp, D)
    energy = jnp.tanh(h_proj[:, None, :] + eproj_ref[...]
                      + ab_ref[...][None, :, :])                            # (Bp, Sp, D)
    score = jnp.sum(energy * av_ref[...][None, :, :], axis=-1)              # (Bp, Sp)
    score = jnp.where(mask == 0.0, jnp.float32(-1e10), score)               # masked_fill
    score = score - jnp.max(score, axis=1, keepdims=True)
    exps = jnp.exp(score)
    inv_den = pl.reciprocal(jnp.sum(exps, axis=1, keepdims=True), approx=True)  # EUP slot
    attn = exps * inv_den                                                   # softmax over S
    attn_ref[...] = attn

    # ---------- context = bmm(attn, encoder_outputs) on the MXU ----------
    ctx = jnp.einsum('bqs,bsh->bqh', attn[:, None, :].astype(bf16), enc_ref[...],
                     preferred_element_type=f32)[:, 0, :]                   # (Bp, 2H)
    ctx_ref[...] = ctx

    # ---------- fused single-step GRU (PyTorch gate order r, z, n) ----------
    # x @ W_i done as emb @ W_i[:E] + ctx @ W_i[E:]  (no in-kernel concat)
    gi = (jnp.dot(emb_b, wie_ref[...], preferred_element_type=f32)
          + jnp.dot(ctx.astype(bf16), wic_ref[...], preferred_element_type=f32))  # (Bp, 3D)
    gh = jnp.dot(hid_b, whh_ref[...], preferred_element_type=f32)                 # (Bp, 3D)
    D = hid.shape[1]
    r = jax.nn.sigmoid(gi[:, 0:D] + gh[:, 0:D] + br_ref[...])
    z = jax.nn.sigmoid(gi[:, D:2 * D] + gh[:, D:2 * D] + bz_ref[...])
    n = jnp.tanh(gi[:, 2 * D:] + bin_ref[...] + r * (gh[:, 2 * D:] + bhn_ref[...]))
    hnew_ref[...] = (1.0 - z) * n + z * hid


# ----------------------------------------------------------------------------
# Kernel 2: vocab-tiled fc_out([h_new ; context ; emb]) projection
# ----------------------------------------------------------------------------
def fc_out_kernel(h_ref, c_ref, e_ref, wh_ref, wc_ref, we_ref, b_ref, out_ref):
    f32 = jnp.float32
    acc = jnp.dot(h_ref[...], wh_ref[...], preferred_element_type=f32)
    acc = acc + jnp.dot(c_ref[...], wc_ref[...], preferred_element_type=f32)
    acc = acc + jnp.dot(e_ref[...], we_ref[...], preferred_element_type=f32)
    out_ref[...] = acc + b_ref[...]


# ----------------------------------------------------------------------------
# Wrapper
# ----------------------------------------------------------------------------
def decoder_forward(tokens, hidden, encoder_outputs, mask, prep, e_proj=None):
    B = tokens.shape[0]
    S = encoder_outputs.shape[1]
    H2 = encoder_outputs.shape[2]
    D = hidden.shape[1]
    E = prep['embedding'].shape[1]
    V = prep['output_dim']
    Vp = prep['fcw_h'].shape[1]
    tile_v = prep['tile_v']

    # glue: embedding gather (dropout = identity in eval mode)
    embedded = jnp.take(prep['embedding'], tokens, axis=0)                  # (B, E) f32

    # hoisted encoder projection: depends only on encoder_outputs; in a decode
    # loop compute once per sequence and pass it in for every step.
    if e_proj is None:
        e_proj = jnp.einsum('bsh,hd->bsd', encoder_outputs, prep['attn_we'])  # (B, S, D)

    # pad B to sublane multiple, S to lane multiple (padded mask = 0 -> masked out).
    # In a decode loop the S padding of enc / e_proj / mask is also once-per-sequence.
    Bp = _round_up(B, 8)
    Sp = _round_up(S, 128)
    pad_b, pad_s = Bp - B, Sp - S
    emb_p = jnp.pad(embedded, ((0, pad_b), (0, 0)))
    hid_p = jnp.pad(hidden, ((0, pad_b), (0, 0)))
    enc_p = jnp.pad(encoder_outputs, ((0, pad_b), (0, pad_s), (0, 0))).astype(jnp.bfloat16)
    eproj_p = jnp.pad(e_proj, ((0, pad_b), (0, pad_s), (0, 0)))
    mask_p = jnp.pad(mask, ((0, pad_b), (0, pad_s)))

    vmem = pl.BlockSpec(memory_space=pltpu.MemorySpace.VMEM)
    args1 = (emb_p, hid_p, enc_p, eproj_p, mask_p,
             prep['attn_wh'], prep['attn_b'], prep['attn_v'],
             prep['wi_e'], prep['wi_c'], prep['w_h'],
             prep['b_r'], prep['b_z'], prep['b_in'], prep['b_hn'])

    h_new, context, attn = pl.pallas_call(
        attn_gru_kernel,
        out_shape=(jax.ShapeDtypeStruct((Bp, D), jnp.float32),
                   jax.ShapeDtypeStruct((Bp, H2), jnp.float32),
                   jax.ShapeDtypeStruct((Bp, Sp), jnp.float32)),
        in_specs=[vmem] * len(args1),
        out_specs=(vmem, vmem, vmem),
        compiler_params=pltpu.CompilerParams(vmem_limit_bytes=32 * 1024 * 1024),
    )(*args1)

    # vocab-tiled output projection: fc_w streams tile-by-tile (auto double-
    # buffered), TILE_V is a multiple of 128 (lane-dense unmasked stores),
    # grid axis "parallel" for megacore sharding on v7x.
    grid_v = Vp // tile_v
    logits = pl.pallas_call(
        fc_out_kernel,
        out_shape=jax.ShapeDtypeStruct((Bp, Vp), jnp.float32),
        grid=(grid_v,),
        in_specs=[
            pl.BlockSpec((Bp, D), lambda v: (0, 0)),
            pl.BlockSpec((Bp, H2), lambda v: (0, 0)),
            pl.BlockSpec((Bp, E), lambda v: (0, 0)),
            pl.BlockSpec((D, tile_v), lambda v: (0, v)),
            pl.BlockSpec((H2, tile_v), lambda v: (0, v)),
            pl.BlockSpec((E, tile_v), lambda v: (0, v)),
            pl.BlockSpec((1, tile_v), lambda v: (0, v)),
        ],
        out_specs=pl.BlockSpec((Bp, tile_v), lambda v: (0, v)),
        compiler_params=pltpu.CompilerParams(
            dimension_semantics=("parallel",),
            vmem_limit_bytes=32 * 1024 * 1024),
    )(h_new.astype(jnp.bfloat16), context.astype(jnp.bfloat16),
      emb_p.astype(jnp.bfloat16),
      prep['fcw_h'], prep['fcw_c'], prep['fcw_e'], prep['fcb'])

    return logits[:B, :V], h_new[:B], attn[:B, :S]


# ----------------------------------------------------------------------------
# Parameters
# ----------------------------------------------------------------------------
def make_params(key, output_dim, emb_dim, enc_hid_dim, dec_hid_dim):
    H2 = 2 * enc_hid_dim
    D, E = dec_hid_dim, emb_dim
    I = H2 + E                       # GRU input size
    F = H2 + D + E                   # fc_out input size
    ks = jax.random.split(key, 20)
    s = 0.1

    def rnd(k, shape):
        return (s * jax.random.normal(k, shape)).astype(jnp.float32)

    return {
        'embedding': rnd(ks[0], (output_dim, E)),
        'attn_wh': rnd(ks[1], (D, D)),
        'attn_we': rnd(ks[2], (H2, D)),
        'attn_b':  rnd(ks[3], (1, D)),
        'attn_v':  rnd(ks[4], (1, D)),
        'w_ir': rnd(ks[5], (I, D)), 'w_iz': rnd(ks[6], (I, D)), 'w_in': rnd(ks[7], (I, D)),
        'w_hr': rnd(ks[8], (D, D)), 'w_hz': rnd(ks[9], (D, D)), 'w_hn': rnd(ks[10], (D, D)),
        'b_r':  rnd(ks[11], (1, D)),   # = b_ir + b_hr
        'b_z':  rnd(ks[12], (1, D)),   # = b_iz + b_hz
        'b_in': rnd(ks[13], (1, D)),
        'b_hn': rnd(ks[14], (1, D)),
        'fc_w': rnd(ks[15], (F, output_dim)),
        'fc_b': rnd(ks[16], (1, output_dim)),
    }


def prepare_params(params, tile_v=None):
    """Fuse / split / bf16-cast / vocab-pad the raw params for the kernels."""
    bf16 = jnp.bfloat16
    E = params['embedding'].shape[1]
    D = params['w_hr'].shape[0]
    H2 = params['attn_we'].shape[0]
    V = params['fc_w'].shape[1]

    if tile_v is None:
        tile_v = 128 if V <= 2048 else 512   # v7x: keep ~512; v6e/v5e could go larger
    Vp = _round_up(V, tile_v)
    pad_v = Vp - V

    w_i = jnp.concatenate([params['w_ir'], params['w_iz'], params['w_in']], axis=1)  # (E+2H, 3D)
    w_h = jnp.concatenate([params['w_hr'], params['w_hz'], params['w_hn']], axis=1)  # (D, 3D)
    fc_w = jnp.pad(params['fc_w'], ((0, 0), (0, pad_v)))
    fc_b = jnp.pad(params['fc_b'], ((0, 0), (0, pad_v)))

    return {
        'output_dim': V,
        'tile_v': tile_v,
        'embedding': params['embedding'],
        'attn_we': params['attn_we'],               # used only in the hoisted e_proj precompute
        'attn_wh': params['attn_wh'].astype(bf16),
        'attn_b': params['attn_b'],
        'attn_v': params['attn_v'],
        # fused GRU weights, K-split over [emb ; context]
        'wi_e': w_i[:E].astype(bf16),               # (E, 3D)
        'wi_c': w_i[E:].astype(bf16),               # (2H, 3D)
        'w_h': w_h.astype(bf16),                    # (D, 3D)
        'b_r': params['b_r'], 'b_z': params['b_z'],
        'b_in': params['b_in'], 'b_hn': params['b_hn'],
        # fc_out, K-split over [h_new ; context ; emb], vocab padded to Vp
        'fcw_h': fc_w[:D].astype(bf16),             # (D, Vp)
        'fcw_c': fc_w[D:D + H2].astype(bf16),       # (2H, Vp)
        'fcw_e': fc_w[D + H2:].astype(bf16),        # (E, Vp)
        'fcb': fc_b,                                # (1, Vp) f32
    }


# ----------------------------------------------------------------------------
# Pure-JAX reference (f32) for verification
# ----------------------------------------------------------------------------
def reference_forward(tokens, hidden, encoder_outputs, mask, params):
    emb = jnp.take(params['embedding'], tokens, axis=0)
    h_proj = hidden @ params['attn_wh']
    e_proj = jnp.einsum('bsh,hd->bsd', encoder_outputs, params['attn_we'])
    energy = jnp.tanh(h_proj[:, None, :] + e_proj + params['attn_b'][None])
    score = jnp.sum(energy * params['attn_v'][None], axis=-1)
    score = jnp.where(mask == 0.0, -1e10, score)
    attn = jax.nn.softmax(score, axis=1)
    context = jnp.einsum('bs,bsh->bh', attn, encoder_outputs)
    x = jnp.concatenate([emb, context], axis=1)
    r = jax.nn.sigmoid(x @ params['w_ir'] + hidden @ params['w_hr'] + params['b_r'])
    z = jax.nn.sigmoid(x @ params['w_iz'] + hidden @ params['w_hz'] + params['b_z'])
    n = jnp.tanh(x @ params['w_in'] + params['b_in']
                 + r * (hidden @ params['w_hn'] + params['b_hn']))
    h_new = (1.0 - z) * n + z * hidden
    logits = jnp.concatenate([h_new, context, emb], axis=1) @ params['fc_w'] + params['fc_b']
    return logits, h_new, attn


if __name__ == "__main__":
    B, S = 2, 8
    output_dim, emb_dim, enc_hid_dim, dec_hid_dim = 64, 32, 16, 32

    key = jax.random.PRNGKey(0)
    kp, kt, kh, ke = jax.random.split(key, 4)

    params = make_params(kp, output_dim, emb_dim, enc_hid_dim, dec_hid_dim)
    prep = prepare_params(params)

    tokens = jax.random.randint(kt, (B,), 0, output_dim)
    hidden = (0.1 * jax.random.normal(kh, (B, dec_hid_dim))).astype(jnp.float32)
    encoder_outputs = (0.1 * jax.random.normal(ke, (B, S, 2 * enc_hid_dim))).astype(jnp.float32)
    mask = jnp.ones((B, S), dtype=jnp.float32).at[1, 6:].set(0.0)   # pad last 2 of batch 1

    # hoisted once-per-sequence encoder projection (reused for every decode step)
    e_proj = jnp.einsum('bsh,hd->bsd', encoder_outputs, prep['attn_we'])

    logits, new_hidden, attn = decoder_forward(
        tokens, hidden, encoder_outputs, mask, prep, e_proj=e_proj)
    jax.block_until_ready((logits, new_hidden, attn))

    ref_logits, ref_hidden, ref_attn = reference_forward(
        tokens, hidden, encoder_outputs, mask, params)

    # bf16 MXU operands + approx reciprocal in the softmax => looser tolerance than pure f32
    assert jnp.allclose(logits, ref_logits, atol=1e-2, rtol=1e-2), \
        float(jnp.abs(logits - ref_logits).max())
    assert jnp.allclose(new_hidden, ref_hidden, atol=1e-2, rtol=1e-2), \
        float(jnp.abs(new_hidden - ref_hidden).max())
    assert jnp.allclose(attn, ref_attn, atol=1e-2, rtol=1e-2), \
        float(jnp.abs(attn - ref_attn).max())

    print("KERNEL_OK")
</pallas_src>

<mosaic_0001>
module attributes {stable_mosaic.version = 11 : i64} {
  func.func @attn_gru_kernel(%arg0: memref<8x32xf32, #tpu.memory_space<vmem>>, %arg1: memref<8x32xf32, #tpu.memory_space<vmem>>, %arg2: memref<8x128x32xbf16, #tpu.memory_space<vmem>>, %arg3: memref<8x128x32xf32, #tpu.memory_space<vmem>>, %arg4: memref<8x128xf32, #tpu.memory_space<vmem>>, %arg5: memref<32x32xbf16, #tpu.memory_space<vmem>>, %arg6: memref<1x32xf32, #tpu.memory_space<vmem>>, %arg7: memref<1x32xf32, #tpu.memory_space<vmem>>, %arg8: memref<32x96xbf16, #tpu.memory_space<vmem>>, %arg9: memref<32x96xbf16, #tpu.memory_space<vmem>>, %arg10: memref<32x96xbf16, #tpu.memory_space<vmem>>, %arg11: memref<1x32xf32, #tpu.memory_space<vmem>>, %arg12: memref<1x32xf32, #tpu.memory_space<vmem>>, %arg13: memref<1x32xf32, #tpu.memory_space<vmem>>, %arg14: memref<1x32xf32, #tpu.memory_space<vmem>>, %arg15: memref<8x32xf32, #tpu.memory_space<vmem>>, %arg16: memref<8x32xf32, #tpu.memory_space<vmem>>, %arg17: memref<8x128xf32, #tpu.memory_space<vmem>>) attributes {dimension_semantics = [], scalar_prefetch = 0 : i64, scratch_operands = 0 : i64, tpu.core_type = #tpu.core_type<tc>} {
    %c0 = arith.constant 0 : index
    %c0_0 = arith.constant 0 : index
    %0 = vector.load %arg0[%c0, %c0_0] : memref<8x32xf32, #tpu.memory_space<vmem>>, vector<8x32xf32>
    %c0_1 = arith.constant 0 : index
    %c0_2 = arith.constant 0 : index
    %1 = vector.load %arg1[%c0_1, %c0_2] : memref<8x32xf32, #tpu.memory_space<vmem>>, vector<8x32xf32>
    %c0_3 = arith.constant 0 : index
    %c0_4 = arith.constant 0 : index
    %2 = vector.load %arg4[%c0_3, %c0_4] : memref<8x128xf32, #tpu.memory_space<vmem>>, vector<8x128xf32>
    %3 = arith.truncf %0 : vector<8x32xf32> to vector<8x32xbf16>
    %4 = arith.truncf %1 : vector<8x32xf32> to vector<8x32xbf16>
    %c0_5 = arith.constant 0 : index
    %c0_6 = arith.constant 0 : index
    %5 = vector.load %arg5[%c0_5, %c0_6] : memref<32x32xbf16, #tpu.memory_space<vmem>>, vector<32x32xbf16>
    %cst = arith.constant dense<0.000000e+00> : vector<8x32xf32>
    %6 = tpu.matmul %4, %5, %cst {dimension_numbers = #tpu.dot_dimension_numbers<[1], [0], [0], [1], [0, 0, 1, 1], [], []>} : vector<8x32xbf16>, vector<32x32xbf16>, vector<8x32xf32> -> vector<8x32xf32>
    %7 = vector.shape_cast %6 : vector<8x32xf32> to vector<8x1x32xf32>
    %c0_7 = arith.constant 0 : index
    %c0_8 = arith.constant 0 : index
    %c0_9 = arith.constant 0 : index
    %8 = vector.load %arg3[%c0_7, %c0_8, %c0_9] : memref<8x128x32xf32, #tpu.memory_space<vmem>>, vector<8x128x32xf32>
    %9 = vector.broadcast %7 : vector<8x1x32xf32> to vector<8x128x32xf32>
    %10 = arith.addf %9, %8 : vector<8x128x32xf32>
    %c0_10 = arith.constant 0 : index
    %c0_11 = arith.constant 0 : index
    %11 = vector.load %arg6[%c0_10, %c0_11] : memref<1x32xf32, #tpu.memory_space<vmem>>, vector<1x32xf32>
    %12 = vector.shape_cast %11 : vector<1x32xf32> to vector<1x1x32xf32>
    %13 = vector.broadcast %12 : vector<1x1x32xf32> to vector<8x128x32xf32>
    %14 = arith.addf %10, %13 : vector<8x128x32xf32>
    %15 = math.tanh %14 : vector<8x128x32xf32>
    %c0_12 = arith.constant 0 : index
    %c0_13 = arith.constant 0 : index
    %16 = vector.load %arg7[%c0_12, %c0_13] : memref<1x32xf32, #tpu.memory_space<vmem>>, vector<1x32xf32>
    %17 = vector.shape_cast %16 : vector<1x32xf32> to vector<1x1x32xf32>
    %18 = vector.broadcast %17 : vector<1x1x32xf32> to vector<8x128x32xf32>
    %19 = arith.mulf %15, %18 : vector<8x128x32xf32>
    %cst_14 = arith.constant dense<0.000000e+00> : vector<8x128xf32>
    %20 = vector.multi_reduction <add>, %19, %cst_14 [2] : vector<8x128x32xf32> to vector<8x128xf32>
    %cst_15 = arith.constant 0.000000e+00 : f32
    %21 = vector.broadcast %cst_15 : f32 to vector<8x128xf32>
    %22 = arith.cmpf oeq, %2, %21 : vector<8x128xf32>
    %cst_16 = arith.constant -1.000000e+10 : f32
    %23 = vector.broadcast %cst_16 : f32 to vector<8x128xf32>
    %24 = arith.select %22, %23, %20 : vector<8x128xi1>, vector<8x128xf32>
    %cst_17 = arith.constant dense<0xFF800000> : vector<8xf32>
    %25 = vector.multi_reduction <maximumf>, %24, %cst_17 [1] : vector<8x128xf32> to vector<8xf32>
    %26 = vector.shape_cast %25 : vector<8xf32> to vector<8x1xf32>
    %27 = vector.broadcast %26 : vector<8x1xf32> to vector<8x128xf32>
    %28 = arith.subf %24, %27 : vector<8x128xf32>
    %29 = math.exp %28 : vector<8x128xf32>
    %cst_18 = arith.constant dense<0.000000e+00> : vector<8xf32>
    %30 = vector.multi_reduction <add>, %29, %cst_18 [1] : vector<8x128xf32> to vector<8xf32>
    %31 = vector.shape_cast %30 : vector<8xf32> to vector<8x1xf32>
    %32 = tpu.reciprocal %31 {approx = true} : vector<8x1xf32> -> vector<8x1xf32>
    %33 = vector.broadcast %32 : vector<8x1xf32> to vector<8x128xf32>
    %34 = arith.mulf %29, %33 : vector<8x128xf32>
    %c0_19 = arith.constant 0 : index
    %c0_20 = arith.constant 0 : index
    %35 = vector.load %arg17[%c0_19, %c0_20] : memref<8x128xf32, #tpu.memory_space<vmem>>, vector<8x128xf32>
    tpu.vector_store %arg17[%c0_19, %c0_20], %34 {strides = array<i32>} : memref<8x128xf32, #tpu.memory_space<vmem>>, vector<8x128xf32>,
    %36 = vector.shape_cast %34 : vector<8x128xf32> to vector<8x1x128xf32>
    %37 = arith.truncf %36 : vector<8x1x128xf32> to vector<8x1x128xbf16>
    %c0_21 = arith.constant 0 : index
    %c0_22 = arith.constant 0 : index
    %c0_23 = arith.constant 0 : index
    %38 = vector.load %arg2[%c0_21, %c0_22, %c0_23] : memref<8x128x32xbf16, #tpu.memory_space<vmem>>, vector<8x128x32xbf16>
    "tpu.trace_start"() <{level = 10 : i32, message = "bqs,bsh->bqh"}> : () -> ()
    %cst_24 = arith.constant dense<0.000000e+00> : vector<8x1x32xf32>
    %39 = tpu.matmul %37, %38, %cst_24 {dimension_numbers = #tpu.dot_dimension_numbers<[2], [1], [1], [2], [0, 0, 0, 1, 1, 2], [0], [0]>} : vector<8x1x128xbf16>, vector<8x128x32xbf16>, vector<8x1x32xf32> -> vector<8x1x32xf32>
    "tpu.trace_stop"() : () -> ()
    %40 = vector.shape_cast %39 : vector<8x1x32xf32> to vector<8x32xf32>
    %c0_25 = arith.constant 0 : index
    %c0_26 = arith.constant 0 : index
    %41 = vector.load %arg16[%c0_25, %c0_26] : memref<8x32xf32, #tpu.memory_space<vmem>>, vector<8x32xf32>
    tpu.vector_store %arg16[%c0_25, %c0_26], %40 {strides = array<i32>} : memref<8x32xf32, #tpu.memory_space<vmem>>, vector<8x32xf32>,
    %c0_27 = arith.constant 0 : index
    %c0_28 = arith.constant 0 : index
    %42 = vector.load %arg8[%c0_27, %c0_28] : memref<32x96xbf16, #tpu.memory_space<vmem>>, vector<32x96xbf16>
    %cst_29 = arith.constant dense<0.000000e+00> : vector<8x96xf32>
    %43 = tpu.matmul %3, %42, %cst_29 {dimension_numbers = #tpu.dot_dimension_numbers<[1], [0], [0], [1], [0, 0, 1, 1], [], []>} : vector<8x32xbf16>, vector<32x96xbf16>, vector<8x96xf32> -> vector<8x96xf32>
    %44 = arith.truncf %40 : vector<8x32xf32> to vector<8x32xbf16>
    %c0_30 = arith.constant 0 : index
    %c0_31 = arith.constant 0 : index
    %45 = vector.load %arg9[%c0_30, %c0_31] : memref<32x96xbf16, #tpu.memory_space<vmem>>, vector<32x96xbf16>
    %cst_32 = arith.constant dense<0.000000e+00> : vector<8x96xf32>
    %46 = tpu.matmul %44, %45, %cst_32 {dimension_numbers = #tpu.dot_dimension_numbers<[1], [0], [0], [1], [0, 0, 1, 1], [], []>} : vector<8x32xbf16>, vector<32x96xbf16>, vector<8x96xf32> -> vector<8x96xf32>
    %47 = arith.addf %43, %46 : vector<8x96xf32>
    %c0_33 = arith.constant 0 : index
    %c0_34 = arith.constant 0 : index
    %48 = vector.load %arg10[%c0_33, %c0_34] : memref<32x96xbf16, #tpu.memory_space<vmem>>, vector<32x96xbf16>
    %cst_35 = arith.constant dense<0.000000e+00> : vector<8x96xf32>
    %49 = tpu.matmul %4, %48, %cst_35 {dimension_numbers = #tpu.dot_dimension_numbers<[1], [0], [0], [1], [0, 0, 1, 1], [], []>} : vector<8x32xbf16>, vector<32x96xbf16>, vector<8x96xf32> -> vector<8x96xf32>
    %50 = vector.extract_strided_slice %47 {offsets = [0, 0], sizes = [8, 32], strides = [1, 1]} : vector<8x96xf32> to vector<8x32xf32>
    %51 = vector.extract_strided_slice %49 {offsets = [0, 0], sizes = [8, 32], strides = [1, 1]} : vector<8x96xf32> to vector<8x32xf32>
    %52 = arith.addf %50, %51 : vector<8x32xf32>
    %c0_36 = arith.constant 0 : index
    %c0_37 = arith.constant 0 : index
    %53 = vector.load %arg11[%c0_36, %c0_37] : memref<1x32xf32, #tpu.memory_space<vmem>>, vector<1x32xf32>
    %54 = vector.broadcast %53 : vector<1x32xf32> to vector<8x32xf32>
    %55 = arith.addf %52, %54 : vector<8x32xf32>
    %56 = arith.negf %55 : vector<8x32xf32>
    %57 = math.exp %56 : vector<8x32xf32>
    %cst_38 = arith.constant 1.000000e+00 : f32
    %58 = vector.broadcast %cst_38 : f32 to vector<8x32xf32>
    %59 = arith.addf %58, %57 : vector<8x32xf32>
    %60 = arith.divf %58, %59 : vector<8x32xf32>
    %61 = vector.extract_strided_slice %47 {offsets = [0, 32], sizes = [8, 32], strides = [1, 1]} : vector<8x96xf32> to vector<8x32xf32>
    %62 = vector.extract_strided_slice %49 {offsets = [0, 32], sizes = [8, 32], strides = [1, 1]} : vector<8x96xf32> to vector<8x32xf32>
    %63 = arith.addf %61, %62 : vector<8x32xf32>
    %c0_39 = arith.constant 0 : index
    %c0_40 = arith.constant 0 : index
    %64 = vector.load %arg12[%c0_39, %c0_40] : memref<1x32xf32, #tpu.memory_space<vmem>>, vector<1x32xf32>
    %65 = vector.broadcast %64 : vector<1x32xf32> to vector<8x32xf32>
    %66 = arith.addf %63, %65 : vector<8x32xf32>
    %67 = arith.negf %66 : vector<8x32xf32>
    %68 = math.exp %67 : vector<8x32xf32>
    %cst_41 = arith.constant 1.000000e+00 : f32
    %69 = vector.broadcast %cst_41 : f32 to vector<8x32xf32>
    %70 = arith.addf %69, %68 : vector<8x32xf32>
    %71 = arith.divf %69, %70 : vector<8x32xf32>
    %72 = vector.extract_strided_slice %47 {offsets = [0, 64], sizes = [8, 32], strides = [1, 1]} : vector<8x96xf32> to vector<8x32xf32>
    %c0_42 = arith.constant 0 : index
    %c0_43 = arith.constant 0 : index
    %73 = vector.load %arg13[%c0_42, %c0_43] : memref<1x32xf32, #tpu.memory_space<vmem>>, vector<1x32xf32>
    %74 = vector.broadcast %73 : vector<1x32xf32> to vector<8x32xf32>
    %75 = arith.addf %72, %74 : vector<8x32xf32>
    %76 = vector.extract_strided_slice %49 {offsets = [0, 64], sizes = [8, 32], strides = [1, 1]} : vector<8x96xf32> to vector<8x32xf32>
    %c0_44 = arith.constant 0 : index
    %c0_45 = arith.constant 0 : index
    %77 = vector.load %arg14[%c0_44, %c0_45] : memref<1x32xf32, #tpu.memory_space<vmem>>, vector<1x32xf32>
    %78 = vector.broadcast %77 : vector<1x32xf32> to vector<8x32xf32>
    %79 = arith.addf %76, %78 : vector<8x32xf32>
    %80 = arith.mulf %60, %79 : vector<8x32xf32>
    %81 = arith.addf %75, %80 : vector<8x32xf32>
    %82 = math.tanh %81 : vector<8x32xf32>
    %cst_46 = arith.constant 1.000000e+00 : f32
    %83 = vector.broadcast %cst_46 : f32 to vector<8x32xf32>
    %84 = arith.subf %83, %71 : vector<8x32xf32>
    %85 = arith.mulf %84, %82 : vector<8x32xf32>
    %86 = arith.mulf %71, %1 : vector<8x32xf32>
    %87 = arith.addf %85, %86 : vector<8x32xf32>
    %c0_47 = arith.constant 0 : index
    %c0_48 = arith.constant 0 : index
    %88 = vector.load %arg15[%c0_47, %c0_48] : memref<8x32xf32, #tpu.memory_space<vmem>>, vector<8x32xf32>
    tpu.vector_store %arg15[%c0_47, %c0_48], %87 {strides = array<i32>} : memref<8x32xf32, #tpu.memory_space<vmem>>, vector<8x32xf32>,
    return
  }
}

</mosaic_0001>

<llo_original>
// kernel: tpu_custom_call.1
$region0: #{tpu_custom_call.1}
  #allocation0 [shape = 'u32[]', space=smem, size = 0x4, offset = 0x4, fixed_abs, tag = 'smem constant byte address 0x4 - core index']
  #allocation1 [shape = 'u32[144,128]{1,0:T(1,128)}', space=vmem, size = 0x12000, scoped, tag = 'internal scratch']
  %s0 = inlined_call_operand.vmem [shape: f32[8,32], index: 0, kind: input, shape index: {}]
  %s1 = inlined_call_operand.vmem [shape: f32[8,32], index: 1, kind: input, shape index: {}]
  %s2 = inlined_call_operand.vmem [shape: bf16[8,128,32], index: 2, kind: input, shape index: {}]
  %s3 = inlined_call_operand.vmem [shape: f32[8,128,32], index: 3, kind: input, shape index: {}]
  %s4 = inlined_call_operand.vmem [shape: f32[8,128], index: 4, kind: input, shape index: {}]
  %s5 = inlined_call_operand.vmem [shape: bf16[32,32], index: 5, kind: input, shape index: {}]
  %s6 = inlined_call_operand.vmem [shape: f32[1,32], index: 6, kind: input, shape index: {}]
  %s7 = inlined_call_operand.vmem [shape: f32[1,32], index: 7, kind: input, shape index: {}]
  %s8 = inlined_call_operand.vmem [shape: bf16[32,96], index: 8, kind: input, shape index: {}]
  %s9 = inlined_call_operand.vmem [shape: bf16[32,96], index: 9, kind: input, shape index: {}]
  %s10 = inlined_call_operand.vmem [shape: bf16[32,96], index: 10, kind: input, shape index: {}]
  %s11 = inlined_call_operand.vmem [shape: f32[1,32], index: 11, kind: input, shape index: {}]
  %s12 = inlined_call_operand.vmem [shape: f32[1,32], index: 12, kind: input, shape index: {}]
  %s13 = inlined_call_operand.vmem [shape: f32[1,32], index: 13, kind: input, shape index: {}]
  %s14 = inlined_call_operand.vmem [shape: f32[1,32], index: 14, kind: input, shape index: {}]
  %s15 = inlined_call_operand.hbm [shape: f32[8,32], index: 15, kind: output, shape index: {0}]
  %s16 = inlined_call_operand.hbm [shape: f32[8,32], index: 16, kind: output, shape index: {1}]
  %s17 = inlined_call_operand.hbm [shape: f32[8,128], index: 17, kind: output, shape index: {2}]
  %18 = xla_tuple %s15, %s16, %s17
  %s19 = sld [smem:[#allocation0]]
  $region86: #{tpu_custom_call.1} parent=0
    _
  %s21 = ssub.s32 1, %s19
  %s22 = scalar_select 0, %s21, %s19
  $region1: #{tpu_custom_call.1} parent=0
    #allocation2 [shape = 'u8[4096]{0}', space=vmem, size = 0x1000, scoped, tag = 'output window, operand 0, single buffered']
    #allocation3 [shape = 's32[1]{0}', space=sflag, size = 0x4, scoped, tag = 'scoped memory for tpu_custom_call.1']
    #allocation4 [shape = 'u8[4096]{0}', space=vmem, size = 0x1000, scoped, tag = 'output window, operand 1, single buffered']
    #allocation5 [shape = 's32[1]{0}', space=sflag, size = 0x4, scoped, tag = 'scoped memory for tpu_custom_call.1']
    #allocation6 [shape = 'u8[4096]{0}', space=vmem, size = 0x1000, scoped, tag = 'output window, operand 2, single buffered']
    %23 = vsyncpa [#allocation3], 0
    %24 = vsyncpa [#allocation5], 0
    // Predicated region
    $region2: #{tpu_custom_call.1} parent=1 // pred_check
      _
    $region3: #{tpu_custom_call.1} parent=1 // pred_check_branch
      %26 = sbr.rel (0) target = $region5
    $region4: #{tpu_custom_call.1} parent=1 // pred_region
      _
    $region5: #{tpu_custom_call.1} parent=1 // pred_fallthru
      _
    // Predicated region
    $region6: #{tpu_custom_call.1} parent=1 // pred_check
      _
    $region7: #{tpu_custom_call.1} parent=1 // pred_check_branch
      %28 = sbr.rel (0) target = $region9
    $region8: #{tpu_custom_call.1} parent=1 // pred_region
      _
    $region9: #{tpu_custom_call.1} parent=1 // pred_fallthru
      _
    // Predicated region
    $region10: #{tpu_custom_call.1} parent=1 // pred_check
      _
    $region11: #{tpu_custom_call.1} parent=1 // pred_check_branch
      %30 = sbr.rel (0) target = $region13
    $region12: #{tpu_custom_call.1} parent=1 // pred_region
      _
    $region13: #{tpu_custom_call.1} parent=1 // pred_fallthru
      _
    // Predicated region
    $region14: #{tpu_custom_call.1} parent=1 // pred_check
      _
    $region15: #{tpu_custom_call.1} parent=1 // pred_check_branch
      %32 = sbr.rel (0) target = $region17
    $region16: #{tpu_custom_call.1} parent=1 // pred_region
      _
    $region17: #{tpu_custom_call.1} parent=1 // pred_fallthru
      _
    // Predicated region
    $region18: #{tpu_custom_call.1} parent=1 // pred_check
      _
    $region19: #{tpu_custom_call.1} parent=1 // pred_check_branch
      %34 = sbr.rel (0) target = $region21
    $region20: #{tpu_custom_call.1} parent=1 // pred_region
      _
    $region21: #{tpu_custom_call.1} parent=1 // pred_fallthru
      _
    // Predicated region
    $region22: #{tpu_custom_call.1} parent=1 // pred_check
      _
    $region23: #{tpu_custom_call.1} parent=1 // pred_check_branch
      %36 = sbr.rel (0) target = $region25
    $region24: #{tpu_custom_call.1} parent=1 // pred_region
      _
    $region25: #{tpu_custom_call.1} parent=1 // pred_fallthru
      _
    // Predicated region
    $region26: #{tpu_custom_call.1} parent=1 // pred_check
      _
    $region27: #{tpu_custom_call.1} parent=1 // pred_check_branch
      %38 = sbr.rel (0) target = $region29
    $region28: #{tpu_custom_call.1} parent=1 // pred_region
      _
    $region29: #{tpu_custom_call.1} parent=1 // pred_fallthru
      _
    // Predicated region
    $region30: #{tpu_custom_call.1} parent=1 // pred_check
      _
    $region31: #{tpu_custom_call.1} parent=1 // pred_check_branch
      %40 = sbr.rel (0) target = $region33
    $region32: #{tpu_custom_call.1} parent=1 // pred_region
      _
    $region33: #{tpu_custom_call.1} parent=1 // pred_fallthru
      _
    // Predicated region
    $region34: #{tpu_custom_call.1} parent=1 // pred_check
      _
    $region35: #{tpu_custom_call.1} parent=1 // pred_check_branch
      %42 = sbr.rel (0) target = $region37
    $region36: #{tpu_custom_call.1} parent=1 // pred_region
      _
    $region37: #{tpu_custom_call.1} parent=1 // pred_fallthru
      _
    // Predicated region
    $region38: #{tpu_custom_call.1} parent=1 // pred_check
      _
    $region39: #{tpu_custom_call.1} parent=1 // pred_check_branch
      %44 = sbr.rel (0) target = $region41
    $region40: #{tpu_custom_call.1} parent=1 // pred_region
      _
    $region41: #{tpu_custom_call.1} parent=1 // pred_fallthru
      _
    // Predicated region
    $region42: #{tpu_custom_call.1} parent=1 // pred_check
      _
    $region43: #{tpu_custom_call.1} parent=1 // pred_check_branch
      %46 = sbr.rel (0) target = $region45
    $region44: #{tpu_custom_call.1} parent=1 // pred_region
      _
    $region45: #{tpu_custom_call.1} parent=1 // pred_fallthru
      _
    // Predicated region
    $region46: #{tpu_custom_call.1} parent=1 // pred_check
      _
    $region47: #{tpu_custom_call.1} parent=1 // pred_check_branch
      %48 = sbr.rel (0) target = $region49
    $region48: #{tpu_custom_call.1} parent=1 // pred_region
      _
    $region49: #{tpu_custom_call.1} parent=1 // pred_fallthru
      _
    // Predicated region
    $region50: #{tpu_custom_call.1} parent=1 // pred_check
      _
    $region51: #{tpu_custom_call.1} parent=1 // pred_check_branch
      %50 = sbr.rel (0) target = $region53
    $region52: #{tpu_custom_call.1} parent=1 // pred_region
      _
    $region53: #{tpu_custom_call.1} parent=1 // pred_fallthru
      _
    // Predicated region
    $region54: #{tpu_custom_call.1} parent=1 // pred_check
      _
    $region55: #{tpu_custom_call.1} parent=1 // pred_check_branch
      %52 = sbr.rel (0) target = $region57
    $region56: #{tpu_custom_call.1} parent=1 // pred_region
      _
    $region57: #{tpu_custom_call.1} parent=1 // pred_fallthru
      _
    // Predicated region
    $region58: #{tpu_custom_call.1} parent=1 // pred_check
      _
    $region59: #{tpu_custom_call.1} parent=1 // pred_check_branch
      %54 = sbr.rel (0) target = $region61
    $region60: #{tpu_custom_call.1} parent=1 // pred_region
      _
    $region61: #{tpu_custom_call.1} parent=1 // pred_fallthru
      _
    %v56 = vld [vmem:[%s0] sm:$0xff]
    %v57 = vld [vmem:[%s1] sm:$0xff]
    %v58 = vld [vmem:[%s4] sm:$0xff]
    %v59 = vpack.c.bf16 %v56, %v56
    %v60 = vpack.c.bf16 %v57, %v57
    %v61 = vld [vmem:[%s5] sm:$0xf]
    %v62 = vld [vmem:[%s5 + $0x4] sm:$0xf]
    %v63 = vld [vmem:[%s5 + $0x8] sm:$0xf]
    %v64 = vld [vmem:[%s5 + $0xc] sm:$0xf]
    %v69 = vunpack.c.l.b16 %v61
    %v70 = vunpack.c.l.b16 %v62
    %v71 = vunpack.c.l.b16 %v63
    %v72 = vunpack.c.l.b16 %v64
    %v73 = vpack.c.b16 %v70, %v69
    %v74 = vpack.c.b16 %v72, %v71
    %vm77 = vcmask 261120
    %v79 = vsel %vm77, %v60, 0
    %81 = vmatprep.subr.bf16.mxu0 0
    %82 = vmatpush1.bf16.msra.mxu0 %v73
    %83 = vmatprep.subr.bf16.mxu0 0
    %84 = vmatpush1.bf16.msra.mxu0 %v74
    %85 = vmatprep.subr.bf16.mxu0 0
    %86 = vmatpush1.bf16.msra.mxu0 0
    %87 = vmatprep.subr.bf16.mxu0 0
    %88 = vmatpush1.bf16.msra.mxu0 0
    %89 = vmatprep.subr.bf16.mxu0 0
    %90 = vmatpush1.bf16.msra.mxu0 0
    %91 = vmatprep.subr.bf16.mxu0 0
    %92 = vmatpush1.bf16.msra.mxu0 0
    %93 = vmatprep.subr.bf16.mxu0 0
    %94 = vmatpush1.bf16.msra.mxu0 0
    %95 = vmatprep.subr.bf16.mxu0 0
    %96 = vmatpush1.bf16.msra.mxu0 0
    %97 = vmatprep.subr.bf16.mxu0 0
    %98 = vmatpush1.bf16.msra.mxu0 0
    %99 = vmatprep.subr.bf16.mxu0 0
    %100 = vmatpush1.bf16.msra.mxu0 0
    %101 = vmatprep.subr.bf16.mxu0 0
    %102 = vmatpush1.bf16.msra.mxu0 0
    %103 = vmatprep.subr.bf16.mxu0 0
    %104 = vmatpush1.bf16.msra.mxu0 0
    %105 = vmatprep.subr.bf16.mxu0 0
    %106 = vmatpush1.bf16.msra.mxu0 0
    %107 = vmatprep.subr.bf16.mxu0 0
    %108 = vmatpush1.bf16.msra.mxu0 0
    %109 = vmatprep.subr.bf16.mxu0 0
    %110 = vmatpush1.bf16.msra.mxu0 0
    %111 = vmatprep.subr.bf16.mxu0 0
    %112 = vmatpush1.bf16.msra.mxu0 0
    %113 = vmatprep.mubr.bf16.mxu0 0
    %114 = vmatmul.mubr.bf16.gmra.mrb[0].mxu0 %v79
    %v115 = vpop.f32.mrb[0].mxu0
    %v116 = vadd.f32 0.0, %v115
    %v117 = vpop.f32.mrb[0].mxu0
    %v118 = vpop.f32.mrb[0].mxu0
    %v119 = vpop.f32.mrb[0].mxu0
    %120 = vdwg.mxu0
    %v122 = vcombine.high %v116, %v116
    %v124 = vunpack.c.l.s4 1966171168
    %v125 = vunpack.c.0.s8 %v124
    %v126 = vlaneseq
    %v127 = vshrl.u32 %v126, 7
    %v128 = vsub.s32 %v125, %v127
    %v129 = vrot.slane %v116, %v128
    %v131 = vunpack.c.l.s4 1966171168
    %v132 = vunpack.c.0.s8 %v131
    %v133 = vlaneseq
    %v134 = vshrl.u32 %v133, 7
    %v135 = vsub.s32 %v132, %v134
    %v136 = vrot.slane %v122, %v135
    %v137 = vcombine.high %v129, %v129
    %v138 = vcombine.high %v136, %v136
    %v140 = vunpack.c.l.s4 1966171168
    %v141 = vunpack.c.0.s8 %v140
    %v142 = vlaneseq
    %v143 = vshrl.u32 %v142, 7
    %v144 = vsub.s32 %v141, %v143
    %v145 = vrot.slane %v129, %v144
    %v147 = vunpack.c.l.s4 1966171168
    %v148 = vunpack.c.0.s8 %v147
    %v149 = vlaneseq
    %v150 = vshrl.u32 %v149, 7
    %v151 = vsub.s32 %v148, %v150
    %v152 = vrot.slane %v136, %v151
    %v154 = vunpack.c.l.s4 1966171168
    %v155 = vunpack.c.0.s8 %v154
    %v156 = vlaneseq
    %v157 = vshrl.u32 %v156, 7
    %v158 = vsub.s32 %v155, %v157
    %v159 = vrot.slane %v137, %v158
    %v161 = vunpack.c.l.s4 1966171168
    %v162 = vunpack.c.0.s8 %v161
    %v163 = vlaneseq
    %v164 = vshrl.u32 %v163, 7
    %v165 = vsub.s32 %v162, %v164
    %v166 = vrot.slane %v138, %v165
    %v167 = vcombine.high %v145, %v145
    %v168 = vcombine.high %v152, %v152
    %v169 = vcombine.high %v159, %v159
    %v170 = vcombine.high %v166, %v166
    %v171 = vld [vmem:[%s3] sm:$0xff]
    %v172 = vld [vmem:[%s3 + $0x8] sm:$0xff]
    %v173 = vld [vmem:[%s3 + $0x10] sm:$0xff]
    %v174 = vld [vmem:[%s3 + $0x18] sm:$0xff]
    %v175 = vld [vmem:[%s3 + $0x20] sm:$0xff]
    %v176 = vld [vmem:[%s3 + $0x28] sm:$0xff]
    %v177 = vld [vmem:[%s3 + $0x30] sm:$0xff]
    %v178 = vld [vmem:[%s3 + $0x38] sm:$0xff]
    %v179 = vld [vmem:[%s3 + $0x40] sm:$0xff]
    %v180 = vld [vmem:[%s3 + $0x48] sm:$0xff]
    %v181 = vld [vmem:[%s3 + $0x50] sm:$0xff]
    %v182 = vld [vmem:[%s3 + $0x58] sm:$0xff]
    %v183 = vld [vmem:[%s3 + $0x60] sm:$0xff]
    %v184 = vld [vmem:[%s3 + $0x68] sm:$0xff]
    %v185 = vld [vmem:[%s3 + $0x70] sm:$0xff]
    %v186 = vld [vmem:[%s3 + $0x78] sm:$0xff]
    %v187 = vld [vmem:[%s3 + $0x80] sm:$0xff]
    %v188 = vld [vmem:[%s3 + $0x88] sm:$0xff]
    %v189 = vld [vmem:[%s3 + $0x90] sm:$0xff]
    %v190 = vld [vmem:[%s3 + $0x98] sm:$0xff]
    %v191 = vld [vmem:[%s3 + $0xa0] sm:$0xff]
    %v192 = vld [vmem:[%s3 + $0xa8] sm:$0xff]
    %v193 = vld [vmem:[%s3 + $0xb0] sm:$0xff]
    %v194 = vld [vmem:[%s3 + $0xb8] sm:$0xff]
    %v195 = vld [vmem:[%s3 + $0xc0] sm:$0xff]
    %v196 = vld [vmem:[%s3 + $0xc8] sm:$0xff]
    %v197 = vld [vmem:[%s3 + $0xd0] sm:$0xff]
    %v198 = vld [vmem:[%s3 + $0xd8] sm:$0xff]
    %v199 = vld [vmem:[%s3 + $0xe0] sm:$0xff]
    %v200 = vld [vmem:[%s3 + $0xe8] sm:$0xff]
    %v201 = vld [vmem:[%s3 + $0xf0] sm:$0xff]
    %v202 = vld [vmem:[%s3 + $0xf8] sm:$0xff]
    %v203 = vld [vmem:[%s3 + $0x100] sm:$0xff]
    %v204 = vld [vmem:[%s3 + $0x108] sm:$0xff]
    %v205 = vld [vmem:[%s3 + $0x110] sm:$0xff]
    %v206 = vld [vmem:[%s3 + $0x118] sm:$0xff]
    %v207 = vld [vmem:[%s3 + $0x120] sm:$0xff]
    %v208 = vld [vmem:[%s3 + $0x128] sm:$0xff]
    %v209 = vld [vmem:[%s3 + $0x130] sm:$0xff]
    %v210 = vld [vmem:[%s3 + $0x138] sm:$0xff]
    %v211 = vld [vmem:[%s3 + $0x140] sm:$0xff]
    %v212 = vld [vmem:[%s3 + $0x148] sm:$0xff]
    %v213 = vld [vmem:[%s3 + $0x150] sm:$0xff]
    %v214 = vld [vmem:[%s3 + $0x158] sm:$0xff]
    %v215 = vld [vmem:[%s3 + $0x160] sm:$0xff]
    %v216 = vld [vmem:[%s3 + $0x168] sm:$0xff]
    %v217 = vld [vmem:[%s3 + $0x170] sm:$0xff]
    %v218 = vld [vmem:[%s3 + $0x178] sm:$0xff]
    %v219 = vld [vmem:[%s3 + $0x180] sm:$0xff]
    %v220 = vld [vmem:[%s3 + $0x188] sm:$0xff]
    %v221 = vld [vmem:[%s3 + $0x190] sm:$0xff]
    %v222 = vld [vmem:[%s3 + $0x198] sm:$0xff]
    %v223 = vld [vmem:[%s3 + $0x1a0] sm:$0xff]
    %v224 = vld [vmem:[%s3 + $0x1a8] sm:$0xff]
    %v225 = vld [vmem:[%s3 + $0x1b0] sm:$0xff]
    %v226 = vld [vmem:[%s3 + $0x1b8] sm:$0xff]
    %v227 = vld [vmem:[%s3 + $0x1c0] sm:$0xff]
    %v228 = vld [vmem:[%s3 + $0x1c8] sm:$0xff]
    %v229 = vld [vmem:[%s3 + $0x1d0] sm:$0xff]
    %v230 = vld [vmem:[%s3 + $0x1d8] sm:$0xff]
    %v231 = vld [vmem:[%s3 + $0x1e0] sm:$0xff]
    %v232 = vld [vmem:[%s3 + $0x1e8] sm:$0xff]
    %v233 = vld [vmem:[%s3 + $0x1f0] sm:$0xff]
    %v234 = vld [vmem:[%s3 + $0x1f8] sm:$0xff]
    %v235 = vld [vmem:[%s3 + $0x200] sm:$0xff]
    %v236 = vld [vmem:[%s3 + $0x208] sm:$0xff]
    %v237 = vld [vmem:[%s3 + $0x210] sm:$0xff]
    %v238 = vld [vmem:[%s3 + $0x218] sm:$0xff]
    %v239 = vld [vmem:[%s3 + $0x220] sm:$0xff]
    %v240 = vld [vmem:[%s3 + $0x228] sm:$0xff]
    %v241 = vld [vmem:[%s3 + $0x230] sm:$0xff]
    %v242 = vld [vmem:[%s3 + $0x238] sm:$0xff]
    %v243 = vld [vmem:[%s3 + $0x240] sm:$0xff]
    %v244 = vld [vmem:[%s3 + $0x248] sm:$0xff]
    %v245 = vld [vmem:[%s3 + $0x250] sm:$0xff]
    %v246 = vld [vmem:[%s3 + $0x258] sm:$0xff]
    %v247 = vld [vmem:[%s3 + $0x260] sm:$0xff]
    %v248 = vld [vmem:[%s3 + $0x268] sm:$0xff]
    %v249 = vld [vmem:[%s3 + $0x270] sm:$0xff]
    %v250 = vld [vmem:[%s3 + $0x278] sm:$0xff]
    %v251 = vld [vmem:[%s3 + $0x280] sm:$0xff]
    %v252 = vld [vmem:[%s3 + $0x288] sm:$0xff]
    %v253 = vld [vmem:[%s3 + $0x290] sm:$0xff]
    %v254 = vld [vmem:[%s3 + $0x298] sm:$0xff]
    %v255 = vld [vmem:[%s3 + $0x2a0] sm:$0xff]
    %v256 = vld [vmem:[%s3 + $0x2a8] sm:$0xff]
    %v257 = vld [vmem:[%s3 + $0x2b0] sm:$0xff]
    %v258 = vld [vmem:[%s3 + $0x2b8] sm:$0xff]
    %v259 = vld [vmem:[%s3 + $0x2c0] sm:$0xff]
    %v260 = vld [vmem:[%s3 + $0x2c8] sm:$0xff]
    %v261 = vld [vmem:[%s3 + $0x2d0] sm:$0xff]
    %v262 = vld [vmem:[%s3 + $0x2d8] sm:$0xff]
    %v263 = vld [vmem:[%s3 + $0x2e0] sm:$0xff]
    %v264 = vld [vmem:[%s3 + $0x2e8] sm:$0xff]
    %v265 = vld [vmem:[%s3 + $0x2f0] sm:$0xff]
    %v266 = vld [vmem:[%s3 + $0x2f8] sm:$0xff]
    %v267 = vld [vmem:[%s3 + $0x300] sm:$0xff]
    %v268 = vld [vmem:[%s3 + $0x308] sm:$0xff]
    %v269 = vld [vmem:[%s3 + $0x310] sm:$0xff]
    %v270 = vld [vmem:[%s3 + $0x318] sm:$0xff]
    %v271 = vld [vmem:[%s3 + $0x320] sm:$0xff]
    %v272 = vld [vmem:[%s3 + $0x328] sm:$0xff]
    %v273 = vld [vmem:[%s3 + $0x330] sm:$0xff]
    %v274 = vld [vmem:[%s3 + $0x338] sm:$0xff]
    %v275 = vld [vmem:[%s3 + $0x340] sm:$0xff]
    %v276 = vld [vmem:[%s3 + $0x348] sm:$0xff]
    %v277 = vld [vmem:[%s3 + $0x350] sm:$0xff]
    %v278 = vld [vmem:[%s3 + $0x358] sm:$0xff]
    %v279 = vld [vmem:[%s3 + $0x360] sm:$0xff]
    %v280 = vld [vmem:[%s3 + $0x368] sm:$0xff]
    %v281 = vld [vmem:[%s3 + $0x370] sm:$0xff]
    %v282 = vld [vmem:[%s3 + $0x378] sm:$0xff]
    %v283 = vld [vmem:[%s3 + $0x380] sm:$0xff]
    %v284 = vld [vmem:[%s3 + $0x388] sm:$0xff]
    %v285 = vld [vmem:[%s3 + $0x390] sm:$0xff]
    %v286 = vld [vmem:[%s3 + $0x398] sm:$0xff]
    %v287 = vld [vmem:[%s3 + $0x3a0] sm:$0xff]
    %v288 = vld [vmem:[%s3 + $0x3a8] sm:$0xff]
    %v289 = vld [vmem:[%s3 + $0x3b0] sm:$0xff]
    %v290 = vld [vmem:[%s3 + $0x3b8] sm:$0xff]
    %v291 = vld [vmem:[%s3 + $0x3c0] sm:$0xff]
    %v292 = vld [vmem:[%s3 + $0x3c8] sm:$0xff]
    %v293 = vld [vmem:[%s3 + $0x3d0] sm:$0xff]
    %v294 = vld [vmem:[%s3 + $0x3d8] sm:$0xff]
    %v295 = vld [vmem:[%s3 + $0x3e0] sm:$0xff]
    %v296 = vld [vmem:[%s3 + $0x3e8] sm:$0xff]
    %v297 = vld [vmem:[%s3 + $0x3f0] sm:$0xff]
    %v298 = vld [vmem:[%s3 + $0x3f8] sm:$0xff]
    %v299 = vlaneseq
    %v300 = vshrl.u32 %v299, 7
    %v301 = vsub.s32 0, %v300
    %v302 = vrot.slane %v145, %v301
    %v303 = vlaneseq
    %v304 = vshrl.u32 %v303, 7
    %v305 = vsub.s32 0, %v304
    %v306 = vrot.slane %v159, %v305
    %v307 = vlaneseq
    %v308 = vshrl.u32 %v307, 7
    %v309 = vsub.s32 0, %v308
    %v310 = vrot.slane %v167, %v309
    %v311 = vlaneseq
    %v312 = vshrl.u32 %v311, 7
    %v313 = vsub.s32 0, %v312
    %v314 = vrot.slane %v169, %v313
    %v315 = vlaneseq
    %v316 = vshrl.u32 %v315, 7
    %v317 = vsub.s32 0, %v316
    %v318 = vrot.slane %v152, %v317
    %v319 = vlaneseq
    %v320 = vshrl.u32 %v319, 7
    %v321 = vsub.s32 0, %v320
    %v322 = vrot.slane %v166, %v321
    %v323 = vlaneseq
    %v324 = vshrl.u32 %v323, 7
    %v325 = vsub.s32 0, %v324
    %v326 = vrot.slane %v168, %v325
    %v327 = vlaneseq
    %v328 = vshrl.u32 %v327, 7
    %v329 = vsub.s32 0, %v328
    %v330 = vrot.slane %v170, %v329
    %v339 = vadd.f32 %v302, %v171
    %v340 = vadd.f32 %v302, %v172
    %v341 = vadd.f32 %v302, %v173
    %v342 = vadd.f32 %v302, %v174
    %v343 = vadd.f32 %v302, %v175
    %v344 = vadd.f32 %v302, %v176
    %v345 = vadd.f32 %v302, %v177
    %v346 = vadd.f32 %v302, %v178
    %v347 = vadd.f32 %v302, %v179
    %v348 = vadd.f32 %v302, %v180
    %v349 = vadd.f32 %v302, %v181
    %v350 = vadd.f32 %v302, %v182
    %v351 = vadd.f32 %v302, %v183
    %v352 = vadd.f32 %v302, %v184
    %v353 = vadd.f32 %v302, %v185
    %v354 = vadd.f32 %v302, %v186
    %v355 = vadd.f32 %v306, %v187
    %v356 = vadd.f32 %v306, %v188
    %v357 = vadd.f32 %v306, %v189
    %v358 = vadd.f32 %v306, %v190
    %v359 = vadd.f32 %v306, %v191
    %v360 = vadd.f32 %v306, %v192
    %v361 = vadd.f32 %v306, %v193
    %v362 = vadd.f32 %v306, %v194
    %v363 = vadd.f32 %v306, %v195
    %v364 = vadd.f32 %v306, %v196
    %v365 = vadd.f32 %v306, %v197
    %v366 = vadd.f32 %v306, %v198
    %v367 = vadd.f32 %v306, %v199
    %v368 = vadd.f32 %v306, %v200
    %v369 = vadd.f32 %v306, %v201
    %v370 = vadd.f32 %v306, %v202
    %v371 = vadd.f32 %v310, %v203
    %v372 = vadd.f32 %v310, %v204
    %v373 = vadd.f32 %v310, %v205
    %v374 = vadd.f32 %v310, %v206
    %v375 = vadd.f32 %v310, %v207
    %v376 = vadd.f32 %v310, %v208
    %v377 = vadd.f32 %v310, %v209
    %v378 = vadd.f32 %v310, %v210
    %v379 = vadd.f32 %v310, %v211
    %v380 = vadd.f32 %v310, %v212
    %v381 = vadd.f32 %v310, %v213
    %v382 = vadd.f32 %v310, %v214
    %v383 = vadd.f32 %v310, %v215
    %v384 = vadd.f32 %v310, %v216
    %v385 = vadd.f32 %v310, %v217
    %v386 = vadd.f32 %v310, %v218
    %v387 = vadd.f32 %v314, %v219
    %v388 = vadd.f32 %v314, %v220
    %v389 = vadd.f32 %v314, %v221
    %v390 = vadd.f32 %v314, %v222
    %v391 = vadd.f32 %v314, %v223
    %v392 = vadd.f32 %v314, %v224
    %v393 = vadd.f32 %v314, %v225
    %v394 = vadd.f32 %v314, %v226
    %v395 = vadd.f32 %v314, %v227
    %v396 = vadd.f32 %v314, %v228
    %v397 = vadd.f32 %v314, %v229
    %v398 = vadd.f32 %v314, %v230
    %v399 = vadd.f32 %v314, %v231
    %v400 = vadd.f32 %v314, %v232
    %v401 = vadd.f32 %v314, %v233
    %v402 = vadd.f32 %v314, %v234
    %v403 = vadd.f32 %v318, %v235
    %v404 = vadd.f32 %v318, %v236
    %v405 = vadd.f32 %v318, %v237
    %v406 = vadd.f32 %v318, %v238
    %v407 = vadd.f32 %v318, %v239
    %v408 = vadd.f32 %v318, %v240
    %v409 = vadd.f32 %v318, %v241
    %v410 = vadd.f32 %v318, %v242
    %v411 = vadd.f32 %v318, %v243
    %v412 = vadd.f32 %v318, %v244
    %v413 = vadd.f32 %v318, %v245
    %v414 = vadd.f32 %v318, %v246
    %v415 = vadd.f32 %v318, %v247
    %v416 = vadd.f32 %v318, %v248
    %v417 = vadd.f32 %v318, %v249
    %v418 = vadd.f32 %v318, %v250
    %v419 = vadd.f32 %v322, %v251
    %v420 = vadd.f32 %v322, %v252
    %v421 = vadd.f32 %v322, %v253
    %v422 = vadd.f32 %v322, %v254
    %v423 = vadd.f32 %v322, %v255
    %v424 = vadd.f32 %v322, %v256
    %v425 = vadd.f32 %v322, %v257
    %v426 = vadd.f32 %v322, %v258
    %v427 = vadd.f32 %v322, %v259
    %v428 = vadd.f32 %v322, %v260
    %v429 = vadd.f32 %v322, %v261
    %v430 = vadd.f32 %v322, %v262
    %v431 = vadd.f32 %v322, %v263
    %v432 = vadd.f32 %v322, %v264
    %v433 = vadd.f32 %v322, %v265
    %v434 = vadd.f32 %v322, %v266
    %v435 = vadd.f32 %v326, %v267
    %v436 = vadd.f32 %v326, %v268
    %v437 = vadd.f32 %v326, %v269
    %v438 = vadd.f32 %v326, %v270
    %v439 = vadd.f32 %v326, %v271
    %v440 = vadd.f32 %v326, %v272
    %v441 = vadd.f32 %v326, %v273
    %v442 = vadd.f32 %v326, %v274
    %v443 = vadd.f32 %v326, %v275
    %v444 = vadd.f32 %v326, %v276
    %v445 = vadd.f32 %v326, %v277
    %v446 = vadd.f32 %v326, %v278
    %v447 = vadd.f32 %v326, %v279
    %v448 = vadd.f32 %v326, %v280
    %v449 = vadd.f32 %v326, %v281
    %v450 = vadd.f32 %v326, %v282
    %v451 = vadd.f32 %v330, %v283
    %v452 = vadd.f32 %v330, %v284
    %v453 = vadd.f32 %v330, %v285
    %v454 = vadd.f32 %v330, %v286
    %v455 = vadd.f32 %v330, %v287
    %v456 = vadd.f32 %v330, %v288
    %v457 = vadd.f32 %v330, %v289
    %v458 = vadd.f32 %v330, %v290
    %v459 = vadd.f32 %v330, %v291
    %v460 = vadd.f32 %v330, %v292
    %v461 = vadd.f32 %v330, %v293
    %v462 = vadd.f32 %v330, %v294
    %v463 = vadd.f32 %v330, %v295
    %v464 = vadd.f32 %v330, %v296
    %v465 = vadd.f32 %v330, %v297
    %v466 = vadd.f32 %v330, %v298
    %v467 = vld [vmem:[%s6] sm:$0x1]
    %v469 = vlaneseq
    %v470 = vshrl.u32 %v469, 7
    %v471 = vsub.s32 0, %v470
    %v472 = vrot.slane %v467, %v471
    %v474 = vadd.f32 %v339, %v472
    %v475 = vadd.f32 %v340, %v472
    %v476 = vadd.f32 %v341, %v472
    %v477 = vadd.f32 %v342, %v472
    %v478 = vadd.f32 %v343, %v472
    %v479 = vadd.f32 %v344, %v472
    %v480 = vadd.f32 %v345, %v472
    %v481 = vadd.f32 %v346, %v472
    %v482 = vadd.f32 %v347, %v472
    %v483 = vadd.f32 %v348, %v472
    %v484 = vadd.f32 %v349, %v472
    %v485 = vadd.f32 %v350, %v472
    %v486 = vadd.f32 %v351, %v472
    %v487 = vadd.f32 %v352, %v472
    %v488 = vadd.f32 %v353, %v472
    %v489 = vadd.f32 %v354, %v472
    %v490 = vadd.f32 %v355, %v472
    %v491 = vadd.f32 %v356, %v472
    %v492 = vadd.f32 %v357, %v472
    %v493 = vadd.f32 %v358, %v472
    %v494 = vadd.f32 %v359, %v472
    %v495 = vadd.f32 %v360, %v472
    %v496 = vadd.f32 %v361, %v472
    %v497 = vadd.f32 %v362, %v472
    %v498 = vadd.f32 %v363, %v472
    %v499 = vadd.f32 %v364, %v472
    %v500 = vadd.f32 %v365, %v472
    %v501 = vadd.f32 %v366, %v472
    %v502 = vadd.f32 %v367, %v472
    %v503 = vadd.f32 %v368, %v472
    %v504 = vadd.f32 %v369, %v472
    %v505 = vadd.f32 %v370, %v472
    %v506 = vadd.f32 %v371, %v472
    %v507 = vadd.f32 %v372, %v472
    %v508 = vadd.f32 %v373, %v472
    %v509 = vadd.f32 %v374, %v472
    %v510 = vadd.f32 %v375, %v472
    %v511 = vadd.f32 %v376, %v472
    %v512 = vadd.f32 %v377, %v472
    %v513 = vadd.f32 %v378, %v472
    %v514 = vadd.f32 %v379, %v472
    %v515 = vadd.f32 %v380, %v472
    %v516 = vadd.f32 %v381, %v472
    %v517 = vadd.f32 %v382, %v472
    %v518 = vadd.f32 %v383, %v472
    %v519 = vadd.f32 %v384, %v472
    %v520 = vadd.f32 %v385, %v472
    %v521 = vadd.f32 %v386, %v472
    %v522 = vadd.f32 %v387, %v472
    %v523 = vadd.f32 %v388, %v472
    %v524 = vadd.f32 %v389, %v472
    %v525 = vadd.f32 %v390, %v472
    %v526 = vadd.f32 %v391, %v472
    %v527 = vadd.f32 %v392, %v472
    %v528 = vadd.f32 %v393, %v472
    %v529 = vadd.f32 %v394, %v472
    %v530 = vadd.f32 %v395, %v472
    %v531 = vadd.f32 %v396, %v472
    %v532 = vadd.f32 %v397, %v472
    %v533 = vadd.f32 %v398, %v472
    %v534 = vadd.f32 %v399, %v472
    %v535 = vadd.f32 %v400, %v472
    %v536 = vadd.f32 %v401, %v472
    %v537 = vadd.f32 %v402, %v472
    %v538 = vadd.f32 %v403, %v472
    %v539 = vadd.f32 %v404, %v472
    %v540 = vadd.f32 %v405, %v472
    %v541 = vadd.f32 %v406, %v472
    %v542 = vadd.f32 %v407, %v472
    %v543 = vadd.f32 %v408, %v472
    %v544 = vadd.f32 %v409, %v472
    %v545 = vadd.f32 %v410, %v472
    %v546 = vadd.f32 %v411, %v472
    %v547 = vadd.f32 %v412, %v472
    %v548 = vadd.f32 %v413, %v472
    %v549 = vadd.f32 %v414, %v472
    %v550 = vadd.f32 %v415, %v472
    %v551 = vadd.f32 %v416, %v472
    %v552 = vadd.f32 %v417, %v472
    %v553 = vadd.f32 %v418, %v472
    %v554 = vadd.f32 %v419, %v472
    %v555 = vadd.f32 %v420, %v472
    %v556 = vadd.f32 %v421, %v472
    %v557 = vadd.f32 %v422, %v472
    %v558 = vadd.f32 %v423, %v472
    %v559 = vadd.f32 %v424, %v472
    %v560 = vadd.f32 %v425, %v472
    %v561 = vadd.f32 %v426, %v472
    %v562 = vadd.f32 %v427, %v472
    %v563 = vadd.f32 %v428, %v472
    %v564 = vadd.f32 %v429, %v472
    %v565 = vadd.f32 %v430, %v472
    %v566 = vadd.f32 %v431, %v472
    %v567 = vadd.f32 %v432, %v472
    %v568 = vadd.f32 %v433, %v472
    %v569 = vadd.f32 %v434, %v472
    %v570 = vadd.f32 %v435, %v472
    %v571 = vadd.f32 %v436, %v472
    %v572 = vadd.f32 %v437, %v472
    %v573 = vadd.f32 %v438, %v472
    %v574 = vadd.f32 %v439, %v472
    %v575 = vadd.f32 %v440, %v472
    %v576 = vadd.f32 %v441, %v472
    %v577 = vadd.f32 %v442, %v472
    %v578 = vadd.f32 %v443, %v472
    %v579 = vadd.f32 %v444, %v472
    %v580 = vadd.f32 %v445, %v472
    %v581 = vadd.f32 %v446, %v472
    %v582 = vadd.f32 %v447, %v472
    %v583 = vadd.f32 %v448, %v472
    %v584 = vadd.f32 %v449, %v472
    %v585 = vadd.f32 %v450, %v472
    %v586 = vadd.f32 %v451, %v472
    %v587 = vadd.f32 %v452, %v472
    %v588 = vadd.f32 %v453, %v472
    %v589 = vadd.f32 %v454, %v472
    %v590 = vadd.f32 %v455, %v472
    %v591 = vadd.f32 %v456, %v472
    %v592 = vadd.f32 %v457, %v472
    %v593 = vadd.f32 %v458, %v472
    %v594 = vadd.f32 %v459, %v472
    %v595 = vadd.f32 %v460, %v472
    %v596 = vadd.f32 %v461, %v472
    %v597 = vadd.f32 %v462, %v472
    %v598 = vadd.f32 %v463, %v472
    %v599 = vadd.f32 %v464, %v472
    %v600 = vadd.f32 %v465, %v472
    %v601 = vadd.f32 %v466, %v472
    %v602 = vtanh.pop %v474
    %v603 = vtanh.pop %v475
    %v604 = vtanh.pop %v476
    %v605 = vtanh.pop %v477
    %v606 = vtanh.pop %v478
    %v607 = vtanh.pop %v479
    %v608 = vtanh.pop %v480
    %v609 = vtanh.pop %v481
    %v610 = vtanh.pop %v482
    %v611 = vtanh.pop %v483
    %v612 = vtanh.pop %v484
    %v613 = vtanh.pop %v485
    %v614 = vtanh.pop %v486
    %v615 = vtanh.pop %v487
    %v616 = vtanh.pop %v488
    %v617 = vtanh.pop %v489
    %v618 = vtanh.pop %v490
    %v619 = vtanh.pop %v491
    %v620 = vtanh.pop %v492
    %v621 = vtanh.pop %v493
    %v622 = vtanh.pop %v494
    %v623 = vtanh.pop %v495
    %v624 = vtanh.pop %v496
    %v625 = vtanh.pop %v497
    %v626 = vtanh.pop %v498
    %v627 = vtanh.pop %v499
    %v628 = vtanh.pop %v500
    %v629 = vtanh.pop %v501
    %v630 = vtanh.pop %v502
    %v631 = vtanh.pop %v503
    %v632 = vtanh.pop %v504
    %v633 = vtanh.pop %v505
    %v634 = vtanh.pop %v506
    %v635 = vtanh.pop %v507
    %v636 = vtanh.pop %v508
    %v637 = vtanh.pop %v509
    %v638 = vtanh.pop %v510
    %v639 = vtanh.pop %v511
    %v640 = vtanh.pop %v512
    %v641 = vtanh.pop %v513
    %v642 = vtanh.pop %v514
    %v643 = vtanh.pop %v515
    %v644 = vtanh.pop %v516
    %v645 = vtanh.pop %v517
    %v646 = vtanh.pop %v518
    %v647 = vtanh.pop %v519
    %v648 = vtanh.pop %v520
    %v649 = vtanh.pop %v521
    %v650 = vtanh.pop %v522
    %v651 = vtanh.pop %v523
    %v652 = vtanh.pop %v524
    %v653 = vtanh.pop %v525
    %v654 = vtanh.pop %v526
    %v655 = vtanh.pop %v527
    %v656 = vtanh.pop %v528
    %v657 = vtanh.pop %v529
    %v658 = vtanh.pop %v530
    %v659 = vtanh.pop %v531
    %v660 = vtanh.pop %v532
    %v661 = vtanh.pop %v533
    %v662 = vtanh.pop %v534
    %v663 = vtanh.pop %v535
    %v664 = vtanh.pop %v536
    %v665 = vtanh.pop %v537
    %v666 = vtanh.pop %v538
    %v667 = vtanh.pop %v539
    %v668 = vtanh.pop %v540
    %v669 = vtanh.pop %v541
    %v670 = vtanh.pop %v542
    %v671 = vtanh.pop %v543
    %v672 = vtanh.pop %v544
    %v673 = vtanh.pop %v545
    %v674 = vtanh.pop %v546
    %v675 = vtanh.pop %v547
    %v676 = vtanh.pop %v548
    %v677 = vtanh.pop %v549
    %v678 = vtanh.pop %v550
    %v679 = vtanh.pop %v551
    %v680 = vtanh.pop %v552
    %v681 = vtanh.pop %v553
    %v682 = vtanh.pop %v554
    %v683 = vtanh.pop %v555
    %v684 = vtanh.pop %v556
    %v685 = vtanh.pop %v557
    %v686 = vtanh.pop %v558
    %v687 = vtanh.pop %v559
    %v688 = vtanh.pop %v560
    %v689 = vtanh.pop %v561
    %v690 = vtanh.pop %v562
    %v691 = vtanh.pop %v563
    %v692 = vtanh.pop %v564
    %v693 = vtanh.pop %v565
    %v694 = vtanh.pop %v566
    %v695 = vtanh.pop %v567
    %v696 = vtanh.pop %v568
    %v697 = vtanh.pop %v569
    %v698 = vtanh.pop %v570
    %v699 = vtanh.pop %v571
    %v700 = vtanh.pop %v572
    %v701 = vtanh.pop %v573
    %v702 = vtanh.pop %v574
    %v703 = vtanh.pop %v575
    %v704 = vtanh.pop %v576
    %v705 = vtanh.pop %v577
    %v706 = vtanh.pop %v578
    %v707 = vtanh.pop %v579
    %v708 = vtanh.pop %v580
    %v709 = vtanh.pop %v581
    %v710 = vtanh.pop %v582
    %v711 = vtanh.pop %v583
    %v712 = vtanh.pop %v584
    %v713 = vtanh.pop %v585
    %v714 = vtanh.pop %v586
    %v715 = vtanh.pop %v587
    %v716 = vtanh.pop %v588
    %v717 = vtanh.pop %v589
    %v718 = vtanh.pop %v590
    %v719 = vtanh.pop %v591
    %v720 = vtanh.pop %v592
    %v721 = vtanh.pop %v593
    %v722 = vtanh.pop %v594
    %v723 = vtanh.pop %v595
    %v724 = vtanh.pop %v596
    %v725 = vtanh.pop %v597
    %v726 = vtanh.pop %v598
    %v727 = vtanh.pop %v599
    %v728 = vtanh.pop %v600
    %v729 = vtanh.pop %v601
    %v730 = vld [vmem:[%s7] sm:$0x1]
    %v732 = vlaneseq
    %v733 = vshrl.u32 %v732, 7
    %v734 = vsub.s32 0, %v733
    %v735 = vrot.slane %v730, %v734
    %v737 = vmul.f32 %v602, %v735
    %v738 = vmul.f32 %v603, %v735
    %v739 = vmul.f32 %v604, %v735
    %v740 = vmul.f32 %v605, %v735
    %v741 = vmul.f32 %v606, %v735
    %v742 = vmul.f32 %v607, %v735
    %v743 = vmul.f32 %v608, %v735
    %v744 = vmul.f32 %v609, %v735
    %v745 = vmul.f32 %v610, %v735
    %v746 = vmul.f32 %v611, %v735
    %v747 = vmul.f32 %v612, %v735
    %v748 = vmul.f32 %v613, %v735
    %v749 = vmul.f32 %v614, %v735
    %v750 = vmul.f32 %v615, %v735
    %v751 = vmul.f32 %v616, %v735
    %v752 = vmul.f32 %v617, %v735
    %v753 = vmul.f32 %v618, %v735
    %v754 = vmul.f32 %v619, %v735
    %v755 = vmul.f32 %v620, %v735
    %v756 = vmul.f32 %v621, %v735
    %v757 = vmul.f32 %v622, %v735
    %v758 = vmul.f32 %v623, %v735
    %v759 = vmul.f32 %v624, %v735
    %v760 = vmul.f32 %v625, %v735
    %v761 = vmul.f32 %v626, %v735
    %v762 = vmul.f32 %v627, %v735
    %v763 = vmul.f32 %v628, %v735
    %v764 = vmul.f32 %v629, %v735
    %v765 = vmul.f32 %v630, %v735
    %v766 = vmul.f32 %v631, %v735
    %v767 = vmul.f32 %v632, %v735
    %v768 = vmul.f32 %v633, %v735
    %v769 = vmul.f32 %v634, %v735
    %v770 = vmul.f32 %v635, %v735
    %v771 = vmul.f32 %v636, %v735
    %v772 = vmul.f32 %v637, %v735
    %v773 = vmul.f32 %v638, %v735
    %v774 = vmul.f32 %v639, %v735
    %v775 = vmul.f32 %v640, %v735
    %v776 = vmul.f32 %v641, %v735
    %v777 = vmul.f32 %v642, %v735
    %v778 = vmul.f32 %v643, %v735
    %v779 = vmul.f32 %v644, %v735
    %v780 = vmul.f32 %v645, %v735
    %v781 = vmul.f32 %v646, %v735
    %v782 = vmul.f32 %v647, %v735
    %v783 = vmul.f32 %v648, %v735
    %v784 = vmul.f32 %v649, %v735
    %v785 = vmul.f32 %v650, %v735
    %v786 = vmul.f32 %v651, %v735
    %v787 = vmul.f32 %v652, %v735
    %v788 = vmul.f32 %v653, %v735
    %v789 = vmul.f32 %v654, %v735
    %v790 = vmul.f32 %v655, %v735
    %v791 = vmul.f32 %v656, %v735
    %v792 = vmul.f32 %v657, %v735
    %v793 = vmul.f32 %v658, %v735
    %v794 = vmul.f32 %v659, %v735
    %v795 = vmul.f32 %v660, %v735
    %v796 = vmul.f32 %v661, %v735
    %v797 = vmul.f32 %v662, %v735
    %v798 = vmul.f32 %v663, %v735
    %v799 = vmul.f32 %v664, %v735
    %v800 = vmul.f32 %v665, %v735
    %v801 = vmul.f32 %v666, %v735
    %v802 = vmul.f32 %v667, %v735
    %v803 = vmul.f32 %v668, %v735
    %v804 = vmul.f32 %v669, %v735
    %v805 = vmul.f32 %v670, %v735
    %v806 = vmul.f32 %v671, %v735
    %v807 = vmul.f32 %v672, %v735
    %v808 = vmul.f32 %v673, %v735
    %v809 = vmul.f32 %v674, %v735
    %v810 = vmul.f32 %v675, %v735
    %v811 = vmul.f32 %v676, %v735
    %v812 = vmul.f32 %v677, %v735
    %v813 = vmul.f32 %v678, %v735
    %v814 = vmul.f32 %v679, %v735
    %v815 = vmul.f32 %v680, %v735
    %v816 = vmul.f32 %v681, %v735
    %v817 = vmul.f32 %v682, %v735
    %v818 = vmul.f32 %v683, %v735
    %v819 = vmul.f32 %v684, %v735
    %v820 = vmul.f32 %v685, %v735
    %v821 = vmul.f32 %v686, %v735
    %v822 = vmul.f32 %v687, %v735
    %v823 = vmul.f32 %v688, %v735
    %v824 = vmul.f32 %v689, %v735
    %v825 = vmul.f32 %v690, %v735
    %v826 = vmul.f32 %v691, %v735
    %v827 = vmul.f32 %v692, %v735
    %v828 = vmul.f32 %v693, %v735
    %v829 = vmul.f32 %v694, %v735
    %v830 = vmul.f32 %v695, %v735
    %v831 = vmul.f32 %v696, %v735
    %v832 = vmul.f32 %v697, %v735
    %v833 = vmul.f32 %v698, %v735
    %v834 = vmul.f32 %v699, %v735
    %v835 = vmul.f32 %v700, %v735
    %v836 = vmul.f32 %v701, %v735
    %v837 = vmul.f32 %v702, %v735
    %v838 = vmul.f32 %v703, %v735
    %v839 = vmul.f32 %v704, %v735
    %v840 = vmul.f32 %v705, %v735
    %v841 = vmul.f32 %v706, %v735
    %v842 = vmul.f32 %v707, %v735
    %v843 = vmul.f32 %v708, %v735
    %v844 = vmul.f32 %v709, %v735
    %v845 = vmul.f32 %v710, %v735
    %v846 = vmul.f32 %v711, %v735
    %v847 = vmul.f32 %v712, %v735
    %v848 = vmul.f32 %v713, %v735
    %v849 = vmul.f32 %v714, %v735
    %v850 = vmul.f32 %v715, %v735
    %v851 = vmul.f32 %v716, %v735
    %v852 = vmul.f32 %v717, %v735
    %v853 = vmul.f32 %v718, %v735
    %v854 = vmul.f32 %v719, %v735
    %v855 = vmul.f32 %v720, %v735
    %v856 = vmul.f32 %v721, %v735
    %v857 = vmul.f32 %v722, %v735
    %v858 = vmul.f32 %v723, %v735
    %v859 = vmul.f32 %v724, %v735
    %v860 = vmul.f32 %v725, %v735
    %v861 = vmul.f32 %v726, %v735
    %v862 = vmul.f32 %v727, %v735
    %v863 = vmul.f32 %v728, %v735
    %v864 = vmul.f32 %v729, %v735
    %v865 = vsel %vm77, %v737, 0.0
    %866 = vadd.xlane.f32.xlu0 %v865
    %v867 = vpop.xlane.xlu0 %866
    %v868 = vsel %vm77, %v738, 0.0
    %869 = vadd.xlane.f32.xlu0 %v868
    %v870 = vpop.xlane.xlu0 %869
    %v871 = vsel %vm77, %v739, 0.0
    %872 = vadd.xlane.f32.xlu0 %v871
    %v873 = vpop.xlane.xlu0 %872
    %v874 = vsel %vm77, %v740, 0.0
    %875 = vadd.xlane.f32.xlu0 %v874
    %v876 = vpop.xlane.xlu0 %875
    %v877 = vsel %vm77, %v741, 0.0
    %878 = vadd.xlane.f32.xlu0 %v877
    %v879 = vpop.xlane.xlu0 %878
    %v880 = vsel %vm77, %v742, 0.0
    %881 = vadd.xlane.f32.xlu0 %v880
    %v882 = vpop.xlane.xlu0 %881
    %v883 = vsel %vm77, %v743, 0.0
    %884 = vadd.xlane.f32.xlu0 %v883
    %v885 = vpop.xlane.xlu0 %884
    %v886 = vsel %vm77, %v744, 0.0
    %887 = vadd.xlane.f32.xlu0 %v886
    %v888 = vpop.xlane.xlu0 %887
    %v889 = vsel %vm77, %v745, 0.0
    %890 = vadd.xlane.f32.xlu0 %v889
    %v891 = vpop.xlane.xlu0 %890
    %v892 = vsel %vm77, %v746, 0.0
    %893 = vadd.xlane.f32.xlu0 %v892
    %v894 = vpop.xlane.xlu0 %893
    %v895 = vsel %vm77, %v747, 0.0
    %896 = vadd.xlane.f32.xlu0 %v895
    %v897 = vpop.xlane.xlu0 %896
    %v898 = vsel %vm77, %v748, 0.0
    %899 = vadd.xlane.f32.xlu0 %v898
    %v900 = vpop.xlane.xlu0 %899
    %v901 = vsel %vm77, %v749, 0.0
    %902 = vadd.xlane.f32.xlu0 %v901
    %v903 = vpop.xlane.xlu0 %902
    %v904 = vsel %vm77, %v750, 0.0
    %905 = vadd.xlane.f32.xlu0 %v904
    %v906 = vpop.xlane.xlu0 %905
    %v907 = vsel %vm77, %v751, 0.0
    %908 = vadd.xlane.f32.xlu0 %v907
    %v909 = vpop.xlane.xlu0 %908
    %v910 = vsel %vm77, %v752, 0.0
    %911 = vadd.xlane.f32.xlu0 %v910
    %v912 = vpop.xlane.xlu0 %911
    %v913 = vsel %vm77, %v753, 0.0
    %914 = vadd.xlane.f32.xlu0 %v913
    %v915 = vpop.xlane.xlu0 %914
    %v916 = vsel %vm77, %v754, 0.0
    %917 = vadd.xlane.f32.xlu0 %v916
    %v918 = vpop.xlane.xlu0 %917
    %v919 = vsel %vm77, %v755, 0.0
    %920 = vadd.xlane.f32.xlu0 %v919
    %v921 = vpop.xlane.xlu0 %920
    %v922 = vsel %vm77, %v756, 0.0
    %923 = vadd.xlane.f32.xlu0 %v922
    %v924 = vpop.xlane.xlu0 %923
    %v925 = vsel %vm77, %v757, 0.0
    %926 = vadd.xlane.f32.xlu0 %v925
    %v927 = vpop.xlane.xlu0 %926
    %v928 = vsel %vm77, %v758, 0.0
    %929 = vadd.xlane.f32.xlu0 %v928
    %v930 = vpop.xlane.xlu0 %929
    %v931 = vsel %vm77, %v759, 0.0
    %932 = vadd.xlane.f32.xlu0 %v931
    %v933 = vpop.xlane.xlu0 %932
    %v934 = vsel %vm77, %v760, 0.0
    %935 = vadd.xlane.f32.xlu0 %v934
    %v936 = vpop.xlane.xlu0 %935
    %v937 = vsel %vm77, %v761, 0.0
    %938 = vadd.xlane.f32.xlu0 %v937
    %v939 = vpop.xlane.xlu0 %938
    %v940 = vsel %vm77, %v762, 0.0
    %941 = vadd.xlane.f32.xlu0 %v940
    %v942 = vpop.xlane.xlu0 %941
    %v943 = vsel %vm77, %v763, 0.0
    %944 = vadd.xlane.f32.xlu0 %v943
    %v945 = vpop.xlane.xlu0 %944
    %v946 = vsel %vm77, %v764, 0.0
    %947 = vadd.xlane.f32.xlu0 %v946
    %v948 = vpop.xlane.xlu0 %947
    %v949 = vsel %vm77, %v765, 0.0
    %950 = vadd.xlane.f32.xlu0 %v949
    %v951 = vpop.xlane.xlu0 %950
    %v952 = vsel %vm77, %v766, 0.0
    %953 = vadd.xlane.f32.xlu0 %v952
    %v954 = vpop.xlane.xlu0 %953
    %v955 = vsel %vm77, %v767, 0.0
    %956 = vadd.xlane.f32.xlu0 %v955
    %v957 = vpop.xlane.xlu0 %956
    %v958 = vsel %vm77, %v768, 0.0
    %959 = vadd.xlane.f32.xlu0 %v958
    %v960 = vpop.xlane.xlu0 %959
    %v961 = vsel %vm77, %v769, 0.0
    %962 = vadd.xlane.f32.xlu0 %v961
    %v963 = vpop.xlane.xlu0 %962
    %v964 = vsel %vm77, %v770, 0.0
    %965 = vadd.xlane.f32.xlu0 %v964
    %v966 = vpop.xlane.xlu0 %965
    %v967 = vsel %vm77, %v771, 0.0
    %968 = vadd.xlane.f32.xlu0 %v967
    %v969 = vpop.xlane.xlu0 %968
    %v970 = vsel %vm77, %v772, 0.0
    %971 = vadd.xlane.f32.xlu0 %v970
    %v972 = vpop.xlane.xlu0 %971
    %v973 = vsel %vm77, %v773, 0.0
    %974 = vadd.xlane.f32.xlu0 %v973
    %v975 = vpop.xlane.xlu0 %974
    %v976 = vsel %vm77, %v774, 0.0
    %977 = vadd.xlane.f32.xlu0 %v976
    %v978 = vpop.xlane.xlu0 %977
    %v979 = vsel %vm77, %v775, 0.0
    %980 = vadd.xlane.f32.xlu0 %v979
    %v981 = vpop.xlane.xlu0 %980
    %v982 = vsel %vm77, %v776, 0.0
    %983 = vadd.xlane.f32.xlu0 %v982
    %v984 = vpop.xlane.xlu0 %983
    %v985 = vsel %vm77, %v777, 0.0
    %986 = vadd.xlane.f32.xlu0 %v985
    %v987 = vpop.xlane.xlu0 %986
    %v988 = vsel %vm77, %v778, 0.0
    %989 = vadd.xlane.f32.xlu0 %v988
    %v990 = vpop.xlane.xlu0 %989
    %v991 = vsel %vm77, %v779, 0.0
    %992 = vadd.xlane.f32.xlu0 %v991
    %v993 = vpop.xlane.xlu0 %992
    %v994 = vsel %vm77, %v780, 0.0
    %995 = vadd.xlane.f32.xlu0 %v994
    %v996 = vpop.xlane.xlu0 %995
    %v997 = vsel %vm77, %v781, 0.0
    %998 = vadd.xlane.f32.xlu0 %v997
    %v999 = vpop.xlane.xlu0 %998
    %v1000 = vsel %vm77, %v782, 0.0
    %1001 = vadd.xlane.f32.xlu0 %v1000
    %v1002 = vpop.xlane.xlu0 %1001
    %v1003 = vsel %vm77, %v783, 0.0
    %1004 = vadd.xlane.f32.xlu0 %v1003
    %v1005 = vpop.xlane.xlu0 %1004
    %v1006 = vsel %vm77, %v784, 0.0
    %1007 = vadd.xlane.f32.xlu0 %v1006
    %v1008 = vpop.xlane.xlu0 %1007
    %v1009 = vsel %vm77, %v785, 0.0
    %1010 = vadd.xlane.f32.xlu0 %v1009
    %v1011 = vpop.xlane.xlu0 %1010
    %v1012 = vsel %vm77, %v786, 0.0
    %1013 = vadd.xlane.f32.xlu0 %v1012
    %v1014 = vpop.xlane.xlu0 %1013
    %v1015 = vsel %vm77, %v787, 0.0
    %1016 = vadd.xlane.f32.xlu0 %v1015
    %v1017 = vpop.xlane.xlu0 %1016
    %v1018 = vsel %vm77, %v788, 0.0
    %1019 = vadd.xlane.f32.xlu0 %v1018
    %v1020 = vpop.xlane.xlu0 %1019
    %v1021 = vsel %vm77, %v789, 0.0
    %1022 = vadd.xlane.f32.xlu0 %v1021
    %v1023 = vpop.xlane.xlu0 %1022
    %v1024 = vsel %vm77, %v790, 0.0
    %1025 = vadd.xlane.f32.xlu0 %v1024
    %v1026 = vpop.xlane.xlu0 %1025
    %v1027 = vsel %vm77, %v791, 0.0
    %1028 = vadd.xlane.f32.xlu0 %v1027
    %v1029 = vpop.xlane.xlu0 %1028
    %v1030 = vsel %vm77, %v792, 0.0
    %1031 = vadd.xlane.f32.xlu0 %v1030
    %v1032 = vpop.xlane.xlu0 %1031
    %v1033 = vsel %vm77, %v793, 0.0
    %1034 = vadd.xlane.f32.xlu0 %v1033
    %v1035 = vpop.xlane.xlu0 %1034
    %v1036 = vsel %vm77, %v794, 0.0
    %1037 = vadd.xlane.f32.xlu0 %v1036
    %v1038 = vpop.xlane.xlu0 %1037
    %v1039 = vsel %vm77, %v795, 0.0
    %1040 = vadd.xlane.f32.xlu0 %v1039
    %v1041 = vpop.xlane.xlu0 %1040
    %v1042 = vsel %vm77, %v796, 0.0
    %1043 = vadd.xlane.f32.xlu0 %v1042
    %v1044 = vpop.xlane.xlu0 %1043
    %v1045 = vsel %vm77, %v797, 0.0
    %1046 = vadd.xlane.f32.xlu0 %v1045
    %v1047 = vpop.xlane.xlu0 %1046
    %v1048 = vsel %vm77, %v798, 0.0
    %1049 = vadd.xlane.f32.xlu0 %v1048
    %v1050 = vpop.xlane.xlu0 %1049
    %v1051 = vsel %vm77, %v799, 0.0
    %1052 = vadd.xlane.f32.xlu0 %v1051
    %v1053 = vpop.xlane.xlu0 %1052
    %v1054 = vsel %vm77, %v800, 0.0
    %1055 = vadd.xlane.f32.xlu0 %v1054
    %v1056 = vpop.xlane.xlu0 %1055
    %v1057 = vsel %vm77, %v801, 0.0
    %1058 = vadd.xlane.f32.xlu0 %v1057
    %v1059 = vpop.xlane.xlu0 %1058
    %v1060 = vsel %vm77, %v802, 0.0
    %1061 = vadd.xlane.f32.xlu0 %v1060
    %v1062 = vpop.xlane.xlu0 %1061
    %v1063 = vsel %vm77, %v803, 0.0
    %1064 = vadd.xlane.f32.xlu0 %v1063
    %v1065 = vpop.xlane.xlu0 %1064
    %v1066 = vsel %vm77, %v804, 0.0
    %1067 = vadd.xlane.f32.xlu0 %v1066
    %v1068 = vpop.xlane.xlu0 %1067
    %v1069 = vsel %vm77, %v805, 0.0
    %1070 = vadd.xlane.f32.xlu0 %v1069
    %v1071 = vpop.xlane.xlu0 %1070
    %v1072 = vsel %vm77, %v806, 0.0
    %1073 = vadd.xlane.f32.xlu0 %v1072
    %v1074 = vpop.xlane.xlu0 %1073
    %v1075 = vsel %vm77, %v807, 0.0
    %1076 = vadd.xlane.f32.xlu0 %v1075
    %v1077 = vpop.xlane.xlu0 %1076
    %v1078 = vsel %vm77, %v808, 0.0
    %1079 = vadd.xlane.f32.xlu0 %v1078
    %v1080 = vpop.xlane.xlu0 %1079
    %v1081 = vsel %vm77, %v809, 0.0
    %1082 = vadd.xlane.f32.xlu0 %v1081
    %v1083 = vpop.xlane.xlu0 %1082
    %v1084 = vsel %vm77, %v810, 0.0
    %1085 = vadd.xlane.f32.xlu0 %v1084
    %v1086 = vpop.xlane.xlu0 %1085
    %v1087 = vsel %vm77, %v811, 0.0
    %1088 = vadd.xlane.f32.xlu0 %v1087
    %v1089 = vpop.xlane.xlu0 %1088
    %v1090 = vsel %vm77, %v812, 0.0
    %1091 = vadd.xlane.f32.xlu0 %v1090
    %v1092 = vpop.xlane.xlu0 %1091
    %v1093 = vsel %vm77, %v813, 0.0
    %1094 = vadd.xlane.f32.xlu0 %v1093
    %v1095 = vpop.xlane.xlu0 %1094
    %v1096 = vsel %vm77, %v814, 0.0
    %1097 = vadd.xlane.f32.xlu0 %v1096
    %v1098 = vpop.xlane.xlu0 %1097
    %v1099 = vsel %vm77, %v815, 0.0
    %1100 = vadd.xlane.f32.xlu0 %v1099
    %v1101 = vpop.xlane.xlu0 %1100
    %v1102 = vsel %vm77, %v816, 0.0
    %1103 = vadd.xlane.f32.xlu0 %v1102
    %v1104 = vpop.xlane.xlu0 %1103
    %v1105 = vsel %vm77, %v817, 0.0
    %1106 = vadd.xlane.f32.xlu0 %v1105
    %v1107 = vpop.xlane.xlu0 %1106
    %v1108 = vsel %vm77, %v818, 0.0
    %1109 = vadd.xlane.f32.xlu0 %v1108
    %v1110 = vpop.xlane.xlu0 %1109
    %v1111 = vsel %vm77, %v819, 0.0
    %1112 = vadd.xlane.f32.xlu0 %v1111
    %v1113 = vpop.xlane.xlu0 %1112
    %v1114 = vsel %vm77, %v820, 0.0
    %1115 = vadd.xlane.f32.xlu0 %v1114
    %v1116 = vpop.xlane.xlu0 %1115
    %v1117 = vsel %vm77, %v821, 0.0
    %1118 = vadd.xlane.f32.xlu0 %v1117
    %v1119 = vpop.xlane.xlu0 %1118
    %v1120 = vsel %vm77, %v822, 0.0
    %1121 = vadd.xlane.f32.xlu0 %v1120
    %v1122 = vpop.xlane.xlu0 %1121
    %v1123 = vsel %vm77, %v823, 0.0
    %1124 = vadd.xlane.f32.xlu0 %v1123
    %v1125 = vpop.xlane.xlu0 %1124
    %v1126 = vsel %vm77, %v824, 0.0
    %1127 = vadd.xlane.f32.xlu0 %v1126
    %v1128 = vpop.xlane.xlu0 %1127
    %v1129 = vsel %vm77, %v825, 0.0
    %1130 = vadd.xlane.f32.xlu0 %v1129
    %v1131 = vpop.xlane.xlu0 %1130
    %v1132 = vsel %vm77, %v826, 0.0
    %1133 = vadd.xlane.f32.xlu0 %v1132
    %v1134 = vpop.xlane.xlu0 %1133
    %v1135 = vsel %vm77, %v827, 0.0
    %1136 = vadd.xlane.f32.xlu0 %v1135
    %v1137 = vpop.xlane.xlu0 %1136
    %v1138 = vsel %vm77, %v828, 0.0
    %1139 = vadd.xlane.f32.xlu0 %v1138
    %v1140 = vpop.xlane.xlu0 %1139
    %v1141 = vsel %vm77, %v829, 0.0
    %1142 = vadd.xlane.f32.xlu0 %v1141
    %v1143 = vpop.xlane.xlu0 %1142
    %v1144 = vsel %vm77, %v830, 0.0
    %1145 = vadd.xlane.f32.xlu0 %v1144
    %v1146 = vpop.xlane.xlu0 %1145
    %v1147 = vsel %vm77, %v831, 0.0
    %1148 = vadd.xlane.f32.xlu0 %v1147
    %v1149 = vpop.xlane.xlu0 %1148
    %v1150 = vsel %vm77, %v832, 0.0
    %1151 = vadd.xlane.f32.xlu0 %v1150
    %v1152 = vpop.xlane.xlu0 %1151
    %v1153 = vsel %vm77, %v833, 0.0
    %1154 = vadd.xlane.f32.xlu0 %v1153
    %v1155 = vpop.xlane.xlu0 %1154
    %v1156 = vsel %vm77, %v834, 0.0
    %1157 = vadd.xlane.f32.xlu0 %v1156
    %v1158 = vpop.xlane.xlu0 %1157
    %v1159 = vsel %vm77, %v835, 0.0
    %1160 = vadd.xlane.f32.xlu0 %v1159
    %v1161 = vpop.xlane.xlu0 %1160
    %v1162 = vsel %vm77, %v836, 0.0
    %1163 = vadd.xlane.f32.xlu0 %v1162
    %v1164 = vpop.xlane.xlu0 %1163
    %v1165 = vsel %vm77, %v837, 0.0
    %1166 = vadd.xlane.f32.xlu0 %v1165
    %v1167 = vpop.xlane.xlu0 %1166
    %v1168 = vsel %vm77, %v838, 0.0
    %1169 = vadd.xlane.f32.xlu0 %v1168
    %v1170 = vpop.xlane.xlu0 %1169
    %v1171 = vsel %vm77, %v839, 0.0
    %1172 = vadd.xlane.f32.xlu0 %v1171
    %v1173 = vpop.xlane.xlu0 %1172
    %v1174 = vsel %vm77, %v840, 0.0
    %1175 = vadd.xlane.f32.xlu0 %v1174
    %v1176 = vpop.xlane.xlu0 %1175
    %v1177 = vsel %vm77, %v841, 0.0
    %1178 = vadd.xlane.f32.xlu0 %v1177
    %v1179 = vpop.xlane.xlu0 %1178
    %v1180 = vsel %vm77, %v842, 0.0
    %1181 = vadd.xlane.f32.xlu0 %v1180
    %v1182 = vpop.xlane.xlu0 %1181
    %v1183 = vsel %vm77, %v843, 0.0
    %1184 = vadd.xlane.f32.xlu0 %v1183
    %v1185 = vpop.xlane.xlu0 %1184
    %v1186 = vsel %vm77, %v844, 0.0
    %1187 = vadd.xlane.f32.xlu0 %v1186
    %v1188 = vpop.xlane.xlu0 %1187
    %v1189 = vsel %vm77, %v845, 0.0
    %1190 = vadd.xlane.f32.xlu0 %v1189
    %v1191 = vpop.xlane.xlu0 %1190
    %v1192 = vsel %vm77, %v846, 0.0
    %1193 = vadd.xlane.f32.xlu0 %v1192
    %v1194 = vpop.xlane.xlu0 %1193
    %v1195 = vsel %vm77, %v847, 0.0
    %1196 = vadd.xlane.f32.xlu0 %v1195
    %v1197 = vpop.xlane.xlu0 %1196
    %v1198 = vsel %vm77, %v848, 0.0
    %1199 = vadd.xlane.f32.xlu0 %v1198
    %v1200 = vpop.xlane.xlu0 %1199
    %v1201 = vsel %vm77, %v849, 0.0
    %1202 = vadd.xlane.f32.xlu0 %v1201
    %v1203 = vpop.xlane.xlu0 %1202
    %v1204 = vsel %vm77, %v850, 0.0
    %1205 = vadd.xlane.f32.xlu0 %v1204
    %v1206 = vpop.xlane.xlu0 %1205
    %v1207 = vsel %vm77, %v851, 0.0
    %1208 = vadd.xlane.f32.xlu0 %v1207
    %v1209 = vpop.xlane.xlu0 %1208
    %v1210 = vsel %vm77, %v852, 0.0
    %1211 = vadd.xlane.f32.xlu0 %v1210
    %v1212 = vpop.xlane.xlu0 %1211
    %v1213 = vsel %vm77, %v853, 0.0
    %1214 = vadd.xlane.f32.xlu0 %v1213
    %v1215 = vpop.xlane.xlu0 %1214
    %v1216 = vsel %vm77, %v854, 0.0
    %1217 = vadd.xlane.f32.xlu0 %v1216
    %v1218 = vpop.xlane.xlu0 %1217
    %v1219 = vsel %vm77, %v855, 0.0
    %1220 = vadd.xlane.f32.xlu0 %v1219
    %v1221 = vpop.xlane.xlu0 %1220
    %v1222 = vsel %vm77, %v856, 0.0
    %1223 = vadd.xlane.f32.xlu0 %v1222
    %v1224 = vpop.xlane.xlu0 %1223
    %v1225 = vsel %vm77, %v857, 0.0
    %1226 = vadd.xlane.f32.xlu0 %v1225
    %v1227 = vpop.xlane.xlu0 %1226
    %v1228 = vsel %vm77, %v858, 0.0
    %1229 = vadd.xlane.f32.xlu0 %v1228
    %v1230 = vpop.xlane.xlu0 %1229
    %v1231 = vsel %vm77, %v859, 0.0
    %1232 = vadd.xlane.f32.xlu0 %v1231
    %v1233 = vpop.xlane.xlu0 %1232
    %v1234 = vsel %vm77, %v860, 0.0
    %1235 = vadd.xlane.f32.xlu0 %v1234
    %v1236 = vpop.xlane.xlu0 %1235
    %v1237 = vsel %vm77, %v861, 0.0
    %1238 = vadd.xlane.f32.xlu0 %v1237
    %v1239 = vpop.xlane.xlu0 %1238
    %v1240 = vsel %vm77, %v862, 0.0
    %1241 = vadd.xlane.f32.xlu0 %v1240
    %v1242 = vpop.xlane.xlu0 %1241
    %v1243 = vsel %vm77, %v863, 0.0
    %1244 = vadd.xlane.f32.xlu0 %v1243
    %v1245 = vpop.xlane.xlu0 %1244
    %v1246 = vsel %vm77, %v864, 0.0
    %1247 = vadd.xlane.f32.xlu0 %v1246
    %v1248 = vpop.xlane.xlu0 %1247
    %vm1249 = vcmp.eq.f32.partialorder %v58, 0.0
    %v1378 = vlaneseq
    %v1379 = vand.u32 %v1378, 127
    %v1380 = vlaneseq
    %v1381 = vshrl.u32 %v1380, 7
    %v1382 = vsub.s32 %v1379, %v1381
    %v1383 = vrot.slane %v867, %v1382
    %v1384 = vadd.s32 %v1379, 4294967288
    %v1385 = vlaneseq
    %v1386 = vshrl.u32 %v1385, 7
    %v1387 = vsub.s32 %v1384, %v1386
    %v1388 = vrot.slane %v870, %v1387
    %vm1389 = vcmask 130112
    %v1390 = vsel %vm1389, %v1388, %v1383
    %v1391 = vadd.s32 %v1379, 4294967280
    %v1392 = vlaneseq
    %v1393 = vshrl.u32 %v1392, 7
    %v1394 = vsub.s32 %v1391, %v1393
    %v1395 = vrot.slane %v873, %v1394
    %vm1396 = vcmask 195712
    %v1397 = vsel %vm1396, %v1395, %v1390
    %v1398 = vadd.s32 %v1379, 4294967272
    %v1399 = vlaneseq
    %v1400 = vshrl.u32 %v1399, 7
    %v1401 = vsub.s32 %v1398, %v1400
    %v1402 = vrot.slane %v876, %v1401
    %vm1403 = vcmask 261312
    %v1404 = vsel %vm1403, %v1402, %v1397
    %v1405 = vadd.s32 %v1379, 4294967264
    %v1406 = vlaneseq
    %v1407 = vshrl.u32 %v1406, 7
    %v1408 = vsub.s32 %v1405, %v1407
    %v1409 = vrot.slane %v879, %v1408
    %vm1410 = vcmask 326912
    %v1411 = vsel %vm1410, %v1409, %v1404
    %v1412 = vadd.s32 %v1379, 4294967256
    %v1413 = vlaneseq
    %v1414 = vshrl.u32 %v1413, 7
    %v1415 = vsub.s32 %v1412, %v1414
    %v1416 = vrot.slane %v882, %v1415
    %vm1417 = vcmask 392512
    %v1418 = vsel %vm1417, %v1416, %v1411
    %v1419 = vadd.s32 %v1379, 4294967248
    %v1420 = vlaneseq
    %v1421 = vshrl.u32 %v1420, 7
    %v1422 = vsub.s32 %v1419, %v1421
    %v1423 = vrot.slane %v885, %v1422
    %vm1424 = vcmask 458112
    %v1425 = vsel %vm1424, %v1423, %v1418
    %v1426 = vadd.s32 %v1379, 4294967240
    %v1427 = vlaneseq
    %v1428 = vshrl.u32 %v1427, 7
    %v1429 = vsub.s32 %v1426, %v1428
    %v1430 = vrot.slane %v888, %v1429
    %vm1431 = vcmask 523712
    %v1432 = vsel %vm1431, %v1430, %v1425
    %v1433 = vadd.s32 %v1379, 4294967232
    %v1434 = vlaneseq
    %v1435 = vshrl.u32 %v1434, 7
    %v1436 = vsub.s32 %v1433, %v1435
    %v1437 = vrot.slane %v891, %v1436
    %vm1438 = vcmask 589312
    %v1439 = vsel %vm1438, %v1437, %v1432
    %v1440 = vadd.s32 %v1379, 4294967224
    %v1441 = vlaneseq
    %v1442 = vshrl.u32 %v1441, 7
    %v1443 = vsub.s32 %v1440, %v1442
    %v1444 = vrot.slane %v894, %v1443
    %vm1445 = vcmask 654912
    %v1446 = vsel %vm1445, %v1444, %v1439
    %v1447 = vadd.s32 %v1379, 4294967216
    %v1448 = vlaneseq
    %v1449 = vshrl.u32 %v1448, 7
    %v1450 = vsub.s32 %v1447, %v1449
    %v1451 = vrot.slane %v897, %v1450
    %vm1452 = vcmask 720512
    %v1453 = vsel %vm1452, %v1451, %v1446
    %v1454 = vadd.s32 %v1379, 4294967208
    %v1455 = vlaneseq
    %v1456 = vshrl.u32 %v1455, 7
    %v1457 = vsub.s32 %v1454, %v1456
    %v1458 = vrot.slane %v900, %v1457
    %vm1459 = vcmask 786112
    %v1460 = vsel %vm1459, %v1458, %v1453
    %v1461 = vadd.s32 %v1379, 4294967200
    %v1462 = vlaneseq
    %v1463 = vshrl.u32 %v1462, 7
    %v1464 = vsub.s32 %v1461, %v1463
    %v1465 = vrot.slane %v903, %v1464
    %vm1466 = vcmask 851712
    %v1467 = vsel %vm1466, %v1465, %v1460
    %v1468 = vadd.s32 %v1379, 4294967192
    %v1469 = vlaneseq
    %v1470 = vshrl.u32 %v1469, 7
    %v1471 = vsub.s32 %v1468, %v1470
    %v1472 = vrot.slane %v906, %v1471
    %vm1473 = vcmask 917312
    %v1474 = vsel %vm1473, %v1472, %v1467
    %v1475 = vadd.s32 %v1379, 4294967184
    %v1476 = vlaneseq
    %v1477 = vshrl.u32 %v1476, 7
    %v1478 = vsub.s32 %v1475, %v1477
    %v1479 = vrot.slane %v909, %v1478
    %vm1480 = vcmask 982912
    %v1481 = vsel %vm1480, %v1479, %v1474
    %v1482 = vadd.s32 %v1379, 4294967176
    %v1483 = vlaneseq
    %v1484 = vshrl.u32 %v1483, 7
    %v1485 = vsub.s32 %v1482, %v1484
    %v1486 = vrot.slane %v912, %v1485
    %vm1487 = vcmask 1048512
    %v1488 = vsel %vm1487, %v1486, %v1481
    %v1489 = vlaneseq
    %v1490 = vshrl.u32 %v1489, 7
    %v1491 = vsub.s32 %v1379, %v1490
    %v1492 = vrot.slane %v915, %v1491
    %v1493 = vlaneseq
    %v1494 = vshrl.u32 %v1493, 7
    %v1495 = vsub.s32 %v1384, %v1494
    %v1496 = vrot.slane %v918, %v1495
    %v1497 = vsel %vm1389, %v1496, %v1492
    %v1498 = vlaneseq
    %v1499 = vshrl.u32 %v1498, 7
    %v1500 = vsub.s32 %v1391, %v1499
    %v1501 = vrot.slane %v921, %v1500
    %v1502 = vsel %vm1396, %v1501, %v1497
    %v1503 = vlaneseq
    %v1504 = vshrl.u32 %v1503, 7
    %v1505 = vsub.s32 %v1398, %v1504
    %v1506 = vrot.slane %v924, %v1505
    %v1507 = vsel %vm1403, %v1506, %v1502
    %v1508 = vlaneseq
    %v1509 = vshrl.u32 %v1508, 7
    %v1510 = vsub.s32 %v1405, %v1509
    %v1511 = vrot.slane %v927, %v1510
    %v1512 = vsel %vm1410, %v1511, %v1507
    %v1513 = vlaneseq
    %v1514 = vshrl.u32 %v1513, 7
    %v1515 = vsub.s32 %v1412, %v1514
    %v1516 = vrot.slane %v930, %v1515
    %v1517 = vsel %vm1417, %v1516, %v1512
    %v1518 = vlaneseq
    %v1519 = vshrl.u32 %v1518, 7
    %v1520 = vsub.s32 %v1419, %v1519
    %v1521 = vrot.slane %v933, %v1520
    %v1522 = vsel %vm1424, %v1521, %v1517
    %v1523 = vlaneseq
    %v1524 = vshrl.u32 %v1523, 7
    %v1525 = vsub.s32 %v1426, %v1524
    %v1526 = vrot.slane %v936, %v1525
    %v1527 = vsel %vm1431, %v1526, %v1522
    %v1528 = vlaneseq
    %v1529 = vshrl.u32 %v1528, 7
    %v1530 = vsub.s32 %v1433, %v1529
    %v1531 = vrot.slane %v939, %v1530
    %v1532 = vsel %vm1438, %v1531, %v1527
    %v1533 = vlaneseq
    %v1534 = vshrl.u32 %v1533, 7
    %v1535 = vsub.s32 %v1440, %v1534
    %v1536 = vrot.slane %v942, %v1535
    %v1537 = vsel %vm1445, %v1536, %v1532
    %v1538 = vlaneseq
    %v1539 = vshrl.u32 %v1538, 7
    %v1540 = vsub.s32 %v1447, %v1539
    %v1541 = vrot.slane %v945, %v1540
    %v1542 = vsel %vm1452, %v1541, %v1537
    %v1543 = vlaneseq
    %v1544 = vshrl.u32 %v1543, 7
    %v1545 = vsub.s32 %v1454, %v1544
    %v1546 = vrot.slane %v948, %v1545
    %v1547 = vsel %vm1459, %v1546, %v1542
    %v1548 = vlaneseq
    %v1549 = vshrl.u32 %v1548, 7
    %v1550 = vsub.s32 %v1461, %v1549
    %v1551 = vrot.slane %v951, %v1550
    %v1552 = vsel %vm1466, %v1551, %v1547
    %v1553 = vlaneseq
    %v1554 = vshrl.u32 %v1553, 7
    %v1555 = vsub.s32 %v1468, %v1554
    %v1556 = vrot.slane %v954, %v1555
    %v1557 = vsel %vm1473, %v1556, %v1552
    %v1558 = vlaneseq
    %v1559 = vshrl.u32 %v1558, 7
    %v1560 = vsub.s32 %v1475, %v1559
    %v1561 = vrot.slane %v957, %v1560
    %v1562 = vsel %vm1480, %v1561, %v1557
    %v1563 = vlaneseq
    %v1564 = vshrl.u32 %v1563, 7
    %v1565 = vsub.s32 %v1482, %v1564
    %v1566 = vrot.slane %v960, %v1565
    %v1567 = vsel %vm1487, %v1566, %v1562
    %v1568 = vlaneseq
    %v1569 = vshrl.u32 %v1568, 7
    %v1570 = vsub.s32 %v1379, %v1569
    %v1571 = vrot.slane %v963, %v1570
    %v1572 = vlaneseq
    %v1573 = vshrl.u32 %v1572, 7
    %v1574 = vsub.s32 %v1384, %v1573
    %v1575 = vrot.slane %v966, %v1574
    %v1576 = vsel %vm1389, %v1575, %v1571
    %v1577 = vlaneseq
    %v1578 = vshrl.u32 %v1577, 7
    %v1579 = vsub.s32 %v1391, %v1578
    %v1580 = vrot.slane %v969, %v1579
    %v1581 = vsel %vm1396, %v1580, %v1576
    %v1582 = vlaneseq
    %v1583 = vshrl.u32 %v1582, 7
    %v1584 = vsub.s32 %v1398, %v1583
    %v1585 = vrot.slane %v972, %v1584
    %v1586 = vsel %vm1403, %v1585, %v1581
    %v1587 = vlaneseq
    %v1588 = vshrl.u32 %v1587, 7
    %v1589 = vsub.s32 %v1405, %v1588
    %v1590 = vrot.slane %v975, %v1589
    %v1591 = vsel %vm1410, %v1590, %v1586
    %v1592 = vlaneseq
    %v1593 = vshrl.u32 %v1592, 7
    %v1594 = vsub.s32 %v1412, %v1593
    %v1595 = vrot.slane %v978, %v1594
    %v1596 = vsel %vm1417, %v1595, %v1591
    %v1597 = vlaneseq
    %v1598 = vshrl.u32 %v1597, 7
    %v1599 = vsub.s32 %v1419, %v1598
    %v1600 = vrot.slane %v981, %v1599
    %v1601 = vsel %vm1424, %v1600, %v1596
    %v1602 = vlaneseq
    %v1603 = vshrl.u32 %v1602, 7
    %v1604 = vsub.s32 %v1426, %v1603
    %v1605 = vrot.slane %v984, %v1604
    %v1606 = vsel %vm1431, %v1605, %v1601
    %v1607 = vlaneseq
    %v1608 = vshrl.u32 %v1607, 7
    %v1609 = vsub.s32 %v1433, %v1608
    %v1610 = vrot.slane %v987, %v1609
    %v1611 = vsel %vm1438, %v1610, %v1606
    %v1612 = vlaneseq
    %v1613 = vshrl.u32 %v1612, 7
    %v1614 = vsub.s32 %v1440, %v1613
    %v1615 = vrot.slane %v990, %v1614
    %v1616 = vsel %vm1445, %v1615, %v1611
    %v1617 = vlaneseq
    %v1618 = vshrl.u32 %v1617, 7
    %v1619 = vsub.s32 %v1447, %v1618
    %v1620 = vrot.slane %v993, %v1619
    %v1621 = vsel %vm1452, %v1620, %v1616
    %v1622 = vlaneseq
    %v1623 = vshrl.u32 %v1622, 7
    %v1624 = vsub.s32 %v1454, %v1623
    %v1625 = vrot.slane %v996, %v1624
    %v1626 = vsel %vm1459, %v1625, %v1621
    %v1627 = vlaneseq
    %v1628 = vshrl.u32 %v1627, 7
    %v1629 = vsub.s32 %v1461, %v1628
    %v1630 = vrot.slane %v999, %v1629
    %v1631 = vsel %vm1466, %v1630, %v1626
    %v1632 = vlaneseq
    %v1633 = vshrl.u32 %v1632, 7
    %v1634 = vsub.s32 %v1468, %v1633
    %v1635 = vrot.slane %v1002, %v1634
    %v1636 = vsel %vm1473, %v1635, %v1631
    %v1637 = vlaneseq
    %v1638 = vshrl.u32 %v1637, 7
    %v1639 = vsub.s32 %v1475, %v1638
    %v1640 = vrot.slane %v1005, %v1639
    %v1641 = vsel %vm1480, %v1640, %v1636
    %v1642 = vlaneseq
    %v1643 = vshrl.u32 %v1642, 7
    %v1644 = vsub.s32 %v1482, %v1643
    %v1645 = vrot.slane %v1008, %v1644
    %v1646 = vsel %vm1487, %v1645, %v1641
    %v1647 = vlaneseq
    %v1648 = vshrl.u32 %v1647, 7
    %v1649 = vsub.s32 %v1379, %v1648
    %v1650 = vrot.slane %v1011, %v1649
    %v1651 = vlaneseq
    %v1652 = vshrl.u32 %v1651, 7
    %v1653 = vsub.s32 %v1384, %v1652
    %v1654 = vrot.slane %v1014, %v1653
    %v1655 = vsel %vm1389, %v1654, %v1650
    %v1656 = vlaneseq
    %v1657 = vshrl.u32 %v1656, 7
    %v1658 = vsub.s32 %v1391, %v1657
    %v1659 = vrot.slane %v1017, %v1658
    %v1660 = vsel %vm1396, %v1659, %v1655
    %v1661 = vlaneseq
    %v1662 = vshrl.u32 %v1661, 7
    %v1663 = vsub.s32 %v1398, %v1662
    %v1664 = vrot.slane %v1020, %v1663
    %v1665 = vsel %vm1403, %v1664, %v1660
    %v1666 = vlaneseq
    %v1667 = vshrl.u32 %v1666, 7
    %v1668 = vsub.s32 %v1405, %v1667
    %v1669 = vrot.slane %v1023, %v1668
    %v1670 = vsel %vm1410, %v1669, %v1665
    %v1671 = vlaneseq
    %v1672 = vshrl.u32 %v1671, 7
    %v1673 = vsub.s32 %v1412, %v1672
    %v1674 = vrot.slane %v1026, %v1673
    %v1675 = vsel %vm1417, %v1674, %v1670
    %v1676 = vlaneseq
    %v1677 = vshrl.u32 %v1676, 7
    %v1678 = vsub.s32 %v1419, %v1677
    %v1679 = vrot.slane %v1029, %v1678
    %v1680 = vsel %vm1424, %v1679, %v1675
    %v1681 = vlaneseq
    %v1682 = vshrl.u32 %v1681, 7
    %v1683 = vsub.s32 %v1426, %v1682
    %v1684 = vrot.slane %v1032, %v1683
    %v1685 = vsel %vm1431, %v1684, %v1680
    %v1686 = vlaneseq
    %v1687 = vshrl.u32 %v1686, 7
    %v1688 = vsub.s32 %v1433, %v1687
    %v1689 = vrot.slane %v1035, %v1688
    %v1690 = vsel %vm1438, %v1689, %v1685
    %v1691 = vlaneseq
    %v1692 = vshrl.u32 %v1691, 7
    %v1693 = vsub.s32 %v1440, %v1692
    %v1694 = vrot.slane %v1038, %v1693
    %v1695 = vsel %vm1445, %v1694, %v1690
    %v1696 = vlaneseq
    %v1697 = vshrl.u32 %v1696, 7
    %v1698 = vsub.s32 %v1447, %v1697
    %v1699 = vrot.slane %v1041, %v1698
    %v1700 = vsel %vm1452, %v1699, %v1695
    %v1701 = vlaneseq
    %v1702 = vshrl.u32 %v1701, 7
    %v1703 = vsub.s32 %v1454, %v1702
    %v1704 = vrot.slane %v1044, %v1703
    %v1705 = vsel %vm1459, %v1704, %v1700
    %v1706 = vlaneseq
    %v1707 = vshrl.u32 %v1706, 7
    %v1708 = vsub.s32 %v1461, %v1707
    %v1709 = vrot.slane %v1047, %v1708
    %v1710 = vsel %vm1466, %v1709, %v1705
    %v1711 = vlaneseq
    %v1712 = vshrl.u32 %v1711, 7
    %v1713 = vsub.s32 %v1468, %v1712
    %v1714 = vrot.slane %v1050, %v1713
    %v1715 = vsel %vm1473, %v1714, %v1710
    %v1716 = vlaneseq
    %v1717 = vshrl.u32 %v1716, 7
    %v1718 = vsub.s32 %v1475, %v1717
    %v1719 = vrot.slane %v1053, %v1718
    %v1720 = vsel %vm1480, %v1719, %v1715
    %v1721 = vlaneseq
    %v1722 = vshrl.u32 %v1721, 7
    %v1723 = vsub.s32 %v1482, %v1722
    %v1724 = vrot.slane %v1056, %v1723
    %v1725 = vsel %vm1487, %v1724, %v1720
    %v1726 = vlaneseq
    %v1727 = vshrl.u32 %v1726, 7
    %v1728 = vsub.s32 %v1379, %v1727
    %v1729 = vrot.slane %v1059, %v1728
    %v1730 = vlaneseq
    %v1731 = vshrl.u32 %v1730, 7
    %v1732 = vsub.s32 %v1384, %v1731
    %v1733 = vrot.slane %v1062, %v1732
    %v1734 = vsel %vm1389, %v1733, %v1729
    %v1735 = vlaneseq
    %v1736 = vshrl.u32 %v1735, 7
    %v1737 = vsub.s32 %v1391, %v1736
    %v1738 = vrot.slane %v1065, %v1737
    %v1739 = vsel %vm1396, %v1738, %v1734
    %v1740 = vlaneseq
    %v1741 = vshrl.u32 %v1740, 7
    %v1742 = vsub.s32 %v1398, %v1741
    %v1743 = vrot.slane %v1068, %v1742
    %v1744 = vsel %vm1403, %v1743, %v1739
    %v1745 = vlaneseq
    %v1746 = vshrl.u32 %v1745, 7
    %v1747 = vsub.s32 %v1405, %v1746
    %v1748 = vrot.slane %v1071, %v1747
    %v1749 = vsel %vm1410, %v1748, %v1744
    %v1750 = vlaneseq
    %v1751 = vshrl.u32 %v1750, 7
    %v1752 = vsub.s32 %v1412, %v1751
    %v1753 = vrot.slane %v1074, %v1752
    %v1754 = vsel %vm1417, %v1753, %v1749
    %v1755 = vlaneseq
    %v1756 = vshrl.u32 %v1755, 7
    %v1757 = vsub.s32 %v1419, %v1756
    %v1758 = vrot.slane %v1077, %v1757
    %v1759 = vsel %vm1424, %v1758, %v1754
    %v1760 = vlaneseq
    %v1761 = vshrl.u32 %v1760, 7
    %v1762 = vsub.s32 %v1426, %v1761
    %v1763 = vrot.slane %v1080, %v1762
    %v1764 = vsel %vm1431, %v1763, %v1759
    %v1765 = vlaneseq
    %v1766 = vshrl.u32 %v1765, 7
    %v1767 = vsub.s32 %v1433, %v1766
    %v1768 = vrot.slane %v1083, %v1767
    %v1769 = vsel %vm1438, %v1768, %v1764
    %v1770 = vlaneseq
    %v1771 = vshrl.u32 %v1770, 7
    %v1772 = vsub.s32 %v1440, %v1771
    %v1773 = vrot.slane %v1086, %v1772
    %v1774 = vsel %vm1445, %v1773, %v1769
    %v1775 = vlaneseq
    %v1776 = vshrl.u32 %v1775, 7
    %v1777 = vsub.s32 %v1447, %v1776
    %v1778 = vrot.slane %v1089, %v1777
    %v1779 = vsel %vm1452, %v1778, %v1774
    %v1780 = vlaneseq
    %v1781 = vshrl.u32 %v1780, 7
    %v1782 = vsub.s32 %v1454, %v1781
    %v1783 = vrot.slane %v1092, %v1782
    %v1784 = vsel %vm1459, %v1783, %v1779
    %v1785 = vlaneseq
    %v1786 = vshrl.u32 %v1785, 7
    %v1787 = vsub.s32 %v1461, %v1786
    %v1788 = vrot.slane %v1095, %v1787
    %v1789 = vsel %vm1466, %v1788, %v1784
    %v1790 = vlaneseq
    %v1791 = vshrl.u32 %v1790, 7
    %v1792 = vsub.s32 %v1468, %v1791
    %v1793 = vrot.slane %v1098, %v1792
    %v1794 = vsel %vm1473, %v1793, %v1789
    %v1795 = vlaneseq
    %v1796 = vshrl.u32 %v1795, 7
    %v1797 = vsub.s32 %v1475, %v1796
    %v1798 = vrot.slane %v1101, %v1797
    %v1799 = vsel %vm1480, %v1798, %v1794
    %v1800 = vlaneseq
    %v1801 = vshrl.u32 %v1800, 7
    %v1802 = vsub.s32 %v1482, %v1801
    %v1803 = vrot.slane %v1104, %v1802
    %v1804 = vsel %vm1487, %v1803, %v1799
    %v1805 = vlaneseq
    %v1806 = vshrl.u32 %v1805, 7
    %v1807 = vsub.s32 %v1379, %v1806
    %v1808 = vrot.slane %v1107, %v1807
    %v1809 = vlaneseq
    %v1810 = vshrl.u32 %v1809, 7
    %v1811 = vsub.s32 %v1384, %v1810
    %v1812 = vrot.slane %v1110, %v1811
    %v1813 = vsel %vm1389, %v1812, %v1808
    %v1814 = vlaneseq
    %v1815 = vshrl.u32 %v1814, 7
    %v1816 = vsub.s32 %v1391, %v1815
    %v1817 = vrot.slane %v1113, %v1816
    %v1818 = vsel %vm1396, %v1817, %v1813
    %v1819 = vlaneseq
    %v1820 = vshrl.u32 %v1819, 7
    %v1821 = vsub.s32 %v1398, %v1820
    %v1822 = vrot.slane %v1116, %v1821
    %v1823 = vsel %vm1403, %v1822, %v1818
    %v1824 = vlaneseq
    %v1825 = vshrl.u32 %v1824, 7
    %v1826 = vsub.s32 %v1405, %v1825
    %v1827 = vrot.slane %v1119, %v1826
    %v1828 = vsel %vm1410, %v1827, %v1823
    %v1829 = vlaneseq
    %v1830 = vshrl.u32 %v1829, 7
    %v1831 = vsub.s32 %v1412, %v1830
    %v1832 = vrot.slane %v1122, %v1831
    %v1833 = vsel %vm1417, %v1832, %v1828
    %v1834 = vlaneseq
    %v1835 = vshrl.u32 %v1834, 7
    %v1836 = vsub.s32 %v1419, %v1835
    %v1837 = vrot.slane %v1125, %v1836
    %v1838 = vsel %vm1424, %v1837, %v1833
    %v1839 = vlaneseq
    %v1840 = vshrl.u32 %v1839, 7
    %v1841 = vsub.s32 %v1426, %v1840
    %v1842 = vrot.slane %v1128, %v1841
    %v1843 = vsel %vm1431, %v1842, %v1838
    %v1844 = vlaneseq
    %v1845 = vshrl.u32 %v1844, 7
    %v1846 = vsub.s32 %v1433, %v1845
    %v1847 = vrot.slane %v1131, %v1846
    %v1848 = vsel %vm1438, %v1847, %v1843
    %v1849 = vlaneseq
    %v1850 = vshrl.u32 %v1849, 7
    %v1851 = vsub.s32 %v1440, %v1850
    %v1852 = vrot.slane %v1134, %v1851
    %v1853 = vsel %vm1445, %v1852, %v1848
    %v1854 = vlaneseq
    %v1855 = vshrl.u32 %v1854, 7
    %v1856 = vsub.s32 %v1447, %v1855
    %v1857 = vrot.slane %v1137, %v1856
    %v1858 = vsel %vm1452, %v1857, %v1853
    %v1859 = vlaneseq
    %v1860 = vshrl.u32 %v1859, 7
    %v1861 = vsub.s32 %v1454, %v1860
    %v1862 = vrot.slane %v1140, %v1861
    %v1863 = vsel %vm1459, %v1862, %v1858
    %v1864 = vlaneseq
    %v1865 = vshrl.u32 %v1864, 7
    %v1866 = vsub.s32 %v1461, %v1865
    %v1867 = vrot.slane %v1143, %v1866
    %v1868 = vsel %vm1466, %v1867, %v1863
    %v1869 = vlaneseq
    %v1870 = vshrl.u32 %v1869, 7
    %v1871 = vsub.s32 %v1468, %v1870
    %v1872 = vrot.slane %v1146, %v1871
    %v1873 = vsel %vm1473, %v1872, %v1868
    %v1874 = vlaneseq
    %v1875 = vshrl.u32 %v1874, 7
    %v1876 = vsub.s32 %v1475, %v1875
    %v1877 = vrot.slane %v1149, %v1876
    %v1878 = vsel %vm1480, %v1877, %v1873
    %v1879 = vlaneseq
    %v1880 = vshrl.u32 %v1879, 7
    %v1881 = vsub.s32 %v1482, %v1880
    %v1882 = vrot.slane %v1152, %v1881
    %v1883 = vsel %vm1487, %v1882, %v1878
    %v1884 = vlaneseq
    %v1885 = vshrl.u32 %v1884, 7
    %v1886 = vsub.s32 %v1379, %v1885
    %v1887 = vrot.slane %v1155, %v1886
    %v1888 = vlaneseq
    %v1889 = vshrl.u32 %v1888, 7
    %v1890 = vsub.s32 %v1384, %v1889
    %v1891 = vrot.slane %v1158, %v1890
    %v1892 = vsel %vm1389, %v1891, %v1887
    %v1893 = vlaneseq
    %v1894 = vshrl.u32 %v1893, 7
    %v1895 = vsub.s32 %v1391, %v1894
    %v1896 = vrot.slane %v1161, %v1895
    %v1897 = vsel %vm1396, %v1896, %v1892
    %v1898 = vlaneseq
    %v1899 = vshrl.u32 %v1898, 7
    %v1900 = vsub.s32 %v1398, %v1899
    %v1901 = vrot.slane %v1164, %v1900
    %v1902 = vsel %vm1403, %v1901, %v1897
    %v1903 = vlaneseq
    %v1904 = vshrl.u32 %v1903, 7
    %v1905 = vsub.s32 %v1405, %v1904
    %v1906 = vrot.slane %v1167, %v1905
    %v1907 = vsel %vm1410, %v1906, %v1902
    %v1908 = vlaneseq
    %v1909 = vshrl.u32 %v1908, 7
    %v1910 = vsub.s32 %v1412, %v1909
    %v1911 = vrot.slane %v1170, %v1910
    %v1912 = vsel %vm1417, %v1911, %v1907
    %v1913 = vlaneseq
    %v1914 = vshrl.u32 %v1913, 7
    %v1915 = vsub.s32 %v1419, %v1914
    %v1916 = vrot.slane %v1173, %v1915
    %v1917 = vsel %vm1424, %v1916, %v1912
    %v1918 = vlaneseq
    %v1919 = vshrl.u32 %v1918, 7
    %v1920 = vsub.s32 %v1426, %v1919
    %v1921 = vrot.slane %v1176, %v1920
    %v1922 = vsel %vm1431, %v1921, %v1917
    %v1923 = vlaneseq
    %v1924 = vshrl.u32 %v1923, 7
    %v1925 = vsub.s32 %v1433, %v1924
    %v1926 = vrot.slane %v1179, %v1925
    %v1927 = vsel %vm1438, %v1926, %v1922
    %v1928 = vlaneseq
    %v1929 = vshrl.u32 %v1928, 7
    %v1930 = vsub.s32 %v1440, %v1929
    %v1931 = vrot.slane %v1182, %v1930
    %v1932 = vsel %vm1445, %v1931, %v1927
    %v1933 = vlaneseq
    %v1934 = vshrl.u32 %v1933, 7
    %v1935 = vsub.s32 %v1447, %v1934
    %v1936 = vrot.slane %v1185, %v1935
    %v1937 = vsel %vm1452, %v1936, %v1932
    %v1938 = vlaneseq
    %v1939 = vshrl.u32 %v1938, 7
    %v1940 = vsub.s32 %v1454, %v1939
    %v1941 = vrot.slane %v1188, %v1940
    %v1942 = vsel %vm1459, %v1941, %v1937
    %v1943 = vlaneseq
    %v1944 = vshrl.u32 %v1943, 7
    %v1945 = vsub.s32 %v1461, %v1944
    %v1946 = vrot.slane %v1191, %v1945
    %v1947 = vsel %vm1466, %v1946, %v1942
    %v1948 = vlaneseq
    %v1949 = vshrl.u32 %v1948, 7
    %v1950 = vsub.s32 %v1468, %v1949
    %v1951 = vrot.slane %v1194, %v1950
    %v1952 = vsel %vm1473, %v1951, %v1947
    %v1953 = vlaneseq
    %v1954 = vshrl.u32 %v1953, 7
    %v1955 = vsub.s32 %v1475, %v1954
    %v1956 = vrot.slane %v1197, %v1955
    %v1957 = vsel %vm1480, %v1956, %v1952
    %v1958 = vlaneseq
    %v1959 = vshrl.u32 %v1958, 7
    %v1960 = vsub.s32 %v1482, %v1959
    %v1961 = vrot.slane %v1200, %v1960
    %v1962 = vsel %vm1487, %v1961, %v1957
    %v1963 = vlaneseq
    %v1964 = vshrl.u32 %v1963, 7
    %v1965 = vsub.s32 %v1379, %v1964
    %v1966 = vrot.slane %v1203, %v1965
    %v1967 = vlaneseq
    %v1968 = vshrl.u32 %v1967, 7
    %v1969 = vsub.s32 %v1384, %v1968
    %v1970 = vrot.slane %v1206, %v1969
    %v1971 = vsel %vm1389, %v1970, %v1966
    %v1972 = vlaneseq
    %v1973 = vshrl.u32 %v1972, 7
    %v1974 = vsub.s32 %v1391, %v1973
    %v1975 = vrot.slane %v1209, %v1974
    %v1976 = vsel %vm1396, %v1975, %v1971
    %v1977 = vlaneseq
    %v1978 = vshrl.u32 %v1977, 7
    %v1979 = vsub.s32 %v1398, %v1978
    %v1980 = vrot.slane %v1212, %v1979
    %v1981 = vsel %vm1403, %v1980, %v1976
    %v1982 = vlaneseq
    %v1983 = vshrl.u32 %v1982, 7
    %v1984 = vsub.s32 %v1405, %v1983
    %v1985 = vrot.slane %v1215, %v1984
    %v1986 = vsel %vm1410, %v1985, %v1981
    %v1987 = vlaneseq
    %v1988 = vshrl.u32 %v1987, 7
    %v1989 = vsub.s32 %v1412, %v1988
    %v1990 = vrot.slane %v1218, %v1989
    %v1991 = vsel %vm1417, %v1990, %v1986
    %v1992 = vlaneseq
    %v1993 = vshrl.u32 %v1992, 7
    %v1994 = vsub.s32 %v1419, %v1993
    %v1995 = vrot.slane %v1221, %v1994
    %v1996 = vsel %vm1424, %v1995, %v1991
    %v1997 = vlaneseq
    %v1998 = vshrl.u32 %v1997, 7
    %v1999 = vsub.s32 %v1426, %v1998
    %v2000 = vrot.slane %v1224, %v1999
    %v2001 = vsel %vm1431, %v2000, %v1996
    %v2002 = vlaneseq
    %v2003 = vshrl.u32 %v2002, 7
    %v2004 = vsub.s32 %v1433, %v2003
    %v2005 = vrot.slane %v1227, %v2004
    %v2006 = vsel %vm1438, %v2005, %v2001
    %v2007 = vlaneseq
    %v2008 = vshrl.u32 %v2007, 7
    %v2009 = vsub.s32 %v1440, %v2008
    %v2010 = vrot.slane %v1230, %v2009
    %v2011 = vsel %vm1445, %v2010, %v2006
    %v2012 = vlaneseq
    %v2013 = vshrl.u32 %v2012, 7
    %v2014 = vsub.s32 %v1447, %v2013
    %v2015 = vrot.slane %v1233, %v2014
    %v2016 = vsel %vm1452, %v2015, %v2011
    %v2017 = vlaneseq
    %v2018 = vshrl.u32 %v2017, 7
    %v2019 = vsub.s32 %v1454, %v2018
    %v2020 = vrot.slane %v1236, %v2019
    %v2021 = vsel %vm1459, %v2020, %v2016
    %v2022 = vlaneseq
    %v2023 = vshrl.u32 %v2022, 7
    %v2024 = vsub.s32 %v1461, %v2023
    %v2025 = vrot.slane %v1239, %v2024
    %v2026 = vsel %vm1466, %v2025, %v2021
    %v2027 = vlaneseq
    %v2028 = vshrl.u32 %v2027, 7
    %v2029 = vsub.s32 %v1468, %v2028
    %v2030 = vrot.slane %v1242, %v2029
    %v2031 = vsel %vm1473, %v2030, %v2026
    %v2032 = vlaneseq
    %v2033 = vshrl.u32 %v2032, 7
    %v2034 = vsub.s32 %v1475, %v2033
    %v2035 = vrot.slane %v1245, %v2034
    %v2036 = vsel %vm1480, %v2035, %v2031
    %v2037 = vlaneseq
    %v2038 = vshrl.u32 %v2037, 7
    %v2039 = vsub.s32 %v1482, %v2038
    %v2040 = vrot.slane %v1248, %v2039
    %v2041 = vsel %vm1487, %v2040, %v2036
    %vm2042 = vcmask 1041409
    %v2043 = vsel %vm2042, %v1567, %v1488
    %vm2044 = vcmask 1042434
    %v2045 = vsel %vm2044, %v1646, %v2043
    %vm2046 = vcmask 1043459
    %v2047 = vsel %vm2046, %v1725, %v2045
    %vm2048 = vcmask 1044484
    %v2049 = vsel %vm2048, %v1804, %v2047
    %vm2050 = vcmask 1045509
    %v2051 = vsel %vm2050, %v1883, %v2049
    %vm2052 = vcmask 1046534
    %v2053 = vsel %vm2052, %v1962, %v2051
    %vm2054 = vcmask 1047559
    %v2055 = vsel %vm2054, %v2041, %v2053
    %v2057 = vsel %vm1249, -1e+10, %v2055
    %2058 = vmax.xlane.f32.xlu0 %v2057
    %v2059 = vpop.xlane.xlu0 %2058
    %v2060 = vsub.f32 %v2057, %v2059
    %v2061 = vmul.f32 %v2060, 1.442695
    %v2062 = vpow.pop %v2061
    %2063 = vadd.xlane.f32.xlu0 %v2062
    %v2064 = vpop.xlane.xlu0 %2063
    %v2065 = vrcp.pop %v2064
    %v2066 = vmul.f32 %v2062, %v2065
    %2067 = vst [vmem:[#allocation6] sm:$0xff] %v2066
    %v2069 = vcombine.high %v2066, %v2066
    %v2071 = vunpack.c.l.s4 1966171168
    %v2072 = vunpack.c.0.s8 %v2071
    %v2073 = vlaneseq
    %v2074 = vshrl.u32 %v2073, 7
    %v2075 = vsub.s32 %v2072, %v2074
    %v2076 = vrot.slane %v2066, %v2075
    %v2078 = vunpack.c.l.s4 1966171168
    %v2079 = vunpack.c.0.s8 %v2078
    %v2080 = vlaneseq
    %v2081 = vshrl.u32 %v2080, 7
    %v2082 = vsub.s32 %v2079, %v2081
    %v2083 = vrot.slane %v2069, %v2082
    %v2084 = vcombine.high %v2076, %v2076
    %v2085 = vcombine.high %v2083, %v2083
    %v2087 = vunpack.c.l.s4 1966171168
    %v2088 = vunpack.c.0.s8 %v2087
    %v2089 = vlaneseq
    %v2090 = vshrl.u32 %v2089, 7
    %v2091 = vsub.s32 %v2088, %v2090
    %v2092 = vrot.slane %v2076, %v2091
    %v2094 = vunpack.c.l.s4 1966171168
    %v2095 = vunpack.c.0.s8 %v2094
    %v2096 = vlaneseq
    %v2097 = vshrl.u32 %v2096, 7
    %v2098 = vsub.s32 %v2095, %v2097
    %v2099 = vrot.slane %v2083, %v2098
    %v2101 = vunpack.c.l.s4 1966171168
    %v2102 = vunpack.c.0.s8 %v2101
    %v2103 = vlaneseq
    %v2104 = vshrl.u32 %v2103, 7
    %v2105 = vsub.s32 %v2102, %v2104
    %v2106 = vrot.slane %v2084, %v2105
    %v2108 = vunpack.c.l.s4 1966171168
    %v2109 = vunpack.c.0.s8 %v2108
    %v2110 = vlaneseq
    %v2111 = vshrl.u32 %v2110, 7
    %v2112 = vsub.s32 %v2109, %v2111
    %v2113 = vrot.slane %v2085, %v2112
    %v2114 = vcombine.high %v2092, %v2092
    %v2115 = vcombine.high %v2099, %v2099
    %v2116 = vcombine.high %v2106, %v2106
    %v2117 = vcombine.high %v2113, %v2113
    %v2126 = vpack.c.bf16 %v2092, %v2092
    %v2127 = vpack.c.bf16 %v2106, %v2106
    %v2128 = vpack.c.bf16 %v2114, %v2114
    %v2129 = vpack.c.bf16 %v2116, %v2116
    %v2130 = vpack.c.bf16 %v2099, %v2099
    %v2131 = vpack.c.bf16 %v2113, %v2113
    %v2132 = vpack.c.bf16 %v2115, %v2115
    %v2133 = vpack.c.bf16 %v2117, %v2117
    %v2134 = vld [vmem:[%s2] sm:$0xf]
    %v2135 = vld [vmem:[%s2 + $0x4] sm:$0xf]
    %v2136 = vld [vmem:[%s2 + $0x8] sm:$0xf]
    %v2137 = vld [vmem:[%s2 + $0xc] sm:$0xf]
    %v2138 = vld [vmem:[%s2 + $0x10] sm:$0xf]
    %v2139 = vld [vmem:[%s2 + $0x14] sm:$0xf]
    %v2140 = vld [vmem:[%s2 + $0x18] sm:$0xf]
    %v2141 = vld [vmem:[%s2 + $0x1c] sm:$0xf]
    %v2142 = vld [vmem:[%s2 + $0x20] sm:$0xf]
    %v2143 = vld [vmem:[%s2 + $0x24] sm:$0xf]
    %v2144 = vld [vmem:[%s2 + $0x28] sm:$0xf]
    %v2145 = vld [vmem:[%s2 + $0x2c] sm:$0xf]
    %v2146 = vld [vmem:[%s2 + $0x30] sm:$0xf]
    %v2147 = vld [vmem:[%s2 + $0x34] sm:$0xf]
    %v2148 = vld [vmem:[%s2 + $0x38] sm:$0xf]
    %v2149 = vld [vmem:[%s2 + $0x3c] sm:$0xf]
    %v2150 = vld [vmem:[%s2 + $0x40] sm:$0xf]
    %v2151 = vld [vmem:[%s2 + $0x44] sm:$0xf]
    %v2152 = vld [vmem:[%s2 + $0x48] sm:$0xf]
    %v2153 = vld [vmem:[%s2 + $0x4c] sm:$0xf]
    %v2154 = vld [vmem:[%s2 + $0x50] sm:$0xf]
    %v2155 = vld [vmem:[%s2 + $0x54] sm:$0xf]
    %v2156 = vld [vmem:[%s2 + $0x58] sm:$0xf]
    %v2157 = vld [vmem:[%s2 + $0x5c] sm:$0xf]
    %v2158 = vld [vmem:[%s2 + $0x60] sm:$0xf]
    %v2159 = vld [vmem:[%s2 + $0x64] sm:$0xf]
    %v2160 = vld [vmem:[%s2 + $0x68] sm:$0xf]
    %v2161 = vld [vmem:[%s2 + $0x6c] sm:$0xf]
    %v2162 = vld [vmem:[%s2 + $0x70] sm:$0xf]
    %v2163 = vld [vmem:[%s2 + $0x74] sm:$0xf]
    %v2164 = vld [vmem:[%s2 + $0x78] sm:$0xf]
    %v2165 = vld [vmem:[%s2 + $0x7c] sm:$0xf]
    %v2166 = vld [vmem:[%s2 + $0x80] sm:$0xf]
    %v2167 = vld [vmem:[%s2 + $0x84] sm:$0xf]
    %v2168 = vld [vmem:[%s2 + $0x88] sm:$0xf]
    %v2169 = vld [vmem:[%s2 + $0x8c] sm:$0xf]
    %v2170 = vld [vmem:[%s2 + $0x90] sm:$0xf]
    %v2171 = vld [vmem:[%s2 + $0x94] sm:$0xf]
    %v2172 = vld [vmem:[%s2 + $0x98] sm:$0xf]
    %v2173 = vld [vmem:[%s2 + $0x9c] sm:$0xf]
    %v2174 = vld [vmem:[%s2 + $0xa0] sm:$0xf]
    %v2175 = vld [vmem:[%s2 + $0xa4] sm:$0xf]
    %v2176 = vld [vmem:[%s2 + $0xa8] sm:$0xf]
    %v2177 = vld [vmem:[%s2 + $0xac] sm:$0xf]
    %v2178 = vld [vmem:[%s2 + $0xb0] sm:$0xf]
    %v2179 = vld [vmem:[%s2 + $0xb4] sm:$0xf]
    %v2180 = vld [vmem:[%s2 + $0xb8] sm:$0xf]
    %v2181 = vld [vmem:[%s2 + $0xbc] sm:$0xf]
    %v2182 = vld [vmem:[%s2 + $0xc0] sm:$0xf]
    %v2183 = vld [vmem:[%s2 + $0xc4] sm:$0xf]
    %v2184 = vld [vmem:[%s2 + $0xc8] sm:$0xf]
    %v2185 = vld [vmem:[%s2 + $0xcc] sm:$0xf]
    %v2186 = vld [vmem:[%s2 + $0xd0] sm:$0xf]
    %v2187 = vld [vmem:[%s2 + $0xd4] sm:$0xf]
    %v2188 = vld [vmem:[%s2 + $0xd8] sm:$0xf]
    %v2189 = vld [vmem:[%s2 + $0xdc] sm:$0xf]
    %v2190 = vld [vmem:[%s2 + $0xe0] sm:$0xf]
    %v2191 = vld [vmem:[%s2 + $0xe4] sm:$0xf]
    %v2192 = vld [vmem:[%s2 + $0xe8] sm:$0xf]
    %v2193 = vld [vmem:[%s2 + $0xec] sm:$0xf]
    %v2194 = vld [vmem:[%s2 + $0xf0] sm:$0xf]
    %v2195 = vld [vmem:[%s2 + $0xf4] sm:$0xf]
    %v2196 = vld [vmem:[%s2 + $0xf8] sm:$0xf]
    %v2197 = vld [vmem:[%s2 + $0xfc] sm:$0xf]
    %v2198 = vld [vmem:[%s2 + $0x100] sm:$0xf]
    %v2199 = vld [vmem:[%s2 + $0x104] sm:$0xf]
    %v2200 = vld [vmem:[%s2 + $0x108] sm:$0xf]
    %v2201 = vld [vmem:[%s2 + $0x10c] sm:$0xf]
    %v2202 = vld [vmem:[%s2 + $0x110] sm:$0xf]
    %v2203 = vld [vmem:[%s2 + $0x114] sm:$0xf]
    %v2204 = vld [vmem:[%s2 + $0x118] sm:$0xf]
    %v2205 = vld [vmem:[%s2 + $0x11c] sm:$0xf]
    %v2206 = vld [vmem:[%s2 + $0x120] sm:$0xf]
    %v2207 = vld [vmem:[%s2 + $0x124] sm:$0xf]
    %v2208 = vld [vmem:[%s2 + $0x128] sm:$0xf]
    %v2209 = vld [vmem:[%s2 + $0x12c] sm:$0xf]
    %v2210 = vld [vmem:[%s2 + $0x130] sm:$0xf]
    %v2211 = vld [vmem:[%s2 + $0x134] sm:$0xf]
    %v2212 = vld [vmem:[%s2 + $0x138] sm:$0xf]
    %v2213 = vld [vmem:[%s2 + $0x13c] sm:$0xf]
    %v2214 = vld [vmem:[%s2 + $0x140] sm:$0xf]
    %v2215 = vld [vmem:[%s2 + $0x144] sm:$0xf]
    %v2216 = vld [vmem:[%s2 + $0x148] sm:$0xf]
    %v2217 = vld [vmem:[%s2 + $0x14c] sm:$0xf]
    %v2218 = vld [vmem:[%s2 + $0x150] sm:$0xf]
    %v2219 = vld [vmem:[%s2 + $0x154] sm:$0xf]
    %v2220 = vld [vmem:[%s2 + $0x158] sm:$0xf]
    %v2221 = vld [vmem:[%s2 + $0x15c] sm:$0xf]
    %v2222 = vld [vmem:[%s2 + $0x160] sm:$0xf]
    %v2223 = vld [vmem:[%s2 + $0x164] sm:$0xf]
    %v2224 = vld [vmem:[%s2 + $0x168] sm:$0xf]
    %v2225 = vld [vmem:[%s2 + $0x16c] sm:$0xf]
    %v2226 = vld [vmem:[%s2 + $0x170] sm:$0xf]
    %v2227 = vld [vmem:[%s2 + $0x174] sm:$0xf]
    %v2228 = vld [vmem:[%s2 + $0x178] sm:$0xf]
    %v2229 = vld [vmem:[%s2 + $0x17c] sm:$0xf]
    %v2230 = vld [vmem:[%s2 + $0x180] sm:$0xf]
    %v2231 = vld [vmem:[%s2 + $0x184] sm:$0xf]
    %v2232 = vld [vmem:[%s2 + $0x188] sm:$0xf]
    %v2233 = vld [vmem:[%s2 + $0x18c] sm:$0xf]
    %v2234 = vld [vmem:[%s2 + $0x190] sm:$0xf]
    %v2235 = vld [vmem:[%s2 + $0x194] sm:$0xf]
    %v2236 = vld [vmem:[%s2 + $0x198] sm:$0xf]
    %v2237 = vld [vmem:[%s2 + $0x19c] sm:$0xf]
    %v2238 = vld [vmem:[%s2 + $0x1a0] sm:$0xf]
    %v2239 = vld [vmem:[%s2 + $0x1a4] sm:$0xf]
    %v2240 = vld [vmem:[%s2 + $0x1a8] sm:$0xf]
    %v2241 = vld [vmem:[%s2 + $0x1ac] sm:$0xf]
    %v2242 = vld [vmem:[%s2 + $0x1b0] sm:$0xf]
    %v2243 = vld [vmem:[%s2 + $0x1b4] sm:$0xf]
    %v2244 = vld [vmem:[%s2 + $0x1b8] sm:$0xf]
    %v2245 = vld [vmem:[%s2 + $0x1bc] sm:$0xf]
    %v2246 = vld [vmem:[%s2 + $0x1c0] sm:$0xf]
    %v2247 = vld [vmem:[%s2 + $0x1c4] sm:$0xf]
    %v2248 = vld [vmem:[%s2 + $0x1c8] sm:$0xf]
    %v2249 = vld [vmem:[%s2 + $0x1cc] sm:$0xf]
    %v2250 = vld [vmem:[%s2 + $0x1d0] sm:$0xf]
    %v2251 = vld [vmem:[%s2 + $0x1d4] sm:$0xf]
    %v2252 = vld [vmem:[%s2 + $0x1d8] sm:$0xf]
    %v2253 = vld [vmem:[%s2 + $0x1dc] sm:$0xf]
    %v2254 = vld [vmem:[%s2 + $0x1e0] sm:$0xf]
    %v2255 = vld [vmem:[%s2 + $0x1e4] sm:$0xf]
    %v2256 = vld [vmem:[%s2 + $0x1e8] sm:$0xf]
    %v2257 = vld [vmem:[%s2 + $0x1ec] sm:$0xf]
    %v2258 = vld [vmem:[%s2 + $0x1f0] sm:$0xf]
    %v2259 = vld [vmem:[%s2 + $0x1f4] sm:$0xf]
    %v2260 = vld [vmem:[%s2 + $0x1f8] sm:$0xf]
    %v2261 = vld [vmem:[%s2 + $0x1fc] sm:$0xf]
    %v2278 = vunpack.c.l.b16 %v2134
    %v2279 = vunpack.c.l.b16 %v2135
    %v2280 = vunpack.c.l.b16 %v2136
    %v2281 = vunpack.c.l.b16 %v2137
    %v2282 = vunpack.c.l.b16 %v2138
    %v2283 = vunpack.c.l.b16 %v2139
    %v2284 = vunpack.c.l.b16 %v2140
    %v2285 = vunpack.c.l.b16 %v2141
    %v2286 = vunpack.c.l.b16 %v2142
    %v2287 = vunpack.c.l.b16 %v2143
    %v2288 = vunpack.c.l.b16 %v2144
    %v2289 = vunpack.c.l.b16 %v2145
    %v2290 = vunpack.c.l.b16 %v2146
    %v2291 = vunpack.c.l.b16 %v2147
    %v2292 = vunpack.c.l.b16 %v2148
    %v2293 = vunpack.c.l.b16 %v2149
    %v2294 = vpack.c.b16 %v2279, %v2278
    %v2295 = vpack.c.b16 %v2281, %v2280
    %v2296 = vpack.c.b16 %v2283, %v2282
    %v2297 = vpack.c.b16 %v2285, %v2284
    %v2298 = vpack.c.b16 %v2287, %v2286
    %v2299 = vpack.c.b16 %v2289, %v2288
    %v2300 = vpack.c.b16 %v2291, %v2290
    %v2301 = vpack.c.b16 %v2293, %v2292
    %2310 = vmatprep.subr.bf16.mxu0 0
    %2311 = vmatpush1.bf16.msra.mxu0 %v2294
    %2312 = vmatprep.subr.bf16.mxu0 0
    %2313 = vmatpush1.bf16.msra.mxu0 %v2295
    %2314 = vmatprep.subr.bf16.mxu0 0
    %2315 = vmatpush1.bf16.msra.mxu0 %v2296
    %2316 = vmatprep.subr.bf16.mxu0 0
    %2317 = vmatpush1.bf16.msra.mxu0 %v2297
    %2318 = vmatprep.subr.bf16.mxu0 0
    %2319 = vmatpush1.bf16.msra.mxu0 %v2298
    %2320 = vmatprep.subr.bf16.mxu0 0
    %2321 = vmatpush1.bf16.msra.mxu0 %v2299
    %2322 = vmatprep.subr.bf16.mxu0 0
    %2323 = vmatpush1.bf16.msra.mxu0 %v2300
    %2324 = vmatprep.subr.bf16.mxu0 0
    %2325 = vmatpush1.bf16.msra.mxu0 %v2301
    %2326 = vmatprep.subr.bf16.mxu0 0
    %2327 = vmatpush1.bf16.msra.mxu0 0
    %2328 = vmatprep.subr.bf16.mxu0 0
    %2329 = vmatpush1.bf16.msra.mxu0 0
    %2330 = vmatprep.subr.bf16.mxu0 0
    %2331 = vmatpush1.bf16.msra.mxu0 0
    %2332 = vmatprep.subr.bf16.mxu0 0
    %2333 = vmatpush1.bf16.msra.mxu0 0
    %2334 = vmatprep.subr.bf16.mxu0 0
    %2335 = vmatpush1.bf16.msra.mxu0 0
    %2336 = vmatprep.subr.bf16.mxu0 0
    %2337 = vmatpush1.bf16.msra.mxu0 0
    %2338 = vmatprep.subr.bf16.mxu0 0
    %2339 = vmatpush1.bf16.msra.mxu0 0
    %2340 = vmatprep.subr.bf16.mxu0 0
    %2341 = vmatpush1.bf16.msra.mxu0 0
    %2342 = vmatprep.mubr.bf16.mxu0 0
    %2343 = vmatmul.mubr.bf16.gmra.mrb[0].mxu0 %v2126
    %v2344 = vpop.f32.mrb[0].mxu0
    %v2345 = vadd.f32 0.0, %v2344
    %v2346 = vpop.f32.mrb[0].mxu0
    %v2347 = vpop.f32.mrb[0].mxu0
    %v2348 = vpop.f32.mrb[0].mxu0
    %2349 = vdwg.mxu0
    %v2366 = vunpack.c.l.b16 %v2150
    %v2367 = vunpack.c.l.b16 %v2151
    %v2368 = vunpack.c.l.b16 %v2152
    %v2369 = vunpack.c.l.b16 %v2153
    %v2370 = vunpack.c.l.b16 %v2154
    %v2371 = vunpack.c.l.b16 %v2155
    %v2372 = vunpack.c.l.b16 %v2156
    %v2373 = vunpack.c.l.b16 %v2157
    %v2374 = vunpack.c.l.b16 %v2158
    %v2375 = vunpack.c.l.b16 %v2159
    %v2376 = vunpack.c.l.b16 %v2160
    %v2377 = vunpack.c.l.b16 %v2161
    %v2378 = vunpack.c.l.b16 %v2162
    %v2379 = vunpack.c.l.b16 %v2163
    %v2380 = vunpack.c.l.b16 %v2164
    %v2381 = vunpack.c.l.b16 %v2165
    %v2382 = vpack.c.b16 %v2367, %v2366
    %v2383 = vpack.c.b16 %v2369, %v2368
    %v2384 = vpack.c.b16 %v2371, %v2370
    %v2385 = vpack.c.b16 %v2373, %v2372
    %v2386 = vpack.c.b16 %v2375, %v2374
    %v2387 = vpack.c.b16 %v2377, %v2376
    %v2388 = vpack.c.b16 %v2379, %v2378
    %v2389 = vpack.c.b16 %v2381, %v2380
    %2398 = vmatprep.subr.bf16.mxu0 0
    %2399 = vmatpush1.bf16.msra.mxu0 %v2382
    %2400 = vmatprep.subr.bf16.mxu0 0
    %2401 = vmatpush1.bf16.msra.mxu0 %v2383
    %2402 = vmatprep.subr.bf16.mxu0 0
    %2403 = vmatpush1.bf16.msra.mxu0 %v2384
    %2404 = vmatprep.subr.bf16.mxu0 0
    %2405 = vmatpush1.bf16.msra.mxu0 %v2385
    %2406 = vmatprep.subr.bf16.mxu0 0
    %2407 = vmatpush1.bf16.msra.mxu0 %v2386
    %2408 = vmatprep.subr.bf16.mxu0 0
    %2409 = vmatpush1.bf16.msra.mxu0 %v2387
    %2410 = vmatprep.subr.bf16.mxu0 0
    %2411 = vmatpush1.bf16.msra.mxu0 %v2388
    %2412 = vmatprep.subr.bf16.mxu0 0
    %2413 = vmatpush1.bf16.msra.mxu0 %v2389
    %2414 = vmatprep.subr.bf16.mxu0 0
    %2415 = vmatpush1.bf16.msra.mxu0 0
    %2416 = vmatprep.subr.bf16.mxu0 0
    %2417 = vmatpush1.bf16.msra.mxu0 0
    %2418 = vmatprep.subr.bf16.mxu0 0
    %2419 = vmatpush1.bf16.msra.mxu0 0
    %2420 = vmatprep.subr.bf16.mxu0 0
    %2421 = vmatpush1.bf16.msra.mxu0 0
    %2422 = vmatprep.subr.bf16.mxu0 0
    %2423 = vmatpush1.bf16.msra.mxu0 0
    %2424 = vmatprep.subr.bf16.mxu0 0
    %2425 = vmatpush1.bf16.msra.mxu0 0
    %2426 = vmatprep.subr.bf16.mxu0 0
    %2427 = vmatpush1.bf16.msra.mxu0 0
    %2428 = vmatprep.subr.bf16.mxu0 0
    %2429 = vmatpush1.bf16.msra.mxu0 0
    %2430 = vmatprep.mubr.bf16.mxu0 0
    %2431 = vmatmul.mubr.bf16.gmra.mrb[0].mxu0 %v2127
    %v2432 = vpop.f32.mrb[0].mxu0
    %v2433 = vadd.f32 0.0, %v2432
    %v2434 = vpop.f32.mrb[0].mxu0
    %v2435 = vpop.f32.mrb[0].mxu0
    %v2436 = vpop.f32.mrb[0].mxu0
    %2437 = vdwg.mxu0
    %v2454 = vunpack.c.l.b16 %v2166
    %v2455 = vunpack.c.l.b16 %v2167
    %v2456 = vunpack.c.l.b16 %v2168
    %v2457 = vunpack.c.l.b16 %v2169
    %v2458 = vunpack.c.l.b16 %v2170
    %v2459 = vunpack.c.l.b16 %v2171
    %v2460 = vunpack.c.l.b16 %v2172
    %v2461 = vunpack.c.l.b16 %v2173
    %v2462 = vunpack.c.l.b16 %v2174
    %v2463 = vunpack.c.l.b16 %v2175
    %v2464 = vunpack.c.l.b16 %v2176
    %v2465 = vunpack.c.l.b16 %v2177
    %v2466 = vunpack.c.l.b16 %v2178
    %v2467 = vunpack.c.l.b16 %v2179
    %v2468 = vunpack.c.l.b16 %v2180
    %v2469 = vunpack.c.l.b16 %v2181
    %v2470 = vpack.c.b16 %v2455, %v2454
    %v2471 = vpack.c.b16 %v2457, %v2456
    %v2472 = vpack.c.b16 %v2459, %v2458
    %v2473 = vpack.c.b16 %v2461, %v2460
    %v2474 = vpack.c.b16 %v2463, %v2462
    %v2475 = vpack.c.b16 %v2465, %v2464
    %v2476 = vpack.c.b16 %v2467, %v2466
    %v2477 = vpack.c.b16 %v2469, %v2468
    %2486 = vmatprep.subr.bf16.mxu0 0
    %2487 = vmatpush1.bf16.msra.mxu0 %v2470
    %2488 = vmatprep.subr.bf16.mxu0 0
    %2489 = vmatpush1.bf16.msra.mxu0 %v2471
    %2490 = vmatprep.subr.bf16.mxu0 0
    %2491 = vmatpush1.bf16.msra.mxu0 %v2472
    %2492 = vmatprep.subr.bf16.mxu0 0
    %2493 = vmatpush1.bf16.msra.mxu0 %v2473
    %2494 = vmatprep.subr.bf16.mxu0 0
    %2495 = vmatpush1.bf16.msra.mxu0 %v2474
    %2496 = vmatprep.subr.bf16.mxu0 0
    %2497 = vmatpush1.bf16.msra.mxu0 %v2475
    %2498 = vmatprep.subr.bf16.mxu0 0
    %2499 = vmatpush1.bf16.msra.mxu0 %v2476
    %2500 = vmatprep.subr.bf16.mxu0 0
    %2501 = vmatpush1.bf16.msra.mxu0 %v2477
    %2502 = vmatprep.subr.bf16.mxu0 0
    %2503 = vmatpush1.bf16.msra.mxu0 0
    %2504 = vmatprep.subr.bf16.mxu0 0
    %2505 = vmatpush1.bf16.msra.mxu0 0
    %2506 = vmatprep.subr.bf16.mxu0 0
    %2507 = vmatpush1.bf16.msra.mxu0 0
    %2508 = vmatprep.subr.bf16.mxu0 0
    %2509 = vmatpush1.bf16.msra.mxu0 0
    %2510 = vmatprep.subr.bf16.mxu0 0
    %2511 = vmatpush1.bf16.msra.mxu0 0
    %2512 = vmatprep.subr.bf16.mxu0 0
    %2513 = vmatpush1.bf16.msra.mxu0 0
    %2514 = vmatprep.subr.bf16.mxu0 0
    %2515 = vmatpush1.bf16.msra.mxu0 0
    %2516 = vmatprep.subr.bf16.mxu0 0
    %2517 = vmatpush1.bf16.msra.mxu0 0
    %2518 = vmatprep.mubr.bf16.mxu0 0
    %2519 = vmatmul.mubr.bf16.gmra.mrb[0].mxu0 %v2128
    %v2520 = vpop.f32.mrb[0].mxu0
    %v2521 = vadd.f32 0.0, %v2520
    %v2522 = vpop.f32.mrb[0].mxu0
    %v2523 = vpop.f32.mrb[0].mxu0
    %v2524 = vpop.f32.mrb[0].mxu0
    %2525 = vdwg.mxu0
    %v2542 = vunpack.c.l.b16 %v2182
    %v2543 = vunpack.c.l.b16 %v2183
    %v2544 = vunpack.c.l.b16 %v2184
    %v2545 = vunpack.c.l.b16 %v2185
    %v2546 = vunpack.c.l.b16 %v2186
    %v2547 = vunpack.c.l.b16 %v2187
    %v2548 = vunpack.c.l.b16 %v2188
    %v2549 = vunpack.c.l.b16 %v2189
    %v2550 = vunpack.c.l.b16 %v2190
    %v2551 = vunpack.c.l.b16 %v2191
    %v2552 = vunpack.c.l.b16 %v2192
    %v2553 = vunpack.c.l.b16 %v2193
    %v2554 = vunpack.c.l.b16 %v2194
    %v2555 = vunpack.c.l.b16 %v2195
    %v2556 = vunpack.c.l.b16 %v2196
    %v2557 = vunpack.c.l.b16 %v2197
    %v2558 = vpack.c.b16 %v2543, %v2542
    %v2559 = vpack.c.b16 %v2545, %v2544
    %v2560 = vpack.c.b16 %v2547, %v2546
    %v2561 = vpack.c.b16 %v2549, %v2548
    %v2562 = vpack.c.b16 %v2551, %v2550
    %v2563 = vpack.c.b16 %v2553, %v2552
    %v2564 = vpack.c.b16 %v2555, %v2554
    %v2565 = vpack.c.b16 %v2557, %v2556
    %2574 = vmatprep.subr.bf16.mxu0 0
    %2575 = vmatpush1.bf16.msra.mxu0 %v2558
    %2576 = vmatprep.subr.bf16.mxu0 0
    %2577 = vmatpush1.bf16.msra.mxu0 %v2559
    %2578 = vmatprep.subr.bf16.mxu0 0
    %2579 = vmatpush1.bf16.msra.mxu0 %v2560
    %2580 = vmatprep.subr.bf16.mxu0 0
    %2581 = vmatpush1.bf16.msra.mxu0 %v2561
    %2582 = vmatprep.subr.bf16.mxu0 0
    %2583 = vmatpush1.bf16.msra.mxu0 %v2562
    %2584 = vmatprep.subr.bf16.mxu0 0
    %2585 = vmatpush1.bf16.msra.mxu0 %v2563
    %2586 = vmatprep.subr.bf16.mxu0 0
    %2587 = vmatpush1.bf16.msra.mxu0 %v2564
    %2588 = vmatprep.subr.bf16.mxu0 0
    %2589 = vmatpush1.bf16.msra.mxu0 %v2565
    %2590 = vmatprep.subr.bf16.mxu0 0
    %2591 = vmatpush1.bf16.msra.mxu0 0
    %2592 = vmatprep.subr.bf16.mxu0 0
    %2593 = vmatpush1.bf16.msra.mxu0 0
    %2594 = vmatprep.subr.bf16.mxu0 0
    %2595 = vmatpush1.bf16.msra.mxu0 0
    %2596 = vmatprep.subr.bf16.mxu0 0
    %2597 = vmatpush1.bf16.msra.mxu0 0
    %2598 = vmatprep.subr.bf16.mxu0 0
    %2599 = vmatpush1.bf16.msra.mxu0 0
    %2600 = vmatprep.subr.bf16.mxu0 0
    %2601 = vmatpush1.bf16.msra.mxu0 0
    %2602 = vmatprep.subr.bf16.mxu0 0
    %2603 = vmatpush1.bf16.msra.mxu0 0
    %2604 = vmatprep.subr.bf16.mxu0 0
    %2605 = vmatpush1.bf16.msra.mxu0 0
    %2606 = vmatprep.mubr.bf16.mxu0 0
    %2607 = vmatmul.mubr.bf16.gmra.mrb[0].mxu0 %v2129
    %v2608 = vpop.f32.mrb[0].mxu0
    %v2609 = vadd.f32 0.0, %v2608
    %v2610 = vpop.f32.mrb[0].mxu0
    %v2611 = vpop.f32.mrb[0].mxu0
    %v2612 = vpop.f32.mrb[0].mxu0
    %2613 = vdwg.mxu0
    %v2630 = vunpack.c.l.b16 %v2198
    %v2631 = vunpack.c.l.b16 %v2199
    %v2632 = vunpack.c.l.b16 %v2200
    %v2633 = vunpack.c.l.b16 %v2201
    %v2634 = vunpack.c.l.b16 %v2202
    %v2635 = vunpack.c.l.b16 %v2203
    %v2636 = vunpack.c.l.b16 %v2204
    %v2637 = vunpack.c.l.b16 %v2205
    %v2638 = vunpack.c.l.b16 %v2206
    %v2639 = vunpack.c.l.b16 %v2207
    %v2640 = vunpack.c.l.b16 %v2208
    %v2641 = vunpack.c.l.b16 %v2209
    %v2642 = vunpack.c.l.b16 %v2210
    %v2643 = vunpack.c.l.b16 %v2211
    %v2644 = vunpack.c.l.b16 %v2212
    %v2645 = vunpack.c.l.b16 %v2213
    %v2646 = vpack.c.b16 %v2631, %v2630
    %v2647 = vpack.c.b16 %v2633, %v2632
    %v2648 = vpack.c.b16 %v2635, %v2634
    %v2649 = vpack.c.b16 %v2637, %v2636
    %v2650 = vpack.c.b16 %v2639, %v2638
    %v2651 = vpack.c.b16 %v2641, %v2640
    %v2652 = vpack.c.b16 %v2643, %v2642
    %v2653 = vpack.c.b16 %v2645, %v2644
    %2662 = vmatprep.subr.bf16.mxu0 0
    %2663 = vmatpush1.bf16.msra.mxu0 %v2646
    %2664 = vmatprep.subr.bf16.mxu0 0
    %2665 = vmatpush1.bf16.msra.mxu0 %v2647
    %2666 = vmatprep.subr.bf16.mxu0 0
    %2667 = vmatpush1.bf16.msra.mxu0 %v2648
    %2668 = vmatprep.subr.bf16.mxu0 0
    %2669 = vmatpush1.bf16.msra.mxu0 %v2649
    %2670 = vmatprep.subr.bf16.mxu0 0
    %2671 = vmatpush1.bf16.msra.mxu0 %v2650
    %2672 = vmatprep.subr.bf16.mxu0 0
    %2673 = vmatpush1.bf16.msra.mxu0 %v2651
    %2674 = vmatprep.subr.bf16.mxu0 0
    %2675 = vmatpush1.bf16.msra.mxu0 %v2652
    %2676 = vmatprep.subr.bf16.mxu0 0
    %2677 = vmatpush1.bf16.msra.mxu0 %v2653
    %2678 = vmatprep.subr.bf16.mxu0 0
    %2679 = vmatpush1.bf16.msra.mxu0 0
    %2680 = vmatprep.subr.bf16.mxu0 0
    %2681 = vmatpush1.bf16.msra.mxu0 0
    %2682 = vmatprep.subr.bf16.mxu0 0
    %2683 = vmatpush1.bf16.msra.mxu0 0
    %2684 = vmatprep.subr.bf16.mxu0 0
    %2685 = vmatpush1.bf16.msra.mxu0 0
    %2686 = vmatprep.subr.bf16.mxu0 0
    %2687 = vmatpush1.bf16.msra.mxu0 0
    %2688 = vmatprep.subr.bf16.mxu0 0
    %2689 = vmatpush1.bf16.msra.mxu0 0
    %2690 = vmatprep.subr.bf16.mxu0 0
    %2691 = vmatpush1.bf16.msra.mxu0 0
    %2692 = vmatprep.subr.bf16.mxu0 0
    %2693 = vmatpush1.bf16.msra.mxu0 0
    %2694 = vmatprep.mubr.bf16.mxu0 0
    %2695 = vmatmul.mubr.bf16.gmra.mrb[0].mxu0 %v2130
    %v2696 = vpop.f32.mrb[0].mxu0
    %v2697 = vadd.f32 0.0, %v2696
    %v2698 = vpop.f32.mrb[0].mxu0
    %v2699 = vpop.f32.mrb[0].mxu0
    %v2700 = vpop.f32.mrb[0].mxu0
    %2701 = vdwg.mxu0
    %v2718 = vunpack.c.l.b16 %v2214
    %v2719 = vunpack.c.l.b16 %v2215
    %v2720 = vunpack.c.l.b16 %v2216
    %v2721 = vunpack.c.l.b16 %v2217
    %v2722 = vunpack.c.l.b16 %v2218
    %v2723 = vunpack.c.l.b16 %v2219
    %v2724 = vunpack.c.l.b16 %v2220
    %v2725 = vunpack.c.l.b16 %v2221
    %v2726 = vunpack.c.l.b16 %v2222
    %v2727 = vunpack.c.l.b16 %v2223
    %v2728 = vunpack.c.l.b16 %v2224
    %v2729 = vunpack.c.l.b16 %v2225
    %v2730 = vunpack.c.l.b16 %v2226
    %v2731 = vunpack.c.l.b16 %v2227
    %v2732 = vunpack.c.l.b16 %v2228
    %v2733 = vunpack.c.l.b16 %v2229
    %v2734 = vpack.c.b16 %v2719, %v2718
    %v2735 = vpack.c.b16 %v2721, %v2720
    %v2736 = vpack.c.b16 %v2723, %v2722
    %v2737 = vpack.c.b16 %v2725, %v2724
    %v2738 = vpack.c.b16 %v2727, %v2726
    %v2739 = vpack.c.b16 %v2729, %v2728
    %v2740 = vpack.c.b16 %v2731, %v2730
    %v2741 = vpack.c.b16 %v2733, %v2732
    %2750 = vmatprep.subr.bf16.mxu0 0
    %2751 = vmatpush1.bf16.msra.mxu0 %v2734
    %2752 = vmatprep.subr.bf16.mxu0 0
    %2753 = vmatpush1.bf16.msra.mxu0 %v2735
    %2754 = vmatprep.subr.bf16.mxu0 0
    %2755 = vmatpush1.bf16.msra.mxu0 %v2736
    %2756 = vmatprep.subr.bf16.mxu0 0
    %2757 = vmatpush1.bf16.msra.mxu0 %v2737
    %2758 = vmatprep.subr.bf16.mxu0 0
    %2759 = vmatpush1.bf16.msra.mxu0 %v2738
    %2760 = vmatprep.subr.bf16.mxu0 0
    %2761 = vmatpush1.bf16.msra.mxu0 %v2739
    %2762 = vmatprep.subr.bf16.mxu0 0
    %2763 = vmatpush1.bf16.msra.mxu0 %v2740
    %2764 = vmatprep.subr.bf16.mxu0 0
    %2765 = vmatpush1.bf16.msra.mxu0 %v2741
    %2766 = vmatprep.subr.bf16.mxu0 0
    %2767 = vmatpush1.bf16.msra.mxu0 0
    %2768 = vmatprep.subr.bf16.mxu0 0
    %2769 = vmatpush1.bf16.msra.mxu0 0
    %2770 = vmatprep.subr.bf16.mxu0 0
    %2771 = vmatpush1.bf16.msra.mxu0 0
    %2772 = vmatprep.subr.bf16.mxu0 0
    %2773 = vmatpush1.bf16.msra.mxu0 0
    %2774 = vmatprep.subr.bf16.mxu0 0
    %2775 = vmatpush1.bf16.msra.mxu0 0
    %2776 = vmatprep.subr.bf16.mxu0 0
    %2777 = vmatpush1.bf16.msra.mxu0 0
    %2778 = vmatprep.subr.bf16.mxu0 0
    %2779 = vmatpush1.bf16.msra.mxu0 0
    %2780 = vmatprep.subr.bf16.mxu0 0
    %2781 = vmatpush1.bf16.msra.mxu0 0
    %2782 = vmatprep.mubr.bf16.mxu0 0
    %2783 = vmatmul.mubr.bf16.gmra.mrb[0].mxu0 %v2131
    %v2784 = vpop.f32.mrb[0].mxu0
    %v2785 = vadd.f32 0.0, %v2784
    %v2786 = vpop.f32.mrb[0].mxu0
    %v2787 = vpop.f32.mrb[0].mxu0
    %v2788 = vpop.f32.mrb[0].mxu0
    %2789 = vdwg.mxu0
    %v2806 = vunpack.c.l.b16 %v2230
    %v2807 = vunpack.c.l.b16 %v2231
    %v2808 = vunpack.c.l.b16 %v2232
    %v2809 = vunpack.c.l.b16 %v2233
    %v2810 = vunpack.c.l.b16 %v2234
    %v2811 = vunpack.c.l.b16 %v2235
    %v2812 = vunpack.c.l.b16 %v2236
    %v2813 = vunpack.c.l.b16 %v2237
    %v2814 = vunpack.c.l.b16 %v2238
    %v2815 = vunpack.c.l.b16 %v2239
    %v2816 = vunpack.c.l.b16 %v2240
    %v2817 = vunpack.c.l.b16 %v2241
    %v2818 = vunpack.c.l.b16 %v2242
    %v2819 = vunpack.c.l.b16 %v2243
    %v2820 = vunpack.c.l.b16 %v2244
    %v2821 = vunpack.c.l.b16 %v2245
    %v2822 = vpack.c.b16 %v2807, %v2806
    %v2823 = vpack.c.b16 %v2809, %v2808
    %v2824 = vpack.c.b16 %v2811, %v2810
    %v2825 = vpack.c.b16 %v2813, %v2812
    %v2826 = vpack.c.b16 %v2815, %v2814
    %v2827 = vpack.c.b16 %v2817, %v2816
    %v2828 = vpack.c.b16 %v2819, %v2818
    %v2829 = vpack.c.b16 %v2821, %v2820
    %2838 = vmatprep.subr.bf16.mxu0 0
    %2839 = vmatpush1.bf16.msra.mxu0 %v2822
    %2840 = vmatprep.subr.bf16.mxu0 0
    %2841 = vmatpush1.bf16.msra.mxu0 %v2823
    %2842 = vmatprep.subr.bf16.mxu0 0
    %2843 = vmatpush1.bf16.msra.mxu0 %v2824
    %2844 = vmatprep.subr.bf16.mxu0 0
    %2845 = vmatpush1.bf16.msra.mxu0 %v2825
    %2846 = vmatprep.subr.bf16.mxu0 0
    %2847 = vmatpush1.bf16.msra.mxu0 %v2826
    %2848 = vmatprep.subr.bf16.mxu0 0
    %2849 = vmatpush1.bf16.msra.mxu0 %v2827
    %2850 = vmatprep.subr.bf16.mxu0 0
    %2851 = vmatpush1.bf16.msra.mxu0 %v2828
    %2852 = vmatprep.subr.bf16.mxu0 0
    %2853 = vmatpush1.bf16.msra.mxu0 %v2829
    %2854 = vmatprep.subr.bf16.mxu0 0
    %2855 = vmatpush1.bf16.msra.mxu0 0
    %2856 = vmatprep.subr.bf16.mxu0 0
    %2857 = vmatpush1.bf16.msra.mxu0 0
    %2858 = vmatprep.subr.bf16.mxu0 0
    %2859 = vmatpush1.bf16.msra.mxu0 0
    %2860 = vmatprep.subr.bf16.mxu0 0
    %2861 = vmatpush1.bf16.msra.mxu0 0
    %2862 = vmatprep.subr.bf16.mxu0 0
    %2863 = vmatpush1.bf16.msra.mxu0 0
    %2864 = vmatprep.subr.bf16.mxu0 0
    %2865 = vmatpush1.bf16.msra.mxu0 0
    %2866 = vmatprep.subr.bf16.mxu0 0
    %2867 = vmatpush1.bf16.msra.mxu0 0
    %2868 = vmatprep.subr.bf16.mxu0 0
    %2869 = vmatpush1.bf16.msra.mxu0 0
    %2870 = vmatprep.mubr.bf16.mxu0 0
    %2871 = vmatmul.mubr.bf16.gmra.mrb[0].mxu0 %v2132
    %v2872 = vpop.f32.mrb[0].mxu0
    %v2873 = vadd.f32 0.0, %v2872
    %v2874 = vpop.f32.mrb[0].mxu0
    %v2875 = vpop.f32.mrb[0].mxu0
    %v2876 = vpop.f32.mrb[0].mxu0
    %2877 = vdwg.mxu0
    %v2894 = vunpack.c.l.b16 %v2246
    %v2895 = vunpack.c.l.b16 %v2247
    %v2896 = vunpack.c.l.b16 %v2248
    %v2897 = vunpack.c.l.b16 %v2249
    %v2898 = vunpack.c.l.b16 %v2250
    %v2899 = vunpack.c.l.b16 %v2251
    %v2900 = vunpack.c.l.b16 %v2252
    %v2901 = vunpack.c.l.b16 %v2253
    %v2902 = vunpack.c.l.b16 %v2254
    %v2903 = vunpack.c.l.b16 %v2255
    %v2904 = vunpack.c.l.b16 %v2256
    %v2905 = vunpack.c.l.b16 %v2257
    %v2906 = vunpack.c.l.b16 %v2258
    %v2907 = vunpack.c.l.b16 %v2259
    %v2908 = vunpack.c.l.b16 %v2260
    %v2909 = vunpack.c.l.b16 %v2261
    %v2910 = vpack.c.b16 %v2895, %v2894
    %v2911 = vpack.c.b16 %v2897, %v2896
    %v2912 = vpack.c.b16 %v2899, %v2898
    %v2913 = vpack.c.b16 %v2901, %v2900
    %v2914 = vpack.c.b16 %v2903, %v2902
    %v2915 = vpack.c.b16 %v2905, %v2904
    %v2916 = vpack.c.b16 %v2907, %v2906
    %v2917 = vpack.c.b16 %v2909, %v2908
    %2926 = vmatprep.subr.bf16.mxu0 0
    %2927 = vmatpush1.bf16.msra.mxu0 %v2910
    %2928 = vmatprep.subr.bf16.mxu0 0
    %2929 = vmatpush1.bf16.msra.mxu0 %v2911
    %2930 = vmatprep.subr.bf16.mxu0 0
    %2931 = vmatpush1.bf16.msra.mxu0 %v2912
    %2932 = vmatprep.subr.bf16.mxu0 0
    %2933 = vmatpush1.bf16.msra.mxu0 %v2913
    %2934 = vmatprep.subr.bf16.mxu0 0
    %2935 = vmatpush1.bf16.msra.mxu0 %v2914
    %2936 = vmatprep.subr.bf16.mxu0 0
    %2937 = vmatpush1.bf16.msra.mxu0 %v2915
    %2938 = vmatprep.subr.bf16.mxu0 0
    %2939 = vmatpush1.bf16.msra.mxu0 %v2916
    %2940 = vmatprep.subr.bf16.mxu0 0
    %2941 = vmatpush1.bf16.msra.mxu0 %v2917
    %2942 = vmatprep.subr.bf16.mxu0 0
    %2943 = vmatpush1.bf16.msra.mxu0 0
    %2944 = vmatprep.subr.bf16.mxu0 0
    %2945 = vmatpush1.bf16.msra.mxu0 0
    %2946 = vmatprep.subr.bf16.mxu0 0
    %2947 = vmatpush1.bf16.msra.mxu0 0
    %2948 = vmatprep.subr.bf16.mxu0 0
    %2949 = vmatpush1.bf16.msra.mxu0 0
    %2950 = vmatprep.subr.bf16.mxu0 0
    %2951 = vmatpush1.bf16.msra.mxu0 0
    %2952 = vmatprep.subr.bf16.mxu0 0
    %2953 = vmatpush1.bf16.msra.mxu0 0
    %2954 = vmatprep.subr.bf16.mxu0 0
    %2955 = vmatpush1.bf16.msra.mxu0 0
    %2956 = vmatprep.subr.bf16.mxu0 0
    %2957 = vmatpush1.bf16.msra.mxu0 0
    %2958 = vmatprep.mubr.bf16.mxu0 0
    %2959 = vmatmul.mubr.bf16.gmra.mrb[0].mxu0 %v2133
    %v2960 = vpop.f32.mrb[0].mxu0
    %v2961 = vadd.f32 0.0, %v2960
    %v2962 = vpop.f32.mrb[0].mxu0
    %v2963 = vpop.f32.mrb[0].mxu0
    %v2964 = vpop.f32.mrb[0].mxu0
    %2965 = vdwg.mxu0
    %v2974 = vrot.slane %v2433, 7
    %v2975 = vsel %vm2042, %v2974, %v2345
    %v2976 = vrot.slane %v2521, 6
    %v2977 = vsel %vm2044, %v2976, %v2975
    %v2978 = vrot.slane %v2609, 5
    %v2979 = vsel %vm2046, %v2978, %v2977
    %v2980 = vrot.slane %v2697, 4
    %v2981 = vsel %vm2048, %v2980, %v2979
    %v2982 = vrot.slane %v2785, 3
    %v2983 = vsel %vm2050, %v2982, %v2981
    %v2984 = vrot.slane %v2873, 2
    %v2985 = vsel %vm2052, %v2984, %v2983
    %v2986 = vrot.slane %v2961, 1
    %v2987 = vsel %vm2054, %v2986, %v2985
    %2989 = vst.msk [vmem:[#allocation4] sm:$0xff] %vm77, %v2987
    %v2990 = vld [vmem:[%s8] sm:$0xf]
    %v2991 = vld [vmem:[%s8 + $0x4] sm:$0xf]
    %v2992 = vld [vmem:[%s8 + $0x8] sm:$0xf]
    %v2993 = vld [vmem:[%s8 + $0xc] sm:$0xf]
    %v2994 = vpack.c.bf16 %v2345, %v2345
    %v2995 = vpack.c.bf16 %v2433, %v2433
    %v2996 = vpack.c.bf16 %v2521, %v2521
    %v2997 = vpack.c.bf16 %v2609, %v2609
    %v2998 = vpack.c.bf16 %v2697, %v2697
    %v2999 = vpack.c.bf16 %v2785, %v2785
    %v3000 = vpack.c.bf16 %v2873, %v2873
    %v3001 = vpack.c.bf16 %v2961, %v2961
    %v3002 = vld [vmem:[%s9] sm:$0xf]
    %v3003 = vld [vmem:[%s9 + $0x4] sm:$0xf]
    %v3004 = vld [vmem:[%s9 + $0x8] sm:$0xf]
    %v3005 = vld [vmem:[%s9 + $0xc] sm:$0xf]
    %v3014 = vunpack.c.l.b16 %v2994
    %v3015 = vunpack.c.l.b16 %v2995
    %v3016 = vunpack.c.l.b16 %v2996
    %v3017 = vunpack.c.l.b16 %v2997
    %v3018 = vunpack.c.l.b16 %v2998
    %v3019 = vunpack.c.l.b16 %v2999
    %v3020 = vunpack.c.l.b16 %v3000
    %v3021 = vunpack.c.l.b16 %v3001
    %v3022 = vrot.slane %v3015, 7
    %v3023 = vsel %vm2042, %v3022, %v3014
    %v3024 = vrot.slane %v3016, 6
    %v3025 = vsel %vm2044, %v3024, %v3023
    %v3026 = vrot.slane %v3017, 5
    %v3027 = vsel %vm2046, %v3026, %v3025
    %v3028 = vrot.slane %v3018, 4
    %v3029 = vsel %vm2048, %v3028, %v3027
    %v3030 = vrot.slane %v3019, 3
    %v3031 = vsel %vm2050, %v3030, %v3029
    %v3032 = vrot.slane %v3020, 2
    %v3033 = vsel %vm2052, %v3032, %v3031
    %v3034 = vrot.slane %v3021, 1
    %v3035 = vsel %vm2054, %v3034, %v3033
    %v3036 = vpack.c.b16 %v3035, %v3035
    %v3041 = vunpack.c.l.b16 %v3002
    %v3042 = vunpack.c.l.b16 %v3003
    %v3043 = vunpack.c.l.b16 %v3004
    %v3044 = vunpack.c.l.b16 %v3005
    %v3045 = vpack.c.b16 %v3042, %v3041
    %v3046 = vpack.c.b16 %v3044, %v3043
    %v3050 = vsel %vm77, %v3036, 0
    %3052 = vmatprep.subr.bf16.mxu0 0
    %3053 = vmatpush1.bf16.msra.mxu0 %v3045
    %3054 = vmatprep.subr.bf16.mxu0 0
    %3055 = vmatpush1.bf16.msra.mxu0 %v3046
    %3056 = vmatprep.subr.bf16.mxu0 0
    %3057 = vmatpush1.bf16.msra.mxu0 0
    %3058 = vmatprep.subr.bf16.mxu0 0
    %3059 = vmatpush1.bf16.msra.mxu0 0
    %3060 = vmatprep.subr.bf16.mxu0 0
    %3061 = vmatpush1.bf16.msra.mxu0 0
    %3062 = vmatprep.subr.bf16.mxu0 0
    %3063 = vmatpush1.bf16.msra.mxu0 0
    %3064 = vmatprep.subr.bf16.mxu0 0
    %3065 = vmatpush1.bf16.msra.mxu0 0
    %3066 = vmatprep.subr.bf16.mxu0 0
    %3067 = vmatpush1.bf16.msra.mxu0 0
    %3068 = vmatprep.subr.bf16.mxu0 0
    %3069 = vmatpush1.bf16.msra.mxu0 0
    %3070 = vmatprep.subr.bf16.mxu0 0
    %3071 = vmatpush1.bf16.msra.mxu0 0
    %3072 = vmatprep.subr.bf16.mxu0 0
    %3073 = vmatpush1.bf16.msra.mxu0 0
    %3074 = vmatprep.subr.bf16.mxu0 0
    %3075 = vmatpush1.bf16.msra.mxu0 0
    %3076 = vmatprep.subr.bf16.mxu0 0
    %3077 = vmatpush1.bf16.msra.mxu0 0
    %3078 = vmatprep.subr.bf16.mxu0 0
    %3079 = vmatpush1.bf16.msra.mxu0 0
    %3080 = vmatprep.subr.bf16.mxu0 0
    %3081 = vmatpush1.bf16.msra.mxu0 0
    %3082 = vmatprep.subr.bf16.mxu0 0
    %3083 = vmatpush1.bf16.msra.mxu0 0
    %3084 = vmatprep.mubr.bf16.mxu0 0
    %3085 = vmatmul.mubr.bf16.gmra.mrb[0].mxu0 %v3050
    %v3086 = vpop.f32.mrb[0].mxu0
    %v3087 = vadd.f32 0.0, %v3086
    %v3088 = vpop.f32.mrb[0].mxu0
    %v3089 = vpop.f32.mrb[0].mxu0
    %v3090 = vpop.f32.mrb[0].mxu0
    %3091 = vdwg.mxu0
    %v3096 = vunpack.c.l.b16 %v2990
    %v3097 = vunpack.c.l.b16 %v2991
    %v3098 = vunpack.c.l.b16 %v2992
    %v3099 = vunpack.c.l.b16 %v2993
    %v3100 = vpack.c.b16 %v3097, %v3096
    %v3101 = vpack.c.b16 %v3099, %v3098
    %v3105 = vsel %vm77, %v59, 0
    %3107 = vmatprep.subr.bf16.mxu0 0
    %3108 = vmatpush1.bf16.msra.mxu0 %v3100
    %3109 = vmatprep.subr.bf16.mxu0 0
    %3110 = vmatpush1.bf16.msra.mxu0 %v3101
    %3111 = vmatprep.subr.bf16.mxu0 0
    %3112 = vmatpush1.bf16.msra.mxu0 0
    %3113 = vmatprep.subr.bf16.mxu0 0
    %3114 = vmatpush1.bf16.msra.mxu0 0
    %3115 = vmatprep.subr.bf16.mxu0 0
    %3116 = vmatpush1.bf16.msra.mxu0 0
    %3117 = vmatprep.subr.bf16.mxu0 0
    %3118 = vmatpush1.bf16.msra.mxu0 0
    %3119 = vmatprep.subr.bf16.mxu0 0
    %3120 = vmatpush1.bf16.msra.mxu0 0
    %3121 = vmatprep.subr.bf16.mxu0 0
    %3122 = vmatpush1.bf16.msra.mxu0 0
    %3123 = vmatprep.subr.bf16.mxu0 0
    %3124 = vmatpush1.bf16.msra.mxu0 0
    %3125 = vmatprep.subr.bf16.mxu0 0
    %3126 = vmatpush1.bf16.msra.mxu0 0
    %3127 = vmatprep.subr.bf16.mxu0 0
    %3128 = vmatpush1.bf16.msra.mxu0 0
    %3129 = vmatprep.subr.bf16.mxu0 0
    %3130 = vmatpush1.bf16.msra.mxu0 0
    %3131 = vmatprep.subr.bf16.mxu0 0
    %3132 = vmatpush1.bf16.msra.mxu0 0
    %3133 = vmatprep.subr.bf16.mxu0 0
    %3134 = vmatpush1.bf16.msra.mxu0 0
    %3135 = vmatprep.subr.bf16.mxu0 0
    %3136 = vmatpush1.bf16.msra.mxu0 0
    %3137 = vmatprep.subr.bf16.mxu0 0
    %3138 = vmatpush1.bf16.msra.mxu0 0
    %3139 = vmatprep.mubr.bf16.mxu0 0
    %3140 = vmatmul.mubr.bf16.gmra.mrb[0].mxu0 %v3105
    %v3141 = vpop.f32.mrb[0].mxu0
    %v3142 = vadd.f32 %v3087, %v3141
    %v3143 = vpop.f32.mrb[0].mxu0
    %v3144 = vpop.f32.mrb[0].mxu0
    %v3145 = vpop.f32.mrb[0].mxu0
    %3146 = vdwg.mxu0
    %v3147 = vld [vmem:[%s10] sm:$0xf]
    %v3148 = vld [vmem:[%s10 + $0x4] sm:$0xf]
    %v3149 = vld [vmem:[%s10 + $0x8] sm:$0xf]
    %v3150 = vld [vmem:[%s10 + $0xc] sm:$0xf]
    %v3155 = vunpack.c.l.b16 %v3147
    %v3156 = vunpack.c.l.b16 %v3148
    %v3157 = vunpack.c.l.b16 %v3149
    %v3158 = vunpack.c.l.b16 %v3150
    %v3159 = vpack.c.b16 %v3156, %v3155
    %v3160 = vpack.c.b16 %v3158, %v3157
    %3163 = vmatprep.subr.bf16.mxu0 0
    %3164 = vmatpush1.bf16.msra.mxu0 %v3159
    %3165 = vmatprep.subr.bf16.mxu0 0
    %3166 = vmatpush1.bf16.msra.mxu0 %v3160
    %3167 = vmatprep.subr.bf16.mxu0 0
    %3168 = vmatpush1.bf16.msra.mxu0 0
    %3169 = vmatprep.subr.bf16.mxu0 0
    %3170 = vmatpush1.bf16.msra.mxu0 0
    %3171 = vmatprep.subr.bf16.mxu0 0
    %3172 = vmatpush1.bf16.msra.mxu0 0
    %3173 = vmatprep.subr.bf16.mxu0 0
    %3174 = vmatpush1.bf16.msra.mxu0 0
    %3175 = vmatprep.subr.bf16.mxu0 0
    %3176 = vmatpush1.bf16.msra.mxu0 0
    %3177 = vmatprep.subr.bf16.mxu0 0
    %3178 = vmatpush1.bf16.msra.mxu0 0
    %3179 = vmatprep.subr.bf16.mxu0 0
    %3180 = vmatpush1.bf16.msra.mxu0 0
    %3181 = vmatprep.subr.bf16.mxu0 0
    %3182 = vmatpush1.bf16.msra.mxu0 0
    %3183 = vmatprep.subr.bf16.mxu0 0
    %3184 = vmatpush1.bf16.msra.mxu0 0
    %3185 = vmatprep.subr.bf16.mxu0 0
    %3186 = vmatpush1.bf16.msra.mxu0 0
    %3187 = vmatprep.subr.bf16.mxu0 0
    %3188 = vmatpush1.bf16.msra.mxu0 0
    %3189 = vmatprep.subr.bf16.mxu0 0
    %3190 = vmatpush1.bf16.msra.mxu0 0
    %3191 = vmatprep.subr.bf16.mxu0 0
    %3192 = vmatpush1.bf16.msra.mxu0 0
    %3193 = vmatprep.subr.bf16.mxu0 0
    %3194 = vmatpush1.bf16.msra.mxu0 0
    %3195 = vmatprep.mubr.bf16.mxu0 0
    %3196 = vmatmul.mubr.bf16.gmra.mrb[0].mxu0 %v79
    %v3197 = vpop.f32.mrb[0].mxu0
    %v3198 = vadd.f32 0.0, %v3197
    %v3199 = vpop.f32.mrb[0].mxu0
    %v3200 = vpop.f32.mrb[0].mxu0
    %v3201 = vpop.f32.mrb[0].mxu0
    %3202 = vdwg.mxu0
    %v3203 = vadd.f32 %v3142, %v3198
    %v3204 = vld [vmem:[%s11] sm:$0x1]
    %v3206 = vlaneseq
    %v3207 = vshrl.u32 %v3206, 7
    %v3208 = vsub.s32 0, %v3207
    %v3209 = vrot.slane %v3204, %v3208
    %v3211 = vadd.f32 %v3203, %v3209
    %v3212 = vxor.u32 %v3211, 2147483648
    %v3213 = vmul.f32 %v3212, 1.442695
    %v3214 = vpow.pop %v3213
    %v3215 = vadd.f32 %v3214, 1.0
    %v3216 = vrcp.pop %v3215
    %v3217 = vmul.f32 1.0, %v3216
    %v3218 = vld [vmem:[%s12] sm:$0x1]
    %v3220 = vlaneseq
    %v3221 = vshrl.u32 %v3220, 7
    %v3222 = vsub.s32 0, %v3221
    %v3223 = vrot.slane %v3218, %v3222
    %3224 = vrot.lane.b32.xlu0 %v3223, 32
    %v3225 = vpop.permute.xlu0 %3224
    %v3227 = vadd.f32 %v3203, %v3225
    %v3228 = vxor.u32 %v3227, 2147483648
    %v3229 = vmul.f32 %v3228, 1.442695
    %v3230 = vpow.pop %v3229
    %v3231 = vadd.f32 %v3230, 1.0
    %v3232 = vrcp.pop %v3231
    %v3233 = vmul.f32 1.0, %v3232
    %v3234 = vld [vmem:[%s13] sm:$0x1]
    %v3236 = vlaneseq
    %v3237 = vshrl.u32 %v3236, 7
    %v3238 = vsub.s32 0, %v3237
    %v3239 = vrot.slane %v3234, %v3238
    %3240 = vrot.lane.b32.xlu0 %v3239, 64
    %v3241 = vpop.permute.xlu0 %3240
    %v3243 = vadd.f32 %v3142, %v3241
    %v3244 = vld [vmem:[%s14] sm:$0x1]
    %v3246 = vlaneseq
    %v3247 = vshrl.u32 %v3246, 7
    %v3248 = vsub.s32 0, %v3247
    %v3249 = vrot.slane %v3244, %v3248
    %3250 = vrot.lane.b32.xlu0 %v3249, 64
    %v3251 = vpop.permute.xlu0 %3250
    %v3253 = vadd.f32 %v3198, %v3251
    %3255 = vrot.lane.b32.xlu0 %v3253, 64
    %v3256 = vpop.permute.xlu0 %3255
    %v3258 = vmul.f32 %v3217, %v3256
    %3260 = vrot.lane.b32.xlu0 %v3258, 64
    %v3261 = vpop.permute.xlu0 %3260
    %v3263 = vadd.f32 %v3243, %v3261
    %v3264 = vtanh.pop %v3263
    %v3265 = vsub.f32 1.0, %v3233
    %3267 = vrot.lane.b32.xlu0 %v3264, 96
    %v3268 = vpop.permute.xlu0 %3267
    %v3270 = vmul.f32 %v3265, %v3268
    %3272 = vrot.lane.b32.xlu0 %v57, 32
    %v3273 = vpop.permute.xlu0 %3272
    %v3275 = vmul.f32 %v3233, %v3273
    %v3276 = vadd.f32 %v3270, %v3275
    %3278 = vrot.lane.b32.xlu0 %v3276, 96
    %v3279 = vpop.permute.xlu0 %3278
    %3281 = vst.msk [vmem:[#allocation2] sm:$0xff] %vm77, %v3279
    // Predicated region
    $region62: #{tpu_custom_call.1} parent=1 // pred_check
      _
    $region63: #{tpu_custom_call.1} parent=1 // pred_check_branch
      %3283 = sbr.rel (0) target = $region65
    $region64: #{tpu_custom_call.1} parent=1 // pred_region
      %s3285 = ssub.s32 128, 128
      %3286 = vsyncadd [#allocation3], %s3285
      %s3288 = sshll.u32 [#allocation2], 4
      %s3289 = int_to_ptr.vmem [resolvable:$true] %s3288
      %3291 = dma.vmem_to_hbm [thread:$0]  %s3289, 128, %s15, [#allocation3]
    $region65: #{tpu_custom_call.1} parent=1 // pred_fallthru
      _
    // Predicated region
    $region66: #{tpu_custom_call.1} parent=1 // pred_check
      _
    $region67: #{tpu_custom_call.1} parent=1 // pred_check_branch
      %3293 = sbr.rel (0) target = $region69
    $region68: #{tpu_custom_call.1} parent=1 // pred_region
      %s3295 = ssub.s32 128, 128
      %3296 = vsyncadd [#allocation5], %s3295
      %s3298 = sshll.u32 [#allocation4], 4
      %s3299 = int_to_ptr.vmem [resolvable:$true] %s3298
      %3301 = dma.vmem_to_hbm [thread:$0]  %s3299, 128, %s16, [#allocation5]
    $region69: #{tpu_custom_call.1} parent=1 // pred_fallthru
      _
    // Predicated region
    $region70: #{tpu_custom_call.1} parent=1 // pred_check
      _
    $region71: #{tpu_custom_call.1} parent=1 // pred_check_branch
      %3303 = sbr.rel (0) target = $region73
    $region72: #{tpu_custom_call.1} parent=1 // pred_region
      %s3305 = ssub.s32 128, 128
      %3306 = vsyncadd [#allocation5], %s3305
      %s3308 = sshll.u32 [#allocation6], 4
      %s3309 = int_to_ptr.vmem [resolvable:$true] %s3308
      %3311 = dma.vmem_to_hbm [thread:$0]  %s3309, 128, %s17, [#allocation5]
    $region73: #{tpu_custom_call.1} parent=1 // pred_fallthru
      _
    // Predicated region
    $region74: #{tpu_custom_call.1} parent=1 // pred_check
      _
    $region75: #{tpu_custom_call.1} parent=1 // pred_check_branch
      %3313 = sbr.rel (0) target = $region77
    $region76: #{tpu_custom_call.1} parent=1 // pred_region
      %3314 = dma.done [#allocation3], 128
    $region77: #{tpu_custom_call.1} parent=1 // pred_fallthru
      _
    // Predicated region
    $region78: #{tpu_custom_call.1} parent=1 // pred_check
      _
    $region79: #{tpu_custom_call.1} parent=1 // pred_check_branch
      %3316 = sbr.rel (0) target = $region81
    $region80: #{tpu_custom_call.1} parent=1 // pred_region
      %3317 = dma.done [#allocation5], 128
    $region81: #{tpu_custom_call.1} parent=1 // pred_fallthru
      _
    // Predicated region
    $region82: #{tpu_custom_call.1} parent=1 // pred_check
      _
    $region83: #{tpu_custom_call.1} parent=1 // pred_check_branch
      %3319 = sbr.rel (0) target = $region85
    $region84: #{tpu_custom_call.1} parent=1 // pred_region
      %3320 = dma.done [#allocation5], 128
    $region85: #{tpu_custom_call.1} parent=1 // pred_fallthru
      _
    %3321 = vsyncpa [#allocation3], 1
    %3322 = vsyncpa [#allocation5], 1

</llo_original>
